<compile_context>
chip_gen: v7x
topology: tpu7x:2x2x1
jax: 0.10.0
libtpu: 0.0.40
codegen_flags: <defaults>
</compile_context>

<pallas_src>
import math

import jax
import jax.numpy as jnp
from jax import lax
from jax.experimental import pallas as pl

# ----------------------------- config ---------------------------------------
B = 2            # batch
T = 8            # seq_len
H = 32           # hidden_size
NH = 4           # num_attention_heads
D = H // NH      # attention_head_size
LORA_RANK = 2048
LORA_ALPHA = 4096
LORA_SCALING = LORA_ALPHA / LORA_RANK  # 2.0


# ------------------------- fully fused forward kernel ------------------------
def attn_kernel(x_ref, mask_ref, wqkv_ref, bias_ref, lora_a_ref, lora_b_ref, o_ref):
    # ---- base projection + in-kernel LoRA delta (no merged weight materialised) ----
    x = x_ref[...].reshape(B * T, H)                                        # (16, 32) f32
    base = jnp.dot(x, wqkv_ref[...],
                   preferred_element_type=jnp.float32) + bias_ref[...]      # (16, 96)

    xb = x.astype(jnp.bfloat16)
    # x @ [Aq | Ak]: one bf16 MXU matmul covering both LoRA layers (rank streams bf16).
    xa = jnp.dot(xb, lora_a_ref[...],
                 preferred_element_type=jnp.float32).astype(jnp.bfloat16)   # (16, 2R)
    dq = jnp.dot(xa[:, :LORA_RANK], lora_b_ref[0],
                 preferred_element_type=jnp.float32)                        # (16, 32)
    dk = jnp.dot(xa[:, LORA_RANK:], lora_b_ref[1],
                 preferred_element_type=jnp.float32)                        # (16, 32)

    q = base[:, :H] + dq          # 1/sqrt(D) already folded into Wq / bq / Bq (host)
    k = base[:, H:2 * H] + dk
    v = base[:, 2 * H:]

    # ---- stack heads along rows: row r = h*(B*T) + b*T + t -> everything stays 2-D ----
    def stack_heads(m):           # (B*T, H) -> (NH*B*T, D)
        return jnp.concatenate([m[:, h * D:(h + 1) * D] for h in range(NH)], axis=0)

    qs, ks, vs = stack_heads(q), stack_heads(k), stack_heads(v)

    # Scores for all heads/batches in ONE matmul (contract the head dim, no explicit
    # transpose).  Off-(head,batch)-block entries are garbage but the precomputed mask
    # puts them at <= -1e4, so their softmax weight underflows to exactly 0.
    s = lax.dot_general(qs, ks, (((1,), (1,)), ((), ())),
                        preferred_element_type=jnp.float32)                 # (64, 64)
    s = s + mask_ref[...]
    s = s - jnp.max(s, axis=-1, keepdims=True)
    p = jnp.exp(s)
    p = p / jnp.sum(p, axis=-1, keepdims=True)        # exact normalisation (no approx)

    # Context: one matmul; zero off-block probs make the block-diagonal form exact.
    ctx = jnp.dot(p, vs, preferred_element_type=jnp.float32)                # (64, 8)

    # ---- un-stack 'b h t d -> b t (h d)' and store once ----
    ctx4 = ctx.reshape(NH, B, T, D)
    o_ref[...] = jnp.concatenate([ctx4[h] for h in range(NH)], axis=-1)     # (B, T, H)


@jax.jit
def causal_self_attention(hidden_states, attention_mask, wqkv, bqkv,
                          lora_a, lora_b, base_mask):
    """hidden_states: [B, T, H]; attention_mask: [B, 1, 1, T] -> [B, T, H]."""
    # Combined mask built in the wrapper (hoisted out of the kernel): static
    # block-diagonal + causal part plus the per-call key-padding mask.
    pad = jnp.tile(attention_mask.reshape(B * T), NH)        # (NH*B*T,), key order
    mask_full = base_mask + pad[None, :]
    return pl.pallas_call(
        attn_kernel,
        out_shape=jax.ShapeDtypeStruct((B, T, H), jnp.float32),
        in_specs=[
            pl.BlockSpec((B, T, H), lambda: (0, 0, 0)),                  # hidden_states
            pl.BlockSpec((NH * B * T, NH * B * T), lambda: (0, 0)),      # combined mask
            pl.BlockSpec((H, 3 * H), lambda: (0, 0)),                    # Wq|Wk|Wv (base)
            pl.BlockSpec((1, 3 * H), lambda: (0, 0)),                    # bq|bk|bv
            pl.BlockSpec((H, 2 * LORA_RANK), lambda: (0, 0)),            # [Aq|Ak] bf16
            pl.BlockSpec((2, LORA_RANK, H), lambda: (0, 0, 0)),          # [Bq;Bk] bf16
        ],
        out_specs=pl.BlockSpec((B, T, H), lambda: (0, 0, 0)),
    )(hidden_states, mask_full, wqkv, bqkv, lora_a, lora_b)


# --------------------- one-time host-side parameter prep ---------------------
def prepare_params(q_weight, q_bias, q_lora_A, q_lora_B,
                   k_weight, k_bias, k_lora_A, k_lora_B, v_weight, v_bias):
    inv = 1.0 / math.sqrt(D)
    # Base projection (y = x @ W.T + b); 1/sqrt(head_size) folded into the Q columns.
    wqkv = jnp.concatenate([q_weight.T * inv, k_weight.T, v_weight.T], axis=1)  # (H, 3H)
    bqkv = jnp.concatenate([q_bias * inv, k_bias, v_bias]).reshape(1, 3 * H)
    # LoRA delta = (x @ A) @ B * scaling == x @ (A @ B) * scaling: exactly the
    # LoRALayer semantics (which, as in PyTorch, require in_dim == out_dim).
    # scaling (and 1/sqrt(D) for the query) folded into B; both factors streamed bf16.
    lora_a = jnp.concatenate([q_lora_A, k_lora_A], axis=1).astype(jnp.bfloat16)  # (H, 2R)
    lora_b = jnp.stack([q_lora_B * (LORA_SCALING * inv),
                        k_lora_B * LORA_SCALING]).astype(jnp.bfloat16)           # (2, R, H)
    return wqkv, bqkv, lora_a, lora_b


def build_base_mask():
    # (head,batch)-block-diagonal + causal mask of shape (NH*B*T, NH*B*T);
    # rows/cols ordered r = h*(B*T) + b*T + t.  Off-block entries sit at -1e4 so their
    # softmax weight underflows to exactly 0 in the fused score/context matmuls.
    causal = jnp.where(jnp.arange(T)[None, :] > jnp.arange(T)[:, None], -10000.0, 0.0)
    eye_hb = jnp.eye(NH * B, dtype=jnp.float32)
    blk = eye_hb[:, None, :, None] * (causal[None, :, None, :] + 10000.0) - 10000.0
    return blk.reshape(NH * B * T, NH * B * T).astype(jnp.float32)


# ------------------------------- reference -----------------------------------
def reference(hidden_states, attention_mask,
              q_weight, q_bias, q_lora_A, q_lora_B,
              k_weight, k_bias, k_lora_A, k_lora_B, v_weight, v_bias):
    # LoRALayer.forward: F.linear(x, weight + (lora_A @ lora_B).T * scaling, bias)
    wq_eff = q_weight + (q_lora_A @ q_lora_B).T * LORA_SCALING    # [out, in] (square)
    wk_eff = k_weight + (k_lora_A @ k_lora_B).T * LORA_SCALING
    x = hidden_states
    q = x @ wq_eff.T + q_bias
    k = x @ wk_eff.T + k_bias
    v = x @ v_weight.T + v_bias

    def split(a):  # b t (h d) -> b h t d
        return a.reshape(B, T, NH, D).transpose(0, 2, 1, 3)

    q, k, v = split(q), split(k), split(v)
    scores = jnp.einsum("bhqd,bhkd->bhqk", q, k) / math.sqrt(D)
    causal = jnp.where(jnp.arange(T)[None, :] > jnp.arange(T)[:, None], -10000.0, 0.0)
    scores = scores + attention_mask + causal[None, None]
    probs = jax.nn.softmax(scores, axis=-1)
    ctx = jnp.einsum("bhqk,bhkd->bhqd", probs, v)
    return ctx.transpose(0, 2, 1, 3).reshape(B, T, H)


# --------------------------------- main ---------------------------------------
if __name__ == "__main__":
    key = jax.random.PRNGKey(0)
    keys = jax.random.split(key, 11)

    # LoRA query layer params (shapes per LoRALayer.__init__; deterministic-random).
    q_weight = 0.05 * jax.random.normal(keys[0], (H, H), jnp.float32)        # [out, in]
    q_bias = 0.05 * jax.random.normal(keys[1], (H,), jnp.float32)
    q_lora_A = 0.02 * jax.random.normal(keys[2], (H, LORA_RANK), jnp.float32)
    q_lora_B = 0.02 * jax.random.normal(keys[3], (LORA_RANK, H), jnp.float32)

    # LoRA key layer params
    k_weight = 0.05 * jax.random.normal(keys[4], (H, H), jnp.float32)
    k_bias = 0.05 * jax.random.normal(keys[5], (H,), jnp.float32)
    k_lora_A = 0.02 * jax.random.normal(keys[6], (H, LORA_RANK), jnp.float32)
    k_lora_B = 0.02 * jax.random.normal(keys[7], (LORA_RANK, H), jnp.float32)

    # value nn.Linear params
    v_weight = 0.05 * jax.random.normal(keys[8], (H, H), jnp.float32)        # [out, in]
    v_bias = 0.05 * jax.random.normal(keys[9], (H,), jnp.float32)

    wqkv, bqkv, lora_a, lora_b = prepare_params(
        q_weight, q_bias, q_lora_A, q_lora_B,
        k_weight, k_bias, k_lora_A, k_lora_B, v_weight, v_bias)
    base_mask = build_base_mask()

    hidden_states = jax.random.normal(keys[10], (B, T, H), jnp.float32)
    # attention_mask: [B, 1, 1, T]; 0 = attend, -10000 = masked (mask last 2 keys of batch 1)
    attention_mask = jnp.zeros((B, 1, 1, T), jnp.float32)
    attention_mask = attention_mask.at[1, 0, 0, T - 2:].set(-10000.0)

    out = causal_self_attention(hidden_states, attention_mask,
                                wqkv, bqkv, lora_a, lora_b, base_mask)
    out = jax.block_until_ready(out)

    ref = reference(hidden_states, attention_mask,
                    q_weight, q_bias, q_lora_A, q_lora_B,
                    k_weight, k_bias, k_lora_A, k_lora_B, v_weight, v_bias)
    assert out.shape == (B, T, H)
    # Softmax uses exact division (no approx reciprocal).  The only deliberate deviation
    # from the f32 module semantics is streaming the rank-2048 LoRA factors in bf16
    # (requested HBM optimization); with f32 factors the kernel matches to ~1e-5.
    assert jnp.allclose(out, ref, atol=1e-2, rtol=1e-2), "mismatch vs reference"

    print("KERNEL_OK")
</pallas_src>

<mosaic_0001>
module attributes {stable_mosaic.version = 11 : i64} {
  func.func @attn_kernel(%arg0: memref<2x8x32xf32, #tpu.memory_space<vmem>>, %arg1: memref<64x64xf32, #tpu.memory_space<vmem>>, %arg2: memref<32x96xf32, #tpu.memory_space<vmem>>, %arg3: memref<1x96xf32, #tpu.memory_space<vmem>>, %arg4: memref<32x4096xbf16, #tpu.memory_space<vmem>>, %arg5: memref<2x2048x32xbf16, #tpu.memory_space<vmem>>, %arg6: memref<2x8x32xf32, #tpu.memory_space<vmem>>) attributes {dimension_semantics = [], scalar_prefetch = 0 : i64, scratch_operands = 0 : i64, tpu.core_type = #tpu.core_type<tc>} {
    %c0 = arith.constant 0 : index
    %c0_0 = arith.constant 0 : index
    %c0_1 = arith.constant 0 : index
    %0 = vector.load %arg0[%c0, %c0_0, %c0_1] : memref<2x8x32xf32, #tpu.memory_space<vmem>>, vector<2x8x32xf32>
    %1 = vector.shape_cast %0 : vector<2x8x32xf32> to vector<16x32xf32>
    %c0_2 = arith.constant 0 : index
    %c0_3 = arith.constant 0 : index
    %2 = vector.load %arg2[%c0_2, %c0_3] : memref<32x96xf32, #tpu.memory_space<vmem>>, vector<32x96xf32>
    %cst = arith.constant dense<0.000000e+00> : vector<16x96xf32>
    %3 = tpu.matmul %1, %2, %cst {dimension_numbers = #tpu.dot_dimension_numbers<[1], [0], [0], [1], [0, 0, 1, 1], [], []>} : vector<16x32xf32>, vector<32x96xf32>, vector<16x96xf32> -> vector<16x96xf32>
    %c0_4 = arith.constant 0 : index
    %c0_5 = arith.constant 0 : index
    %4 = vector.load %arg3[%c0_4, %c0_5] : memref<1x96xf32, #tpu.memory_space<vmem>>, vector<1x96xf32>
    %5 = vector.broadcast %4 : vector<1x96xf32> to vector<16x96xf32>
    %6 = arith.addf %3, %5 : vector<16x96xf32>
    %7 = arith.truncf %1 : vector<16x32xf32> to vector<16x32xbf16>
    %c0_6 = arith.constant 0 : index
    %c0_7 = arith.constant 0 : index
    %8 = vector.load %arg4[%c0_6, %c0_7] : memref<32x4096xbf16, #tpu.memory_space<vmem>>, vector<32x4096xbf16>
    %cst_8 = arith.constant dense<0.000000e+00> : vector<16x4096xf32>
    %9 = tpu.matmul %7, %8, %cst_8 {dimension_numbers = #tpu.dot_dimension_numbers<[1], [0], [0], [1], [0, 0, 1, 1], [], []>} : vector<16x32xbf16>, vector<32x4096xbf16>, vector<16x4096xf32> -> vector<16x4096xf32>
    %10 = arith.truncf %9 : vector<16x4096xf32> to vector<16x4096xbf16>
    %11 = vector.extract_strided_slice %10 {offsets = [0, 0], sizes = [16, 2048], strides = [1, 1]} : vector<16x4096xbf16> to vector<16x2048xbf16>
    %c0_9 = arith.constant 0 : index
    %c0_10 = arith.constant 0 : index
    %c0_11 = arith.constant 0 : index
    %12 = vector.load %arg5[%c0_9, %c0_10, %c0_11] : memref<2x2048x32xbf16, #tpu.memory_space<vmem>>, vector<1x2048x32xbf16>
    %13 = vector.shape_cast %12 : vector<1x2048x32xbf16> to vector<2048x32xbf16>
    %cst_12 = arith.constant dense<0.000000e+00> : vector<16x32xf32>
    %14 = tpu.matmul %11, %13, %cst_12 {dimension_numbers = #tpu.dot_dimension_numbers<[1], [0], [0], [1], [0, 0, 1, 1], [], []>} : vector<16x2048xbf16>, vector<2048x32xbf16>, vector<16x32xf32> -> vector<16x32xf32>
    %15 = vector.extract_strided_slice %10 {offsets = [0, 2048], sizes = [16, 2048], strides = [1, 1]} : vector<16x4096xbf16> to vector<16x2048xbf16>
    %c1 = arith.constant 1 : index
    %c0_13 = arith.constant 0 : index
    %c0_14 = arith.constant 0 : index
    %16 = vector.load %arg5[%c1, %c0_13, %c0_14] : memref<2x2048x32xbf16, #tpu.memory_space<vmem>>, vector<1x2048x32xbf16>
    %17 = vector.shape_cast %16 : vector<1x2048x32xbf16> to vector<2048x32xbf16>
    %cst_15 = arith.constant dense<0.000000e+00> : vector<16x32xf32>
    %18 = tpu.matmul %15, %17, %cst_15 {dimension_numbers = #tpu.dot_dimension_numbers<[1], [0], [0], [1], [0, 0, 1, 1], [], []>} : vector<16x2048xbf16>, vector<2048x32xbf16>, vector<16x32xf32> -> vector<16x32xf32>
    %19 = vector.extract_strided_slice %6 {offsets = [0, 0], sizes = [16, 32], strides = [1, 1]} : vector<16x96xf32> to vector<16x32xf32>
    %20 = arith.addf %19, %14 : vector<16x32xf32>
    %21 = vector.extract_strided_slice %6 {offsets = [0, 32], sizes = [16, 32], strides = [1, 1]} : vector<16x96xf32> to vector<16x32xf32>
    %22 = arith.addf %21, %18 : vector<16x32xf32>
    %23 = vector.extract_strided_slice %6 {offsets = [0, 64], sizes = [16, 32], strides = [1, 1]} : vector<16x96xf32> to vector<16x32xf32>
    %24 = vector.extract_strided_slice %20 {offsets = [0, 0], sizes = [16, 8], strides = [1, 1]} : vector<16x32xf32> to vector<16x8xf32>
    %25 = vector.extract_strided_slice %20 {offsets = [0, 8], sizes = [16, 8], strides = [1, 1]} : vector<16x32xf32> to vector<16x8xf32>
    %26 = vector.extract_strided_slice %20 {offsets = [0, 16], sizes = [16, 8], strides = [1, 1]} : vector<16x32xf32> to vector<16x8xf32>
    %27 = vector.extract_strided_slice %20 {offsets = [0, 24], sizes = [16, 8], strides = [1, 1]} : vector<16x32xf32> to vector<16x8xf32>
    %28 = tpu.concatenate %24, %25, %26, %27 in 0 : vector<16x8xf32>, vector<16x8xf32>, vector<16x8xf32>, vector<16x8xf32> -> vector<64x8xf32>
    %29 = vector.extract_strided_slice %22 {offsets = [0, 0], sizes = [16, 8], strides = [1, 1]} : vector<16x32xf32> to vector<16x8xf32>
    %30 = vector.extract_strided_slice %22 {offsets = [0, 8], sizes = [16, 8], strides = [1, 1]} : vector<16x32xf32> to vector<16x8xf32>
    %31 = vector.extract_strided_slice %22 {offsets = [0, 16], sizes = [16, 8], strides = [1, 1]} : vector<16x32xf32> to vector<16x8xf32>
    %32 = vector.extract_strided_slice %22 {offsets = [0, 24], sizes = [16, 8], strides = [1, 1]} : vector<16x32xf32> to vector<16x8xf32>
    %33 = tpu.concatenate %29, %30, %31, %32 in 0 : vector<16x8xf32>, vector<16x8xf32>, vector<16x8xf32>, vector<16x8xf32> -> vector<64x8xf32>
    %34 = vector.extract_strided_slice %23 {offsets = [0, 0], sizes = [16, 8], strides = [1, 1]} : vector<16x32xf32> to vector<16x8xf32>
    %35 = vector.extract_strided_slice %23 {offsets = [0, 8], sizes = [16, 8], strides = [1, 1]} : vector<16x32xf32> to vector<16x8xf32>
    %36 = vector.extract_strided_slice %23 {offsets = [0, 16], sizes = [16, 8], strides = [1, 1]} : vector<16x32xf32> to vector<16x8xf32>
    %37 = vector.extract_strided_slice %23 {offsets = [0, 24], sizes = [16, 8], strides = [1, 1]} : vector<16x32xf32> to vector<16x8xf32>
    %38 = tpu.concatenate %34, %35, %36, %37 in 0 : vector<16x8xf32>, vector<16x8xf32>, vector<16x8xf32>, vector<16x8xf32> -> vector<64x8xf32>
    %cst_16 = arith.constant dense<0.000000e+00> : vector<64x64xf32>
    %39 = tpu.matmul %28, %33, %cst_16 {dimension_numbers = #tpu.dot_dimension_numbers<[1], [1], [0], [0], [0, 0, 1, 0], [], []>} : vector<64x8xf32>, vector<64x8xf32>, vector<64x64xf32> -> vector<64x64xf32>
    %c0_17 = arith.constant 0 : index
    %c0_18 = arith.constant 0 : index
    %40 = vector.load %arg1[%c0_17, %c0_18] : memref<64x64xf32, #tpu.memory_space<vmem>>, vector<64x64xf32>
    %41 = arith.addf %39, %40 : vector<64x64xf32>
    %cst_19 = arith.constant dense<0xFF800000> : vector<64xf32>
    %42 = vector.multi_reduction <maximumf>, %41, %cst_19 [1] : vector<64x64xf32> to vector<64xf32>
    %43 = vector.shape_cast %42 : vector<64xf32> to vector<64x1xf32>
    %44 = vector.broadcast %43 : vector<64x1xf32> to vector<64x64xf32>
    %45 = arith.subf %41, %44 : vector<64x64xf32>
    %46 = math.exp %45 : vector<64x64xf32>
    %cst_20 = arith.constant dense<0.000000e+00> : vector<64xf32>
    %47 = vector.multi_reduction <add>, %46, %cst_20 [1] : vector<64x64xf32> to vector<64xf32>
    %48 = vector.shape_cast %47 : vector<64xf32> to vector<64x1xf32>
    %49 = vector.broadcast %48 : vector<64x1xf32> to vector<64x64xf32>
    %50 = arith.divf %46, %49 : vector<64x64xf32>
    %cst_21 = arith.constant dense<0.000000e+00> : vector<64x8xf32>
    %51 = tpu.matmul %50, %38, %cst_21 {dimension_numbers = #tpu.dot_dimension_numbers<[1], [0], [0], [1], [0, 0, 1, 1], [], []>} : vector<64x64xf32>, vector<64x8xf32>, vector<64x8xf32> -> vector<64x8xf32>
    %52 = vector.shape_cast %51 : vector<64x8xf32> to vector<4x2x8x8xf32>
    %53 = vector.extract_strided_slice %52 {offsets = [0, 0, 0, 0], sizes = [1, 2, 8, 8], strides = [1, 1, 1, 1]} : vector<4x2x8x8xf32> to vector<1x2x8x8xf32>
    %54 = vector.shape_cast %53 : vector<1x2x8x8xf32> to vector<2x8x8xf32>
    %55 = vector.extract_strided_slice %52 {offsets = [1, 0, 0, 0], sizes = [1, 2, 8, 8], strides = [1, 1, 1, 1]} : vector<4x2x8x8xf32> to vector<1x2x8x8xf32>
    %56 = vector.shape_cast %55 : vector<1x2x8x8xf32> to vector<2x8x8xf32>
    %57 = vector.extract_strided_slice %52 {offsets = [2, 0, 0, 0], sizes = [1, 2, 8, 8], strides = [1, 1, 1, 1]} : vector<4x2x8x8xf32> to vector<1x2x8x8xf32>
    %58 = vector.shape_cast %57 : vector<1x2x8x8xf32> to vector<2x8x8xf32>
    %59 = vector.extract_strided_slice %52 {offsets = [3, 0, 0, 0], sizes = [1, 2, 8, 8], strides = [1, 1, 1, 1]} : vector<4x2x8x8xf32> to vector<1x2x8x8xf32>
    %60 = vector.shape_cast %59 : vector<1x2x8x8xf32> to vector<2x8x8xf32>
    %61 = tpu.concatenate %54, %56, %58, %60 in 2 : vector<2x8x8xf32>, vector<2x8x8xf32>, vector<2x8x8xf32>, vector<2x8x8xf32> -> vector<2x8x32xf32>
    %c0_22 = arith.constant 0 : index
    %c0_23 = arith.constant 0 : index
    %c0_24 = arith.constant 0 : index
    %62 = vector.load %arg6[%c0_22, %c0_23, %c0_24] : memref<2x8x32xf32, #tpu.memory_space<vmem>>, vector<2x8x32xf32>
    tpu.vector_store %arg6[%c0_22, %c0_23, %c0_24], %61 {strides = array<i32>} : memref<2x8x32xf32, #tpu.memory_space<vmem>>, vector<2x8x32xf32>,
    return
  }
}

</mosaic_0001>

<llo_original>
// kernel: tile.6
$region0: #{tile.6}
  #allocation0 [shape = 's32[1]{0}', space=sflag, size = 0x4, scoped, tag = 'scoped memory for tile.6']
  %s0 = inlined_call_operand.vmem [shape: f32[16], index: 0, kind: input, shape index: {}]
  %s1 = inlined_call_operand.vmem [shape: f32[4,16], index: 1, kind: output, shape index: {}]
  // Predicated region
  $region2: #{tile.6} parent=0 // pred_check
    _
  $region3: #{tile.6} parent=0 // pred_check_branch
    %3 = sbr.rel (0) target = $region5
  $region4: #{tile.6} parent=0 // pred_region
    _
  $region5: #{tile.6} parent=0 // pred_fallthru
    _
  %v4 = vld [vmem:[%s0] ss:$0 sm:$0xff]
  %5 = vst [vmem:[%s1] sm:$0xf] %v4

// kernel: tile.5
$region0: #{tile.5}
  %s0 = inlined_call_operand.vmem [shape: f32[2,8], index: 0, kind: input, shape index: {}]
  %s1 = inlined_call_operand.vmem [shape: f32[16], index: 1, kind: output, shape index: {}]
  $region1: #{tile.5} parent=0
    #allocation0 [shape = 'u8[4096]{0}', space=vmem, size = 0x1000, scoped, tag = 'scoped mem for output reshape']
    #allocation1 [shape = 'u8[4096]{0}', space=vmem, size = 0x1000, scoped, tag = 'scoped mem for input reshape']
    %s3 = sshllo.u32 0, 2
    %v4 = vld [vmem:[%s0] sm:%s3]
    %5 = vst [vmem:[#allocation1] sm:%s3] %v4
    %v6 = vld [vmem:[#allocation1] sm:$0x1]
    %vm7 = vcmask 64512
    %8 = vst.msk [vmem:[#allocation0] sm:$0x1] %vm7, %v6
    %s9 = scalar_lea.vmem [#allocation1], 1
    %v10 = vld [vmem:[%s9] sm:$0x1]
    %11 = vrot.lane.b32.xlu0 %v10, 8
    %v12 = vpop.permute.xlu0 %11
    %vm13 = vcmask 130112
    %14 = vst.msk [vmem:[#allocation0] sm:$0x1] %vm13, %v12
    %s16 = sshllo.u32 0, 1
    %v18 = vld [vmem:[#allocation0] sm:%s16]
    %s19 = sshllo.u32 0, 1
    %20 = vst [vmem:[%s1] sm:%s19] %v18

// kernel: causal_self_attention.1
$region0: #{causal_self_attention.1}
  #allocation0 [shape = 'u32[]', space=smem, size = 0x4, offset = 0x4, fixed_abs, tag = 'smem constant byte address 0x4 - core index']
  #allocation1 [shape = 'u32[144,128]{1,0:T(1,128)}', space=vmem, size = 0x12000, scoped, tag = 'internal scratch']
  %s0 = inlined_call_operand.vmem [shape: f32[2,8,32], index: 0, kind: input, shape index: {}]
  %s1 = inlined_call_operand.vmem [shape: f32[64,64], index: 1, kind: input, shape index: {}]
  %s2 = inlined_call_operand.vmem [shape: f32[32,96], index: 2, kind: input, shape index: {}]
  %s3 = inlined_call_operand.vmem [shape: f32[1,96], index: 3, kind: input, shape index: {}]
  %s4 = inlined_call_operand.vmem [shape: bf16[32,4096], index: 4, kind: input, shape index: {}]
  %s5 = inlined_call_operand.vmem [shape: bf16[2,2048,32], index: 5, kind: input, shape index: {}]
  %s6 = inlined_call_operand.hbm [shape: f32[2,8,32], index: 6, kind: output, shape index: {}]
  %s7 = sld [smem:[#allocation0]]
  $region34: #{causal_self_attention.1} parent=0
    _
  %s9 = ssub.s32 1, %s7
  %s10 = scalar_select 0, %s9, %s7
  $region1: #{causal_self_attention.1} parent=0
    #allocation2 [shape = 'u8[8192]{0}', space=vmem, size = 0x2000, scoped, tag = 'output window, operand 0, single buffered']
    #allocation3 [shape = 's32[1]{0}', space=sflag, size = 0x4, scoped, tag = 'scoped memory for causal_self_attention.1']
    %11 = vsyncpa [#allocation3], 0
    // Predicated region
    $region2: #{causal_self_attention.1} parent=1 // pred_check
      _
    $region3: #{causal_self_attention.1} parent=1 // pred_check_branch
      %13 = sbr.rel (0) target = $region5
    $region4: #{causal_self_attention.1} parent=1 // pred_region
      _
    $region5: #{causal_self_attention.1} parent=1 // pred_fallthru
      _
    // Predicated region
    $region6: #{causal_self_attention.1} parent=1 // pred_check
      _
    $region7: #{causal_self_attention.1} parent=1 // pred_check_branch
      %15 = sbr.rel (0) target = $region9
    $region8: #{causal_self_attention.1} parent=1 // pred_region
      _
    $region9: #{causal_self_attention.1} parent=1 // pred_fallthru
      _
    // Predicated region
    $region10: #{causal_self_attention.1} parent=1 // pred_check
      _
    $region11: #{causal_self_attention.1} parent=1 // pred_check_branch
      %17 = sbr.rel (0) target = $region13
    $region12: #{causal_self_attention.1} parent=1 // pred_region
      _
    $region13: #{causal_self_attention.1} parent=1 // pred_fallthru
      _
    // Predicated region
    $region14: #{causal_self_attention.1} parent=1 // pred_check
      _
    $region15: #{causal_self_attention.1} parent=1 // pred_check_branch
      %19 = sbr.rel (0) target = $region17
    $region16: #{causal_self_attention.1} parent=1 // pred_region
      _
    $region17: #{causal_self_attention.1} parent=1 // pred_fallthru
      _
    // Predicated region
    $region18: #{causal_self_attention.1} parent=1 // pred_check
      _
    $region19: #{causal_self_attention.1} parent=1 // pred_check_branch
      %21 = sbr.rel (0) target = $region21
    $region20: #{causal_self_attention.1} parent=1 // pred_region
      _
    $region21: #{causal_self_attention.1} parent=1 // pred_fallthru
      _
    // Predicated region
    $region22: #{causal_self_attention.1} parent=1 // pred_check
      _
    $region23: #{causal_self_attention.1} parent=1 // pred_check_branch
      %23 = sbr.rel (0) target = $region25
    $region24: #{causal_self_attention.1} parent=1 // pred_region
      _
    $region25: #{causal_self_attention.1} parent=1 // pred_fallthru
      _
    %v25 = vld [vmem:[%s0] sm:$0xff]
    %v26 = vld [vmem:[%s0 + $0x8] sm:$0xff]
    %v27 = vld [vmem:[%s2] sm:$0xff]
    %v28 = vld [vmem:[%s2 + $0x8] sm:$0xff]
    %v29 = vld [vmem:[%s2 + $0x10] sm:$0xff]
    %v30 = vld [vmem:[%s2 + $0x18] sm:$0xff]
    %v31 = vld [vmem:[%s3] sm:$0x1]
    %v33 = vlaneseq
    %v34 = vshrl.u32 %v33, 7
    %v35 = vsub.s32 0, %v34
    %v36 = vrot.slane %v31, %v35
    %vm38 = vcmask 261120
    %v40 = vsel %vm38, %v25, 0
    %v43 = vsel %vm38, %v26, 0
    %45 = vmatprep.subr.mxu0 0.0
    %46 = vmatpush1.msra.mxu0 %v27
    %47 = vmatprep.subr.mxu0 0.0
    %48 = vmatpush1.msra.mxu0 %v28
    %49 = vmatprep.subr.mxu0 0.0
    %50 = vmatpush1.msra.mxu0 %v29
    %51 = vmatprep.subr.mxu0 0.0
    %52 = vmatpush1.msra.mxu0 %v30
    %53 = vmatprep.subr.mxu0 0.0
    %54 = vmatpush1.msra.mxu0 0.0
    %55 = vmatprep.subr.mxu0 0.0
    %56 = vmatpush1.msra.mxu0 0.0
    %57 = vmatprep.subr.mxu0 0.0
    %58 = vmatpush1.msra.mxu0 0.0
    %59 = vmatprep.subr.mxu0 0.0
    %60 = vmatpush1.msra.mxu0 0.0
    %61 = vmatprep.subr.mxu0 0.0
    %62 = vmatpush1.msra.mxu0 0.0
    %63 = vmatprep.subr.mxu0 0.0
    %64 = vmatpush1.msra.mxu0 0.0
    %65 = vmatprep.subr.mxu0 0.0
    %66 = vmatpush1.msra.mxu0 0.0
    %67 = vmatprep.subr.mxu0 0.0
    %68 = vmatpush1.msra.mxu0 0.0
    %69 = vmatprep.subr.mxu0 0.0
    %70 = vmatpush1.msra.mxu0 0.0
    %71 = vmatprep.subr.mxu0 0.0
    %72 = vmatpush1.msra.mxu0 0.0
    %73 = vmatprep.subr.mxu0 0.0
    %74 = vmatpush1.msra.mxu0 0.0
    %75 = vmatprep.subr.mxu0 0.0
    %76 = vmatpush1.msra.mxu0 0.0
    %77 = vmatprep.subr.mxu0 0.0
    %78 = vmatpush1.msra.mxu0 0.0
    %79 = vmatprep.subr.mxu0 0.0
    %80 = vmatpush1.msra.mxu0 0.0
    %81 = vmatprep.subr.mxu0 0.0
    %82 = vmatpush1.msra.mxu0 0.0
    %83 = vmatprep.subr.mxu0 0.0
    %84 = vmatpush1.msra.mxu0 0.0
    %85 = vmatprep.subr.mxu0 0.0
    %86 = vmatpush1.msra.mxu0 0.0
    %87 = vmatprep.subr.mxu0 0.0
    %88 = vmatpush1.msra.mxu0 0.0
    %89 = vmatprep.subr.mxu0 0.0
    %90 = vmatpush1.msra.mxu0 0.0
    %91 = vmatprep.subr.mxu0 0.0
    %92 = vmatpush1.msra.mxu0 0.0
    %93 = vmatprep.subr.mxu0 0.0
    %94 = vmatpush1.msra.mxu0 0.0
    %95 = vmatprep.subr.mxu0 0.0
    %96 = vmatpush1.msra.mxu0 0.0
    %97 = vmatprep.subr.mxu0 0.0
    %98 = vmatpush1.msra.mxu0 0.0
    %99 = vmatprep.subr.mxu0 0.0
    %100 = vmatpush1.msra.mxu0 0.0
    %101 = vmatprep.subr.mxu0 0.0
    %102 = vmatpush1.msra.mxu0 0.0
    %103 = vmatprep.subr.mxu0 0.0
    %104 = vmatpush1.msra.mxu0 0.0
    %105 = vmatprep.subr.mxu0 0.0
    %106 = vmatpush1.msra.mxu0 0.0
    %107 = vmatprep.subr.mxu0 0.0
    %108 = vmatpush1.msra.mxu0 0.0
    %109 = vmatprep.mubr.f32.mxu0 0.0
    %110 = vmatmul.mubr.f32.gmra.mrb[0].mxu0 %v40
    %v111 = vpop.f32.mrb[0].mxu0
    %v112 = vadd.f32 %v36, %v111
    %v113 = vpop.f32.mrb[0].mxu0
    %114 = vmatprep.mubr.f32.mxu0 0.0
    %115 = vmatmul.mubr.f32.gmra.mrb[0].mxu0 %v43
    %v116 = vpop.f32.mrb[0].mxu0
    %v117 = vadd.f32 %v36, %v116
    %v118 = vpop.f32.mrb[0].mxu0
    %119 = vdwg.mxu0
    %v120 = vpack.c.bf16 %v26, %v25
    %v121 = vld [vmem:[%s4] sm:$0xff]
    %v122 = vld [vmem:[%s4 + $0x8] sm:$0xff]
    %v123 = vld [vmem:[%s4 + $0x10] sm:$0xff]
    %v124 = vld [vmem:[%s4 + $0x18] sm:$0xff]
    %v125 = vld [vmem:[%s4 + $0x20] sm:$0xff]
    %v126 = vld [vmem:[%s4 + $0x28] sm:$0xff]
    %v127 = vld [vmem:[%s4 + $0x30] sm:$0xff]
    %v128 = vld [vmem:[%s4 + $0x38] sm:$0xff]
    %v129 = vld [vmem:[%s4 + $0x40] sm:$0xff]
    %v130 = vld [vmem:[%s4 + $0x48] sm:$0xff]
    %v131 = vld [vmem:[%s4 + $0x50] sm:$0xff]
    %v132 = vld [vmem:[%s4 + $0x58] sm:$0xff]
    %v133 = vld [vmem:[%s4 + $0x60] sm:$0xff]
    %v134 = vld [vmem:[%s4 + $0x68] sm:$0xff]
    %v135 = vld [vmem:[%s4 + $0x70] sm:$0xff]
    %v136 = vld [vmem:[%s4 + $0x78] sm:$0xff]
    %v137 = vld [vmem:[%s4 + $0x80] sm:$0xff]
    %v138 = vld [vmem:[%s4 + $0x88] sm:$0xff]
    %v139 = vld [vmem:[%s4 + $0x90] sm:$0xff]
    %v140 = vld [vmem:[%s4 + $0x98] sm:$0xff]
    %v141 = vld [vmem:[%s4 + $0xa0] sm:$0xff]
    %v142 = vld [vmem:[%s4 + $0xa8] sm:$0xff]
    %v143 = vld [vmem:[%s4 + $0xb0] sm:$0xff]
    %v144 = vld [vmem:[%s4 + $0xb8] sm:$0xff]
    %v145 = vld [vmem:[%s4 + $0xc0] sm:$0xff]
    %v146 = vld [vmem:[%s4 + $0xc8] sm:$0xff]
    %v147 = vld [vmem:[%s4 + $0xd0] sm:$0xff]
    %v148 = vld [vmem:[%s4 + $0xd8] sm:$0xff]
    %v149 = vld [vmem:[%s4 + $0xe0] sm:$0xff]
    %v150 = vld [vmem:[%s4 + $0xe8] sm:$0xff]
    %v151 = vld [vmem:[%s4 + $0xf0] sm:$0xff]
    %v152 = vld [vmem:[%s4 + $0xf8] sm:$0xff]
    %v153 = vld [vmem:[%s4 + $0x100] sm:$0xff]
    %v154 = vld [vmem:[%s4 + $0x108] sm:$0xff]
    %v155 = vld [vmem:[%s4 + $0x110] sm:$0xff]
    %v156 = vld [vmem:[%s4 + $0x118] sm:$0xff]
    %v157 = vld [vmem:[%s4 + $0x120] sm:$0xff]
    %v158 = vld [vmem:[%s4 + $0x128] sm:$0xff]
    %v159 = vld [vmem:[%s4 + $0x130] sm:$0xff]
    %v160 = vld [vmem:[%s4 + $0x138] sm:$0xff]
    %v161 = vld [vmem:[%s4 + $0x140] sm:$0xff]
    %v162 = vld [vmem:[%s4 + $0x148] sm:$0xff]
    %v163 = vld [vmem:[%s4 + $0x150] sm:$0xff]
    %v164 = vld [vmem:[%s4 + $0x158] sm:$0xff]
    %v165 = vld [vmem:[%s4 + $0x160] sm:$0xff]
    %v166 = vld [vmem:[%s4 + $0x168] sm:$0xff]
    %v167 = vld [vmem:[%s4 + $0x170] sm:$0xff]
    %v168 = vld [vmem:[%s4 + $0x178] sm:$0xff]
    %v169 = vld [vmem:[%s4 + $0x180] sm:$0xff]
    %v170 = vld [vmem:[%s4 + $0x188] sm:$0xff]
    %v171 = vld [vmem:[%s4 + $0x190] sm:$0xff]
    %v172 = vld [vmem:[%s4 + $0x198] sm:$0xff]
    %v173 = vld [vmem:[%s4 + $0x1a0] sm:$0xff]
    %v174 = vld [vmem:[%s4 + $0x1a8] sm:$0xff]
    %v175 = vld [vmem:[%s4 + $0x1b0] sm:$0xff]
    %v176 = vld [vmem:[%s4 + $0x1b8] sm:$0xff]
    %v177 = vld [vmem:[%s4 + $0x1c0] sm:$0xff]
    %v178 = vld [vmem:[%s4 + $0x1c8] sm:$0xff]
    %v179 = vld [vmem:[%s4 + $0x1d0] sm:$0xff]
    %v180 = vld [vmem:[%s4 + $0x1d8] sm:$0xff]
    %v181 = vld [vmem:[%s4 + $0x1e0] sm:$0xff]
    %v182 = vld [vmem:[%s4 + $0x1e8] sm:$0xff]
    %v183 = vld [vmem:[%s4 + $0x1f0] sm:$0xff]
    %v184 = vld [vmem:[%s4 + $0x1f8] sm:$0xff]
    %v249 = vunpack.c.l.b16 %v121
    %v250 = vunpack.c.h.b16 %v121
    %v251 = vunpack.c.l.b16 %v122
    %v252 = vunpack.c.h.b16 %v122
    %v253 = vunpack.c.l.b16 %v123
    %v254 = vunpack.c.h.b16 %v123
    %v255 = vunpack.c.l.b16 %v124
    %v256 = vunpack.c.h.b16 %v124
    %v257 = vunpack.c.l.b16 %v125
    %v258 = vunpack.c.h.b16 %v125
    %v259 = vunpack.c.l.b16 %v126
    %v260 = vunpack.c.h.b16 %v126
    %v261 = vunpack.c.l.b16 %v127
    %v262 = vunpack.c.h.b16 %v127
    %v263 = vunpack.c.l.b16 %v128
    %v264 = vunpack.c.h.b16 %v128
    %v265 = vunpack.c.l.b16 %v129
    %v266 = vunpack.c.h.b16 %v129
    %v267 = vunpack.c.l.b16 %v130
    %v268 = vunpack.c.h.b16 %v130
    %v269 = vunpack.c.l.b16 %v131
    %v270 = vunpack.c.h.b16 %v131
    %v271 = vunpack.c.l.b16 %v132
    %v272 = vunpack.c.h.b16 %v132
    %v273 = vunpack.c.l.b16 %v133
    %v274 = vunpack.c.h.b16 %v133
    %v275 = vunpack.c.l.b16 %v134
    %v276 = vunpack.c.h.b16 %v134
    %v277 = vunpack.c.l.b16 %v135
    %v278 = vunpack.c.h.b16 %v135
    %v279 = vunpack.c.l.b16 %v136
    %v280 = vunpack.c.h.b16 %v136
    %v281 = vunpack.c.l.b16 %v137
    %v282 = vunpack.c.h.b16 %v137
    %v283 = vunpack.c.l.b16 %v138
    %v284 = vunpack.c.h.b16 %v138
    %v285 = vunpack.c.l.b16 %v139
    %v286 = vunpack.c.h.b16 %v139
    %v287 = vunpack.c.l.b16 %v140
    %v288 = vunpack.c.h.b16 %v140
    %v289 = vunpack.c.l.b16 %v141
    %v290 = vunpack.c.h.b16 %v141
    %v291 = vunpack.c.l.b16 %v142
    %v292 = vunpack.c.h.b16 %v142
    %v293 = vunpack.c.l.b16 %v143
    %v294 = vunpack.c.h.b16 %v143
    %v295 = vunpack.c.l.b16 %v144
    %v296 = vunpack.c.h.b16 %v144
    %v297 = vunpack.c.l.b16 %v145
    %v298 = vunpack.c.h.b16 %v145
    %v299 = vunpack.c.l.b16 %v146
    %v300 = vunpack.c.h.b16 %v146
    %v301 = vunpack.c.l.b16 %v147
    %v302 = vunpack.c.h.b16 %v147
    %v303 = vunpack.c.l.b16 %v148
    %v304 = vunpack.c.h.b16 %v148
    %v305 = vunpack.c.l.b16 %v149
    %v306 = vunpack.c.h.b16 %v149
    %v307 = vunpack.c.l.b16 %v150
    %v308 = vunpack.c.h.b16 %v150
    %v309 = vunpack.c.l.b16 %v151
    %v310 = vunpack.c.h.b16 %v151
    %v311 = vunpack.c.l.b16 %v152
    %v312 = vunpack.c.h.b16 %v152
    %v313 = vunpack.c.l.b16 %v153
    %v314 = vunpack.c.h.b16 %v153
    %v315 = vunpack.c.l.b16 %v154
    %v316 = vunpack.c.h.b16 %v154
    %v317 = vunpack.c.l.b16 %v155
    %v318 = vunpack.c.h.b16 %v155
    %v319 = vunpack.c.l.b16 %v156
    %v320 = vunpack.c.h.b16 %v156
    %v321 = vunpack.c.l.b16 %v157
    %v322 = vunpack.c.h.b16 %v157
    %v323 = vunpack.c.l.b16 %v158
    %v324 = vunpack.c.h.b16 %v158
    %v325 = vunpack.c.l.b16 %v159
    %v326 = vunpack.c.h.b16 %v159
    %v327 = vunpack.c.l.b16 %v160
    %v328 = vunpack.c.h.b16 %v160
    %v329 = vunpack.c.l.b16 %v161
    %v330 = vunpack.c.h.b16 %v161
    %v331 = vunpack.c.l.b16 %v162
    %v332 = vunpack.c.h.b16 %v162
    %v333 = vunpack.c.l.b16 %v163
    %v334 = vunpack.c.h.b16 %v163
    %v335 = vunpack.c.l.b16 %v164
    %v336 = vunpack.c.h.b16 %v164
    %v337 = vunpack.c.l.b16 %v165
    %v338 = vunpack.c.h.b16 %v165
    %v339 = vunpack.c.l.b16 %v166
    %v340 = vunpack.c.h.b16 %v166
    %v341 = vunpack.c.l.b16 %v167
    %v342 = vunpack.c.h.b16 %v167
    %v343 = vunpack.c.l.b16 %v168
    %v344 = vunpack.c.h.b16 %v168
    %v345 = vunpack.c.l.b16 %v169
    %v346 = vunpack.c.h.b16 %v169
    %v347 = vunpack.c.l.b16 %v170
    %v348 = vunpack.c.h.b16 %v170
    %v349 = vunpack.c.l.b16 %v171
    %v350 = vunpack.c.h.b16 %v171
    %v351 = vunpack.c.l.b16 %v172
    %v352 = vunpack.c.h.b16 %v172
    %v353 = vunpack.c.l.b16 %v173
    %v354 = vunpack.c.h.b16 %v173
    %v355 = vunpack.c.l.b16 %v174
    %v356 = vunpack.c.h.b16 %v174
    %v357 = vunpack.c.l.b16 %v175
    %v358 = vunpack.c.h.b16 %v175
    %v359 = vunpack.c.l.b16 %v176
    %v360 = vunpack.c.h.b16 %v176
    %v361 = vunpack.c.l.b16 %v177
    %v362 = vunpack.c.h.b16 %v177
    %v363 = vunpack.c.l.b16 %v178
    %v364 = vunpack.c.h.b16 %v178
    %v365 = vunpack.c.l.b16 %v179
    %v366 = vunpack.c.h.b16 %v179
    %v367 = vunpack.c.l.b16 %v180
    %v368 = vunpack.c.h.b16 %v180
    %v369 = vunpack.c.l.b16 %v181
    %v370 = vunpack.c.h.b16 %v181
    %v371 = vunpack.c.l.b16 %v182
    %v372 = vunpack.c.h.b16 %v182
    %v373 = vunpack.c.l.b16 %v183
    %v374 = vunpack.c.h.b16 %v183
    %v375 = vunpack.c.l.b16 %v184
    %v376 = vunpack.c.h.b16 %v184
    %v377 = vpack.c.b16 %v281, %v249
    %v378 = vpack.c.b16 %v282, %v250
    %v379 = vpack.c.b16 %v283, %v251
    %v380 = vpack.c.b16 %v284, %v252
    %v381 = vpack.c.b16 %v285, %v253
    %v382 = vpack.c.b16 %v286, %v254
    %v383 = vpack.c.b16 %v287, %v255
    %v384 = vpack.c.b16 %v288, %v256
    %v385 = vpack.c.b16 %v289, %v257
    %v386 = vpack.c.b16 %v290, %v258
    %v387 = vpack.c.b16 %v291, %v259
    %v388 = vpack.c.b16 %v292, %v260
    %v389 = vpack.c.b16 %v293, %v261
    %v390 = vpack.c.b16 %v294, %v262
    %v391 = vpack.c.b16 %v295, %v263
    %v392 = vpack.c.b16 %v296, %v264
    %v393 = vpack.c.b16 %v297, %v265
    %v394 = vpack.c.b16 %v298, %v266
    %v395 = vpack.c.b16 %v299, %v267
    %v396 = vpack.c.b16 %v300, %v268
    %v397 = vpack.c.b16 %v301, %v269
    %v398 = vpack.c.b16 %v302, %v270
    %v399 = vpack.c.b16 %v303, %v271
    %v400 = vpack.c.b16 %v304, %v272
    %v401 = vpack.c.b16 %v305, %v273
    %v402 = vpack.c.b16 %v306, %v274
    %v403 = vpack.c.b16 %v307, %v275
    %v404 = vpack.c.b16 %v308, %v276
    %v405 = vpack.c.b16 %v309, %v277
    %v406 = vpack.c.b16 %v310, %v278
    %v407 = vpack.c.b16 %v311, %v279
    %v408 = vpack.c.b16 %v312, %v280
    %v409 = vpack.c.b16 %v345, %v313
    %v410 = vpack.c.b16 %v346, %v314
    %v411 = vpack.c.b16 %v347, %v315
    %v412 = vpack.c.b16 %v348, %v316
    %v413 = vpack.c.b16 %v349, %v317
    %v414 = vpack.c.b16 %v350, %v318
    %v415 = vpack.c.b16 %v351, %v319
    %v416 = vpack.c.b16 %v352, %v320
    %v417 = vpack.c.b16 %v353, %v321
    %v418 = vpack.c.b16 %v354, %v322
    %v419 = vpack.c.b16 %v355, %v323
    %v420 = vpack.c.b16 %v356, %v324
    %v421 = vpack.c.b16 %v357, %v325
    %v422 = vpack.c.b16 %v358, %v326
    %v423 = vpack.c.b16 %v359, %v327
    %v424 = vpack.c.b16 %v360, %v328
    %v425 = vpack.c.b16 %v361, %v329
    %v426 = vpack.c.b16 %v362, %v330
    %v427 = vpack.c.b16 %v363, %v331
    %v428 = vpack.c.b16 %v364, %v332
    %v429 = vpack.c.b16 %v365, %v333
    %v430 = vpack.c.b16 %v366, %v334
    %v431 = vpack.c.b16 %v367, %v335
    %v432 = vpack.c.b16 %v368, %v336
    %v433 = vpack.c.b16 %v369, %v337
    %v434 = vpack.c.b16 %v370, %v338
    %v435 = vpack.c.b16 %v371, %v339
    %v436 = vpack.c.b16 %v372, %v340
    %v437 = vpack.c.b16 %v373, %v341
    %v438 = vpack.c.b16 %v374, %v342
    %v439 = vpack.c.b16 %v375, %v343
    %v440 = vpack.c.b16 %v376, %v344
    %v506 = vsel %vm38, %v120, 0
    %508 = vmatprep.subr.bf16.mxu0 %v378
    %509 = vmatpush1.bf16.msra.mxu0 %v377
    %510 = vmatprep.subr.bf16.mxu0 %v410
    %511 = vmatpush1.bf16.msra.mxu0 %v409
    %512 = vmatprep.subr.bf16.mxu0 0
    %513 = vmatpush1.bf16.msra.mxu0 0
    %514 = vmatprep.subr.bf16.mxu0 0
    %515 = vmatpush1.bf16.msra.mxu0 0
    %516 = vmatprep.subr.bf16.mxu0 0
    %517 = vmatpush1.bf16.msra.mxu0 0
    %518 = vmatprep.subr.bf16.mxu0 0
    %519 = vmatpush1.bf16.msra.mxu0 0
    %520 = vmatprep.subr.bf16.mxu0 0
    %521 = vmatpush1.bf16.msra.mxu0 0
    %522 = vmatprep.subr.bf16.mxu0 0
    %523 = vmatpush1.bf16.msra.mxu0 0
    %524 = vmatprep.subr.bf16.mxu0 0
    %525 = vmatpush1.bf16.msra.mxu0 0
    %526 = vmatprep.subr.bf16.mxu0 0
    %527 = vmatpush1.bf16.msra.mxu0 0
    %528 = vmatprep.subr.bf16.mxu0 0
    %529 = vmatpush1.bf16.msra.mxu0 0
    %530 = vmatprep.subr.bf16.mxu0 0
    %531 = vmatpush1.bf16.msra.mxu0 0
    %532 = vmatprep.subr.bf16.mxu0 0
    %533 = vmatpush1.bf16.msra.mxu0 0
    %534 = vmatprep.subr.bf16.mxu0 0
    %535 = vmatpush1.bf16.msra.mxu0 0
    %536 = vmatprep.subr.bf16.mxu0 0
    %537 = vmatpush1.bf16.msra.mxu0 0
    %538 = vmatprep.subr.bf16.mxu0 0
    %539 = vmatpush1.bf16.msra.mxu0 0
    %540 = vmatprep.mubr.bf16.mxu0 0
    %541 = vmatmul.mubr.bf16.gmra.mrb[0].mxu0 %v506
    %v542 = vpop.f32.mrb[0].mxu0
    %v543 = vadd.f32 0.0, %v542
    %v544 = vpop.f32.mrb[0].mxu0
    %v545 = vadd.f32 0.0, %v544
    %v546 = vpop.f32.mrb[0].mxu0
    %v547 = vadd.f32 0.0, %v546
    %v548 = vpop.f32.mrb[0].mxu0
    %v549 = vadd.f32 0.0, %v548
    %550 = vdwg.mxu0
    %551 = vmatprep.subr.bf16.mxu0 %v380
    %552 = vmatpush1.bf16.msra.mxu0 %v379
    %553 = vmatprep.subr.bf16.mxu0 %v412
    %554 = vmatpush1.bf16.msra.mxu0 %v411
    %555 = vmatprep.subr.bf16.mxu0 0
    %556 = vmatpush1.bf16.msra.mxu0 0
    %557 = vmatprep.subr.bf16.mxu0 0
    %558 = vmatpush1.bf16.msra.mxu0 0
    %559 = vmatprep.subr.bf16.mxu0 0
    %560 = vmatpush1.bf16.msra.mxu0 0
    %561 = vmatprep.subr.bf16.mxu0 0
    %562 = vmatpush1.bf16.msra.mxu0 0
    %563 = vmatprep.subr.bf16.mxu0 0
    %564 = vmatpush1.bf16.msra.mxu0 0
    %565 = vmatprep.subr.bf16.mxu0 0
    %566 = vmatpush1.bf16.msra.mxu0 0
    %567 = vmatprep.subr.bf16.mxu0 0
    %568 = vmatpush1.bf16.msra.mxu0 0
    %569 = vmatprep.subr.bf16.mxu0 0
    %570 = vmatpush1.bf16.msra.mxu0 0
    %571 = vmatprep.subr.bf16.mxu0 0
    %572 = vmatpush1.bf16.msra.mxu0 0
    %573 = vmatprep.subr.bf16.mxu0 0
    %574 = vmatpush1.bf16.msra.mxu0 0
    %575 = vmatprep.subr.bf16.mxu0 0
    %576 = vmatpush1.bf16.msra.mxu0 0
    %577 = vmatprep.subr.bf16.mxu0 0
    %578 = vmatpush1.bf16.msra.mxu0 0
    %579 = vmatprep.subr.bf16.mxu0 0
    %580 = vmatpush1.bf16.msra.mxu0 0
    %581 = vmatprep.subr.bf16.mxu0 0
    %582 = vmatpush1.bf16.msra.mxu0 0
    %583 = vmatprep.mubr.bf16.mxu0 0
    %584 = vmatmul.mubr.bf16.gmra.mrb[0].mxu0 %v506
    %v585 = vpop.f32.mrb[0].mxu0
    %v586 = vadd.f32 0.0, %v585
    %v587 = vpop.f32.mrb[0].mxu0
    %v588 = vadd.f32 0.0, %v587
    %v589 = vpop.f32.mrb[0].mxu0
    %v590 = vadd.f32 0.0, %v589
    %v591 = vpop.f32.mrb[0].mxu0
    %v592 = vadd.f32 0.0, %v591
    %593 = vdwg.mxu0
    %594 = vmatprep.subr.bf16.mxu0 %v382
    %595 = vmatpush1.bf16.msra.mxu0 %v381
    %596 = vmatprep.subr.bf16.mxu0 %v414
    %597 = vmatpush1.bf16.msra.mxu0 %v413
    %598 = vmatprep.subr.bf16.mxu0 0
    %599 = vmatpush1.bf16.msra.mxu0 0
    %600 = vmatprep.subr.bf16.mxu0 0
    %601 = vmatpush1.bf16.msra.mxu0 0
    %602 = vmatprep.subr.bf16.mxu0 0
    %603 = vmatpush1.bf16.msra.mxu0 0
    %604 = vmatprep.subr.bf16.mxu0 0
    %605 = vmatpush1.bf16.msra.mxu0 0
    %606 = vmatprep.subr.bf16.mxu0 0
    %607 = vmatpush1.bf16.msra.mxu0 0
    %608 = vmatprep.subr.bf16.mxu0 0
    %609 = vmatpush1.bf16.msra.mxu0 0
    %610 = vmatprep.subr.bf16.mxu0 0
    %611 = vmatpush1.bf16.msra.mxu0 0
    %612 = vmatprep.subr.bf16.mxu0 0
    %613 = vmatpush1.bf16.msra.mxu0 0
    %614 = vmatprep.subr.bf16.mxu0 0
    %615 = vmatpush1.bf16.msra.mxu0 0
    %616 = vmatprep.subr.bf16.mxu0 0
    %617 = vmatpush1.bf16.msra.mxu0 0
    %618 = vmatprep.subr.bf16.mxu0 0
    %619 = vmatpush1.bf16.msra.mxu0 0
    %620 = vmatprep.subr.bf16.mxu0 0
    %621 = vmatpush1.bf16.msra.mxu0 0
    %622 = vmatprep.subr.bf16.mxu0 0
    %623 = vmatpush1.bf16.msra.mxu0 0
    %624 = vmatprep.subr.bf16.mxu0 0
    %625 = vmatpush1.bf16.msra.mxu0 0
    %626 = vmatprep.mubr.bf16.mxu0 0
    %627 = vmatmul.mubr.bf16.gmra.mrb[0].mxu0 %v506
    %v628 = vpop.f32.mrb[0].mxu0
    %v629 = vadd.f32 0.0, %v628
    %v630 = vpop.f32.mrb[0].mxu0
    %v631 = vadd.f32 0.0, %v630
    %v632 = vpop.f32.mrb[0].mxu0
    %v633 = vadd.f32 0.0, %v632
    %v634 = vpop.f32.mrb[0].mxu0
    %v635 = vadd.f32 0.0, %v634
    %636 = vdwg.mxu0
    %637 = vmatprep.subr.bf16.mxu0 %v384
    %638 = vmatpush1.bf16.msra.mxu0 %v383
    %639 = vmatprep.subr.bf16.mxu0 %v416
    %640 = vmatpush1.bf16.msra.mxu0 %v415
    %641 = vmatprep.subr.bf16.mxu0 0
    %642 = vmatpush1.bf16.msra.mxu0 0
    %643 = vmatprep.subr.bf16.mxu0 0
    %644 = vmatpush1.bf16.msra.mxu0 0
    %645 = vmatprep.subr.bf16.mxu0 0
    %646 = vmatpush1.bf16.msra.mxu0 0
    %647 = vmatprep.subr.bf16.mxu0 0
    %648 = vmatpush1.bf16.msra.mxu0 0
    %649 = vmatprep.subr.bf16.mxu0 0
    %650 = vmatpush1.bf16.msra.mxu0 0
    %651 = vmatprep.subr.bf16.mxu0 0
    %652 = vmatpush1.bf16.msra.mxu0 0
    %653 = vmatprep.subr.bf16.mxu0 0
    %654 = vmatpush1.bf16.msra.mxu0 0
    %655 = vmatprep.subr.bf16.mxu0 0
    %656 = vmatpush1.bf16.msra.mxu0 0
    %657 = vmatprep.subr.bf16.mxu0 0
    %658 = vmatpush1.bf16.msra.mxu0 0
    %659 = vmatprep.subr.bf16.mxu0 0
    %660 = vmatpush1.bf16.msra.mxu0 0
    %661 = vmatprep.subr.bf16.mxu0 0
    %662 = vmatpush1.bf16.msra.mxu0 0
    %663 = vmatprep.subr.bf16.mxu0 0
    %664 = vmatpush1.bf16.msra.mxu0 0
    %665 = vmatprep.subr.bf16.mxu0 0
    %666 = vmatpush1.bf16.msra.mxu0 0
    %667 = vmatprep.subr.bf16.mxu0 0
    %668 = vmatpush1.bf16.msra.mxu0 0
    %669 = vmatprep.mubr.bf16.mxu0 0
    %670 = vmatmul.mubr.bf16.gmra.mrb[0].mxu0 %v506
    %v671 = vpop.f32.mrb[0].mxu0
    %v672 = vadd.f32 0.0, %v671
    %v673 = vpop.f32.mrb[0].mxu0
    %v674 = vadd.f32 0.0, %v673
    %v675 = vpop.f32.mrb[0].mxu0
    %v676 = vadd.f32 0.0, %v675
    %v677 = vpop.f32.mrb[0].mxu0
    %v678 = vadd.f32 0.0, %v677
    %679 = vdwg.mxu0
    %680 = vmatprep.subr.bf16.mxu0 %v386
    %681 = vmatpush1.bf16.msra.mxu0 %v385
    %682 = vmatprep.subr.bf16.mxu0 %v418
    %683 = vmatpush1.bf16.msra.mxu0 %v417
    %684 = vmatprep.subr.bf16.mxu0 0
    %685 = vmatpush1.bf16.msra.mxu0 0
    %686 = vmatprep.subr.bf16.mxu0 0
    %687 = vmatpush1.bf16.msra.mxu0 0
    %688 = vmatprep.subr.bf16.mxu0 0
    %689 = vmatpush1.bf16.msra.mxu0 0
    %690 = vmatprep.subr.bf16.mxu0 0
    %691 = vmatpush1.bf16.msra.mxu0 0
    %692 = vmatprep.subr.bf16.mxu0 0
    %693 = vmatpush1.bf16.msra.mxu0 0
    %694 = vmatprep.subr.bf16.mxu0 0
    %695 = vmatpush1.bf16.msra.mxu0 0
    %696 = vmatprep.subr.bf16.mxu0 0
    %697 = vmatpush1.bf16.msra.mxu0 0
    %698 = vmatprep.subr.bf16.mxu0 0
    %699 = vmatpush1.bf16.msra.mxu0 0
    %700 = vmatprep.subr.bf16.mxu0 0
    %701 = vmatpush1.bf16.msra.mxu0 0
    %702 = vmatprep.subr.bf16.mxu0 0
    %703 = vmatpush1.bf16.msra.mxu0 0
    %704 = vmatprep.subr.bf16.mxu0 0
    %705 = vmatpush1.bf16.msra.mxu0 0
    %706 = vmatprep.subr.bf16.mxu0 0
    %707 = vmatpush1.bf16.msra.mxu0 0
    %708 = vmatprep.subr.bf16.mxu0 0
    %709 = vmatpush1.bf16.msra.mxu0 0
    %710 = vmatprep.subr.bf16.mxu0 0
    %711 = vmatpush1.bf16.msra.mxu0 0
    %712 = vmatprep.mubr.bf16.mxu0 0
    %713 = vmatmul.mubr.bf16.gmra.mrb[0].mxu0 %v506
    %v714 = vpop.f32.mrb[0].mxu0
    %v715 = vadd.f32 0.0, %v714
    %v716 = vpop.f32.mrb[0].mxu0
    %v717 = vadd.f32 0.0, %v716
    %v718 = vpop.f32.mrb[0].mxu0
    %v719 = vadd.f32 0.0, %v718
    %v720 = vpop.f32.mrb[0].mxu0
    %v721 = vadd.f32 0.0, %v720
    %722 = vdwg.mxu0
    %723 = vmatprep.subr.bf16.mxu0 %v388
    %724 = vmatpush1.bf16.msra.mxu0 %v387
    %725 = vmatprep.subr.bf16.mxu0 %v420
    %726 = vmatpush1.bf16.msra.mxu0 %v419
    %727 = vmatprep.subr.bf16.mxu0 0
    %728 = vmatpush1.bf16.msra.mxu0 0
    %729 = vmatprep.subr.bf16.mxu0 0
    %730 = vmatpush1.bf16.msra.mxu0 0
    %731 = vmatprep.subr.bf16.mxu0 0
    %732 = vmatpush1.bf16.msra.mxu0 0
    %733 = vmatprep.subr.bf16.mxu0 0
    %734 = vmatpush1.bf16.msra.mxu0 0
    %735 = vmatprep.subr.bf16.mxu0 0
    %736 = vmatpush1.bf16.msra.mxu0 0
    %737 = vmatprep.subr.bf16.mxu0 0
    %738 = vmatpush1.bf16.msra.mxu0 0
    %739 = vmatprep.subr.bf16.mxu0 0
    %740 = vmatpush1.bf16.msra.mxu0 0
    %741 = vmatprep.subr.bf16.mxu0 0
    %742 = vmatpush1.bf16.msra.mxu0 0
    %743 = vmatprep.subr.bf16.mxu0 0
    %744 = vmatpush1.bf16.msra.mxu0 0
    %745 = vmatprep.subr.bf16.mxu0 0
    %746 = vmatpush1.bf16.msra.mxu0 0
    %747 = vmatprep.subr.bf16.mxu0 0
    %748 = vmatpush1.bf16.msra.mxu0 0
    %749 = vmatprep.subr.bf16.mxu0 0
    %750 = vmatpush1.bf16.msra.mxu0 0
    %751 = vmatprep.subr.bf16.mxu0 0
    %752 = vmatpush1.bf16.msra.mxu0 0
    %753 = vmatprep.subr.bf16.mxu0 0
    %754 = vmatpush1.bf16.msra.mxu0 0
    %755 = vmatprep.mubr.bf16.mxu0 0
    %756 = vmatmul.mubr.bf16.gmra.mrb[0].mxu0 %v506
    %v757 = vpop.f32.mrb[0].mxu0
    %v758 = vadd.f32 0.0, %v757
    %v759 = vpop.f32.mrb[0].mxu0
    %v760 = vadd.f32 0.0, %v759
    %v761 = vpop.f32.mrb[0].mxu0
    %v762 = vadd.f32 0.0, %v761
    %v763 = vpop.f32.mrb[0].mxu0
    %v764 = vadd.f32 0.0, %v763
    %765 = vdwg.mxu0
    %766 = vmatprep.subr.bf16.mxu0 %v390
    %767 = vmatpush1.bf16.msra.mxu0 %v389
    %768 = vmatprep.subr.bf16.mxu0 %v422
    %769 = vmatpush1.bf16.msra.mxu0 %v421
    %770 = vmatprep.subr.bf16.mxu0 0
    %771 = vmatpush1.bf16.msra.mxu0 0
    %772 = vmatprep.subr.bf16.mxu0 0
    %773 = vmatpush1.bf16.msra.mxu0 0
    %774 = vmatprep.subr.bf16.mxu0 0
    %775 = vmatpush1.bf16.msra.mxu0 0
    %776 = vmatprep.subr.bf16.mxu0 0
    %777 = vmatpush1.bf16.msra.mxu0 0
    %778 = vmatprep.subr.bf16.mxu0 0
    %779 = vmatpush1.bf16.msra.mxu0 0
    %780 = vmatprep.subr.bf16.mxu0 0
    %781 = vmatpush1.bf16.msra.mxu0 0
    %782 = vmatprep.subr.bf16.mxu0 0
    %783 = vmatpush1.bf16.msra.mxu0 0
    %784 = vmatprep.subr.bf16.mxu0 0
    %785 = vmatpush1.bf16.msra.mxu0 0
    %786 = vmatprep.subr.bf16.mxu0 0
    %787 = vmatpush1.bf16.msra.mxu0 0
    %788 = vmatprep.subr.bf16.mxu0 0
    %789 = vmatpush1.bf16.msra.mxu0 0
    %790 = vmatprep.subr.bf16.mxu0 0
    %791 = vmatpush1.bf16.msra.mxu0 0
    %792 = vmatprep.subr.bf16.mxu0 0
    %793 = vmatpush1.bf16.msra.mxu0 0
    %794 = vmatprep.subr.bf16.mxu0 0
    %795 = vmatpush1.bf16.msra.mxu0 0
    %796 = vmatprep.subr.bf16.mxu0 0
    %797 = vmatpush1.bf16.msra.mxu0 0
    %798 = vmatprep.mubr.bf16.mxu0 0
    %799 = vmatmul.mubr.bf16.gmra.mrb[0].mxu0 %v506
    %v800 = vpop.f32.mrb[0].mxu0
    %v801 = vadd.f32 0.0, %v800
    %v802 = vpop.f32.mrb[0].mxu0
    %v803 = vadd.f32 0.0, %v802
    %v804 = vpop.f32.mrb[0].mxu0
    %v805 = vadd.f32 0.0, %v804
    %v806 = vpop.f32.mrb[0].mxu0
    %v807 = vadd.f32 0.0, %v806
    %808 = vdwg.mxu0
    %809 = vmatprep.subr.bf16.mxu0 %v392
    %810 = vmatpush1.bf16.msra.mxu0 %v391
    %811 = vmatprep.subr.bf16.mxu0 %v424
    %812 = vmatpush1.bf16.msra.mxu0 %v423
    %813 = vmatprep.subr.bf16.mxu0 0
    %814 = vmatpush1.bf16.msra.mxu0 0
    %815 = vmatprep.subr.bf16.mxu0 0
    %816 = vmatpush1.bf16.msra.mxu0 0
    %817 = vmatprep.subr.bf16.mxu0 0
    %818 = vmatpush1.bf16.msra.mxu0 0
    %819 = vmatprep.subr.bf16.mxu0 0
    %820 = vmatpush1.bf16.msra.mxu0 0
    %821 = vmatprep.subr.bf16.mxu0 0
    %822 = vmatpush1.bf16.msra.mxu0 0
    %823 = vmatprep.subr.bf16.mxu0 0
    %824 = vmatpush1.bf16.msra.mxu0 0
    %825 = vmatprep.subr.bf16.mxu0 0
    %826 = vmatpush1.bf16.msra.mxu0 0
    %827 = vmatprep.subr.bf16.mxu0 0
    %828 = vmatpush1.bf16.msra.mxu0 0
    %829 = vmatprep.subr.bf16.mxu0 0
    %830 = vmatpush1.bf16.msra.mxu0 0
    %831 = vmatprep.subr.bf16.mxu0 0
    %832 = vmatpush1.bf16.msra.mxu0 0
    %833 = vmatprep.subr.bf16.mxu0 0
    %834 = vmatpush1.bf16.msra.mxu0 0
    %835 = vmatprep.subr.bf16.mxu0 0
    %836 = vmatpush1.bf16.msra.mxu0 0
    %837 = vmatprep.subr.bf16.mxu0 0
    %838 = vmatpush1.bf16.msra.mxu0 0
    %839 = vmatprep.subr.bf16.mxu0 0
    %840 = vmatpush1.bf16.msra.mxu0 0
    %841 = vmatprep.mubr.bf16.mxu0 0
    %842 = vmatmul.mubr.bf16.gmra.mrb[0].mxu0 %v506
    %v843 = vpop.f32.mrb[0].mxu0
    %v844 = vadd.f32 0.0, %v843
    %v845 = vpop.f32.mrb[0].mxu0
    %v846 = vadd.f32 0.0, %v845
    %v847 = vpop.f32.mrb[0].mxu0
    %v848 = vadd.f32 0.0, %v847
    %v849 = vpop.f32.mrb[0].mxu0
    %v850 = vadd.f32 0.0, %v849
    %851 = vdwg.mxu0
    %852 = vmatprep.subr.bf16.mxu0 %v394
    %853 = vmatpush1.bf16.msra.mxu0 %v393
    %854 = vmatprep.subr.bf16.mxu0 %v426
    %855 = vmatpush1.bf16.msra.mxu0 %v425
    %856 = vmatprep.subr.bf16.mxu0 0
    %857 = vmatpush1.bf16.msra.mxu0 0
    %858 = vmatprep.subr.bf16.mxu0 0
    %859 = vmatpush1.bf16.msra.mxu0 0
    %860 = vmatprep.subr.bf16.mxu0 0
    %861 = vmatpush1.bf16.msra.mxu0 0
    %862 = vmatprep.subr.bf16.mxu0 0
    %863 = vmatpush1.bf16.msra.mxu0 0
    %864 = vmatprep.subr.bf16.mxu0 0
    %865 = vmatpush1.bf16.msra.mxu0 0
    %866 = vmatprep.subr.bf16.mxu0 0
    %867 = vmatpush1.bf16.msra.mxu0 0
    %868 = vmatprep.subr.bf16.mxu0 0
    %869 = vmatpush1.bf16.msra.mxu0 0
    %870 = vmatprep.subr.bf16.mxu0 0
    %871 = vmatpush1.bf16.msra.mxu0 0
    %872 = vmatprep.subr.bf16.mxu0 0
    %873 = vmatpush1.bf16.msra.mxu0 0
    %874 = vmatprep.subr.bf16.mxu0 0
    %875 = vmatpush1.bf16.msra.mxu0 0
    %876 = vmatprep.subr.bf16.mxu0 0
    %877 = vmatpush1.bf16.msra.mxu0 0
    %878 = vmatprep.subr.bf16.mxu0 0
    %879 = vmatpush1.bf16.msra.mxu0 0
    %880 = vmatprep.subr.bf16.mxu0 0
    %881 = vmatpush1.bf16.msra.mxu0 0
    %882 = vmatprep.subr.bf16.mxu0 0
    %883 = vmatpush1.bf16.msra.mxu0 0
    %884 = vmatprep.mubr.bf16.mxu0 0
    %885 = vmatmul.mubr.bf16.gmra.mrb[0].mxu0 %v506
    %v886 = vpop.f32.mrb[0].mxu0
    %v887 = vadd.f32 0.0, %v886
    %v888 = vpop.f32.mrb[0].mxu0
    %v889 = vadd.f32 0.0, %v888
    %v890 = vpop.f32.mrb[0].mxu0
    %v891 = vadd.f32 0.0, %v890
    %v892 = vpop.f32.mrb[0].mxu0
    %v893 = vadd.f32 0.0, %v892
    %894 = vdwg.mxu0
    %895 = vmatprep.subr.bf16.mxu0 %v396
    %896 = vmatpush1.bf16.msra.mxu0 %v395
    %897 = vmatprep.subr.bf16.mxu0 %v428
    %898 = vmatpush1.bf16.msra.mxu0 %v427
    %899 = vmatprep.subr.bf16.mxu0 0
    %900 = vmatpush1.bf16.msra.mxu0 0
    %901 = vmatprep.subr.bf16.mxu0 0
    %902 = vmatpush1.bf16.msra.mxu0 0
    %903 = vmatprep.subr.bf16.mxu0 0
    %904 = vmatpush1.bf16.msra.mxu0 0
    %905 = vmatprep.subr.bf16.mxu0 0
    %906 = vmatpush1.bf16.msra.mxu0 0
    %907 = vmatprep.subr.bf16.mxu0 0
    %908 = vmatpush1.bf16.msra.mxu0 0
    %909 = vmatprep.subr.bf16.mxu0 0
    %910 = vmatpush1.bf16.msra.mxu0 0
    %911 = vmatprep.subr.bf16.mxu0 0
    %912 = vmatpush1.bf16.msra.mxu0 0
    %913 = vmatprep.subr.bf16.mxu0 0
    %914 = vmatpush1.bf16.msra.mxu0 0
    %915 = vmatprep.subr.bf16.mxu0 0
    %916 = vmatpush1.bf16.msra.mxu0 0
    %917 = vmatprep.subr.bf16.mxu0 0
    %918 = vmatpush1.bf16.msra.mxu0 0
    %919 = vmatprep.subr.bf16.mxu0 0
    %920 = vmatpush1.bf16.msra.mxu0 0
    %921 = vmatprep.subr.bf16.mxu0 0
    %922 = vmatpush1.bf16.msra.mxu0 0
    %923 = vmatprep.subr.bf16.mxu0 0
    %924 = vmatpush1.bf16.msra.mxu0 0
    %925 = vmatprep.subr.bf16.mxu0 0
    %926 = vmatpush1.bf16.msra.mxu0 0
    %927 = vmatprep.mubr.bf16.mxu0 0
    %928 = vmatmul.mubr.bf16.gmra.mrb[0].mxu0 %v506
    %v929 = vpop.f32.mrb[0].mxu0
    %v930 = vadd.f32 0.0, %v929
    %v931 = vpop.f32.mrb[0].mxu0
    %v932 = vadd.f32 0.0, %v931
    %v933 = vpop.f32.mrb[0].mxu0
    %v934 = vadd.f32 0.0, %v933
    %v935 = vpop.f32.mrb[0].mxu0
    %v936 = vadd.f32 0.0, %v935
    %937 = vdwg.mxu0
    %938 = vmatprep.subr.bf16.mxu0 %v398
    %939 = vmatpush1.bf16.msra.mxu0 %v397
    %940 = vmatprep.subr.bf16.mxu0 %v430
    %941 = vmatpush1.bf16.msra.mxu0 %v429
    %942 = vmatprep.subr.bf16.mxu0 0
    %943 = vmatpush1.bf16.msra.mxu0 0
    %944 = vmatprep.subr.bf16.mxu0 0
    %945 = vmatpush1.bf16.msra.mxu0 0
    %946 = vmatprep.subr.bf16.mxu0 0
    %947 = vmatpush1.bf16.msra.mxu0 0
    %948 = vmatprep.subr.bf16.mxu0 0
    %949 = vmatpush1.bf16.msra.mxu0 0
    %950 = vmatprep.subr.bf16.mxu0 0
    %951 = vmatpush1.bf16.msra.mxu0 0
    %952 = vmatprep.subr.bf16.mxu0 0
    %953 = vmatpush1.bf16.msra.mxu0 0
    %954 = vmatprep.subr.bf16.mxu0 0
    %955 = vmatpush1.bf16.msra.mxu0 0
    %956 = vmatprep.subr.bf16.mxu0 0
    %957 = vmatpush1.bf16.msra.mxu0 0
    %958 = vmatprep.subr.bf16.mxu0 0
    %959 = vmatpush1.bf16.msra.mxu0 0
    %960 = vmatprep.subr.bf16.mxu0 0
    %961 = vmatpush1.bf16.msra.mxu0 0
    %962 = vmatprep.subr.bf16.mxu0 0
    %963 = vmatpush1.bf16.msra.mxu0 0
    %964 = vmatprep.subr.bf16.mxu0 0
    %965 = vmatpush1.bf16.msra.mxu0 0
    %966 = vmatprep.subr.bf16.mxu0 0
    %967 = vmatpush1.bf16.msra.mxu0 0
    %968 = vmatprep.subr.bf16.mxu0 0
    %969 = vmatpush1.bf16.msra.mxu0 0
    %970 = vmatprep.mubr.bf16.mxu0 0
    %971 = vmatmul.mubr.bf16.gmra.mrb[0].mxu0 %v506
    %v972 = vpop.f32.mrb[0].mxu0
    %v973 = vadd.f32 0.0, %v972
    %v974 = vpop.f32.mrb[0].mxu0
    %v975 = vadd.f32 0.0, %v974
    %v976 = vpop.f32.mrb[0].mxu0
    %v977 = vadd.f32 0.0, %v976
    %v978 = vpop.f32.mrb[0].mxu0
    %v979 = vadd.f32 0.0, %v978
    %980 = vdwg.mxu0
    %981 = vmatprep.subr.bf16.mxu0 %v400
    %982 = vmatpush1.bf16.msra.mxu0 %v399
    %983 = vmatprep.subr.bf16.mxu0 %v432
    %984 = vmatpush1.bf16.msra.mxu0 %v431
    %985 = vmatprep.subr.bf16.mxu0 0
    %986 = vmatpush1.bf16.msra.mxu0 0
    %987 = vmatprep.subr.bf16.mxu0 0
    %988 = vmatpush1.bf16.msra.mxu0 0
    %989 = vmatprep.subr.bf16.mxu0 0
    %990 = vmatpush1.bf16.msra.mxu0 0
    %991 = vmatprep.subr.bf16.mxu0 0
    %992 = vmatpush1.bf16.msra.mxu0 0
    %993 = vmatprep.subr.bf16.mxu0 0
    %994 = vmatpush1.bf16.msra.mxu0 0
    %995 = vmatprep.subr.bf16.mxu0 0
    %996 = vmatpush1.bf16.msra.mxu0 0
    %997 = vmatprep.subr.bf16.mxu0 0
    %998 = vmatpush1.bf16.msra.mxu0 0
    %999 = vmatprep.subr.bf16.mxu0 0
    %1000 = vmatpush1.bf16.msra.mxu0 0
    %1001 = vmatprep.subr.bf16.mxu0 0
    %1002 = vmatpush1.bf16.msra.mxu0 0
    %1003 = vmatprep.subr.bf16.mxu0 0
    %1004 = vmatpush1.bf16.msra.mxu0 0
    %1005 = vmatprep.subr.bf16.mxu0 0
    %1006 = vmatpush1.bf16.msra.mxu0 0
    %1007 = vmatprep.subr.bf16.mxu0 0
    %1008 = vmatpush1.bf16.msra.mxu0 0
    %1009 = vmatprep.subr.bf16.mxu0 0
    %1010 = vmatpush1.bf16.msra.mxu0 0
    %1011 = vmatprep.subr.bf16.mxu0 0
    %1012 = vmatpush1.bf16.msra.mxu0 0
    %1013 = vmatprep.mubr.bf16.mxu0 0
    %1014 = vmatmul.mubr.bf16.gmra.mrb[0].mxu0 %v506
    %v1015 = vpop.f32.mrb[0].mxu0
    %v1016 = vadd.f32 0.0, %v1015
    %v1017 = vpop.f32.mrb[0].mxu0
    %v1018 = vadd.f32 0.0, %v1017
    %v1019 = vpop.f32.mrb[0].mxu0
    %v1020 = vadd.f32 0.0, %v1019
    %v1021 = vpop.f32.mrb[0].mxu0
    %v1022 = vadd.f32 0.0, %v1021
    %1023 = vdwg.mxu0
    %1024 = vmatprep.subr.bf16.mxu0 %v402
    %1025 = vmatpush1.bf16.msra.mxu0 %v401
    %1026 = vmatprep.subr.bf16.mxu0 %v434
    %1027 = vmatpush1.bf16.msra.mxu0 %v433
    %1028 = vmatprep.subr.bf16.mxu0 0
    %1029 = vmatpush1.bf16.msra.mxu0 0
    %1030 = vmatprep.subr.bf16.mxu0 0
    %1031 = vmatpush1.bf16.msra.mxu0 0
    %1032 = vmatprep.subr.bf16.mxu0 0
    %1033 = vmatpush1.bf16.msra.mxu0 0
    %1034 = vmatprep.subr.bf16.mxu0 0
    %1035 = vmatpush1.bf16.msra.mxu0 0
    %1036 = vmatprep.subr.bf16.mxu0 0
    %1037 = vmatpush1.bf16.msra.mxu0 0
    %1038 = vmatprep.subr.bf16.mxu0 0
    %1039 = vmatpush1.bf16.msra.mxu0 0
    %1040 = vmatprep.subr.bf16.mxu0 0
    %1041 = vmatpush1.bf16.msra.mxu0 0
    %1042 = vmatprep.subr.bf16.mxu0 0
    %1043 = vmatpush1.bf16.msra.mxu0 0
    %1044 = vmatprep.subr.bf16.mxu0 0
    %1045 = vmatpush1.bf16.msra.mxu0 0
    %1046 = vmatprep.subr.bf16.mxu0 0
    %1047 = vmatpush1.bf16.msra.mxu0 0
    %1048 = vmatprep.subr.bf16.mxu0 0
    %1049 = vmatpush1.bf16.msra.mxu0 0
    %1050 = vmatprep.subr.bf16.mxu0 0
    %1051 = vmatpush1.bf16.msra.mxu0 0
    %1052 = vmatprep.subr.bf16.mxu0 0
    %1053 = vmatpush1.bf16.msra.mxu0 0
    %1054 = vmatprep.subr.bf16.mxu0 0
    %1055 = vmatpush1.bf16.msra.mxu0 0
    %1056 = vmatprep.mubr.bf16.mxu0 0
    %1057 = vmatmul.mubr.bf16.gmra.mrb[0].mxu0 %v506
    %v1058 = vpop.f32.mrb[0].mxu0
    %v1059 = vadd.f32 0.0, %v1058
    %v1060 = vpop.f32.mrb[0].mxu0
    %v1061 = vadd.f32 0.0, %v1060
    %v1062 = vpop.f32.mrb[0].mxu0
    %v1063 = vadd.f32 0.0, %v1062
    %v1064 = vpop.f32.mrb[0].mxu0
    %v1065 = vadd.f32 0.0, %v1064
    %1066 = vdwg.mxu0
    %1067 = vmatprep.subr.bf16.mxu0 %v404
    %1068 = vmatpush1.bf16.msra.mxu0 %v403
    %1069 = vmatprep.subr.bf16.mxu0 %v436
    %1070 = vmatpush1.bf16.msra.mxu0 %v435
    %1071 = vmatprep.subr.bf16.mxu0 0
    %1072 = vmatpush1.bf16.msra.mxu0 0
    %1073 = vmatprep.subr.bf16.mxu0 0
    %1074 = vmatpush1.bf16.msra.mxu0 0
    %1075 = vmatprep.subr.bf16.mxu0 0
    %1076 = vmatpush1.bf16.msra.mxu0 0
    %1077 = vmatprep.subr.bf16.mxu0 0
    %1078 = vmatpush1.bf16.msra.mxu0 0
    %1079 = vmatprep.subr.bf16.mxu0 0
    %1080 = vmatpush1.bf16.msra.mxu0 0
    %1081 = vmatprep.subr.bf16.mxu0 0
    %1082 = vmatpush1.bf16.msra.mxu0 0
    %1083 = vmatprep.subr.bf16.mxu0 0
    %1084 = vmatpush1.bf16.msra.mxu0 0
    %1085 = vmatprep.subr.bf16.mxu0 0
    %1086 = vmatpush1.bf16.msra.mxu0 0
    %1087 = vmatprep.subr.bf16.mxu0 0
    %1088 = vmatpush1.bf16.msra.mxu0 0
    %1089 = vmatprep.subr.bf16.mxu0 0
    %1090 = vmatpush1.bf16.msra.mxu0 0
    %1091 = vmatprep.subr.bf16.mxu0 0
    %1092 = vmatpush1.bf16.msra.mxu0 0
    %1093 = vmatprep.subr.bf16.mxu0 0
    %1094 = vmatpush1.bf16.msra.mxu0 0
    %1095 = vmatprep.subr.bf16.mxu0 0
    %1096 = vmatpush1.bf16.msra.mxu0 0
    %1097 = vmatprep.subr.bf16.mxu0 0
    %1098 = vmatpush1.bf16.msra.mxu0 0
    %1099 = vmatprep.mubr.bf16.mxu0 0
    %1100 = vmatmul.mubr.bf16.gmra.mrb[0].mxu0 %v506
    %v1101 = vpop.f32.mrb[0].mxu0
    %v1102 = vadd.f32 0.0, %v1101
    %v1103 = vpop.f32.mrb[0].mxu0
    %v1104 = vadd.f32 0.0, %v1103
    %v1105 = vpop.f32.mrb[0].mxu0
    %v1106 = vadd.f32 0.0, %v1105
    %v1107 = vpop.f32.mrb[0].mxu0
    %v1108 = vadd.f32 0.0, %v1107
    %1109 = vdwg.mxu0
    %1110 = vmatprep.subr.bf16.mxu0 %v406
    %1111 = vmatpush1.bf16.msra.mxu0 %v405
    %1112 = vmatprep.subr.bf16.mxu0 %v438
    %1113 = vmatpush1.bf16.msra.mxu0 %v437
    %1114 = vmatprep.subr.bf16.mxu0 0
    %1115 = vmatpush1.bf16.msra.mxu0 0
    %1116 = vmatprep.subr.bf16.mxu0 0
    %1117 = vmatpush1.bf16.msra.mxu0 0
    %1118 = vmatprep.subr.bf16.mxu0 0
    %1119 = vmatpush1.bf16.msra.mxu0 0
    %1120 = vmatprep.subr.bf16.mxu0 0
    %1121 = vmatpush1.bf16.msra.mxu0 0
    %1122 = vmatprep.subr.bf16.mxu0 0
    %1123 = vmatpush1.bf16.msra.mxu0 0
    %1124 = vmatprep.subr.bf16.mxu0 0
    %1125 = vmatpush1.bf16.msra.mxu0 0
    %1126 = vmatprep.subr.bf16.mxu0 0
    %1127 = vmatpush1.bf16.msra.mxu0 0
    %1128 = vmatprep.subr.bf16.mxu0 0
    %1129 = vmatpush1.bf16.msra.mxu0 0
    %1130 = vmatprep.subr.bf16.mxu0 0
    %1131 = vmatpush1.bf16.msra.mxu0 0
    %1132 = vmatprep.subr.bf16.mxu0 0
    %1133 = vmatpush1.bf16.msra.mxu0 0
    %1134 = vmatprep.subr.bf16.mxu0 0
    %1135 = vmatpush1.bf16.msra.mxu0 0
    %1136 = vmatprep.subr.bf16.mxu0 0
    %1137 = vmatpush1.bf16.msra.mxu0 0
    %1138 = vmatprep.subr.bf16.mxu0 0
    %1139 = vmatpush1.bf16.msra.mxu0 0
    %1140 = vmatprep.subr.bf16.mxu0 0
    %1141 = vmatpush1.bf16.msra.mxu0 0
    %1142 = vmatprep.mubr.bf16.mxu0 0
    %1143 = vmatmul.mubr.bf16.gmra.mrb[0].mxu0 %v506
    %v1144 = vpop.f32.mrb[0].mxu0
    %v1145 = vadd.f32 0.0, %v1144
    %v1146 = vpop.f32.mrb[0].mxu0
    %v1147 = vadd.f32 0.0, %v1146
    %v1148 = vpop.f32.mrb[0].mxu0
    %v1149 = vadd.f32 0.0, %v1148
    %v1150 = vpop.f32.mrb[0].mxu0
    %v1151 = vadd.f32 0.0, %v1150
    %1152 = vdwg.mxu0
    %1153 = vmatprep.subr.bf16.mxu0 %v408
    %1154 = vmatpush1.bf16.msra.mxu0 %v407
    %1155 = vmatprep.subr.bf16.mxu0 %v440
    %1156 = vmatpush1.bf16.msra.mxu0 %v439
    %1157 = vmatprep.subr.bf16.mxu0 0
    %1158 = vmatpush1.bf16.msra.mxu0 0
    %1159 = vmatprep.subr.bf16.mxu0 0
    %1160 = vmatpush1.bf16.msra.mxu0 0
    %1161 = vmatprep.subr.bf16.mxu0 0
    %1162 = vmatpush1.bf16.msra.mxu0 0
    %1163 = vmatprep.subr.bf16.mxu0 0
    %1164 = vmatpush1.bf16.msra.mxu0 0
    %1165 = vmatprep.subr.bf16.mxu0 0
    %1166 = vmatpush1.bf16.msra.mxu0 0
    %1167 = vmatprep.subr.bf16.mxu0 0
    %1168 = vmatpush1.bf16.msra.mxu0 0
    %1169 = vmatprep.subr.bf16.mxu0 0
    %1170 = vmatpush1.bf16.msra.mxu0 0
    %1171 = vmatprep.subr.bf16.mxu0 0
    %1172 = vmatpush1.bf16.msra.mxu0 0
    %1173 = vmatprep.subr.bf16.mxu0 0
    %1174 = vmatpush1.bf16.msra.mxu0 0
    %1175 = vmatprep.subr.bf16.mxu0 0
    %1176 = vmatpush1.bf16.msra.mxu0 0
    %1177 = vmatprep.subr.bf16.mxu0 0
    %1178 = vmatpush1.bf16.msra.mxu0 0
    %1179 = vmatprep.subr.bf16.mxu0 0
    %1180 = vmatpush1.bf16.msra.mxu0 0
    %1181 = vmatprep.subr.bf16.mxu0 0
    %1182 = vmatpush1.bf16.msra.mxu0 0
    %1183 = vmatprep.subr.bf16.mxu0 0
    %1184 = vmatpush1.bf16.msra.mxu0 0
    %1185 = vmatprep.mubr.bf16.mxu0 0
    %1186 = vmatmul.mubr.bf16.gmra.mrb[0].mxu0 %v506
    %v1187 = vpop.f32.mrb[0].mxu0
    %v1188 = vadd.f32 0.0, %v1187
    %v1189 = vpop.f32.mrb[0].mxu0
    %v1190 = vadd.f32 0.0, %v1189
    %v1191 = vpop.f32.mrb[0].mxu0
    %v1192 = vadd.f32 0.0, %v1191
    %v1193 = vpop.f32.mrb[0].mxu0
    %v1194 = vadd.f32 0.0, %v1193
    %1195 = vdwg.mxu0
    %v1196 = vpack.c.bf16 %v547, %v543
    %v1197 = vpack.c.bf16 %v549, %v545
    %v1198 = vpack.c.bf16 %v590, %v586
    %v1199 = vpack.c.bf16 %v592, %v588
    %v1200 = vpack.c.bf16 %v633, %v629
    %v1201 = vpack.c.bf16 %v635, %v631
    %v1202 = vpack.c.bf16 %v676, %v672
    %v1203 = vpack.c.bf16 %v678, %v674
    %v1204 = vpack.c.bf16 %v719, %v715
    %v1205 = vpack.c.bf16 %v721, %v717
    %v1206 = vpack.c.bf16 %v762, %v758
    %v1207 = vpack.c.bf16 %v764, %v760
    %v1208 = vpack.c.bf16 %v805, %v801
    %v1209 = vpack.c.bf16 %v807, %v803
    %v1210 = vpack.c.bf16 %v848, %v844
    %v1211 = vpack.c.bf16 %v850, %v846
    %v1212 = vpack.c.bf16 %v891, %v887
    %v1213 = vpack.c.bf16 %v893, %v889
    %v1214 = vpack.c.bf16 %v934, %v930
    %v1215 = vpack.c.bf16 %v936, %v932
    %v1216 = vpack.c.bf16 %v977, %v973
    %v1217 = vpack.c.bf16 %v979, %v975
    %v1218 = vpack.c.bf16 %v1020, %v1016
    %v1219 = vpack.c.bf16 %v1022, %v1018
    %v1220 = vpack.c.bf16 %v1063, %v1059
    %v1221 = vpack.c.bf16 %v1065, %v1061
    %v1222 = vpack.c.bf16 %v1106, %v1102
    %v1223 = vpack.c.bf16 %v1108, %v1104
    %v1224 = vpack.c.bf16 %v1149, %v1145
    %v1225 = vpack.c.bf16 %v1151, %v1147
    %v1226 = vpack.c.bf16 %v1192, %v1188
    %v1227 = vpack.c.bf16 %v1194, %v1190
    %v1228 = vld [vmem:[%s5] sm:$0xf]
    %v1229 = vld [vmem:[%s5 + $0x4] sm:$0xf]
    %v1230 = vld [vmem:[%s5 + $0x8] sm:$0xf]
    %v1231 = vld [vmem:[%s5 + $0xc] sm:$0xf]
    %v1232 = vld [vmem:[%s5 + $0x10] sm:$0xf]
    %v1233 = vld [vmem:[%s5 + $0x14] sm:$0xf]
    %v1234 = vld [vmem:[%s5 + $0x18] sm:$0xf]
    %v1235 = vld [vmem:[%s5 + $0x1c] sm:$0xf]
    %v1236 = vld [vmem:[%s5 + $0x20] sm:$0xf]
    %v1237 = vld [vmem:[%s5 + $0x24] sm:$0xf]
    %v1238 = vld [vmem:[%s5 + $0x28] sm:$0xf]
    %v1239 = vld [vmem:[%s5 + $0x2c] sm:$0xf]
    %v1240 = vld [vmem:[%s5 + $0x30] sm:$0xf]
    %v1241 = vld [vmem:[%s5 + $0x34] sm:$0xf]
    %v1242 = vld [vmem:[%s5 + $0x38] sm:$0xf]
    %v1243 = vld [vmem:[%s5 + $0x3c] sm:$0xf]
    %v1244 = vld [vmem:[%s5 + $0x40] sm:$0xf]
    %v1245 = vld [vmem:[%s5 + $0x44] sm:$0xf]
    %v1246 = vld [vmem:[%s5 + $0x48] sm:$0xf]
    %v1247 = vld [vmem:[%s5 + $0x4c] sm:$0xf]
    %v1248 = vld [vmem:[%s5 + $0x50] sm:$0xf]
    %v1249 = vld [vmem:[%s5 + $0x54] sm:$0xf]
    %v1250 = vld [vmem:[%s5 + $0x58] sm:$0xf]
    %v1251 = vld [vmem:[%s5 + $0x5c] sm:$0xf]
    %v1252 = vld [vmem:[%s5 + $0x60] sm:$0xf]
    %v1253 = vld [vmem:[%s5 + $0x64] sm:$0xf]
    %v1254 = vld [vmem:[%s5 + $0x68] sm:$0xf]
    %v1255 = vld [vmem:[%s5 + $0x6c] sm:$0xf]
    %v1256 = vld [vmem:[%s5 + $0x70] sm:$0xf]
    %v1257 = vld [vmem:[%s5 + $0x74] sm:$0xf]
    %v1258 = vld [vmem:[%s5 + $0x78] sm:$0xf]
    %v1259 = vld [vmem:[%s5 + $0x7c] sm:$0xf]
    %v1260 = vld [vmem:[%s5 + $0x80] sm:$0xf]
    %v1261 = vld [vmem:[%s5 + $0x84] sm:$0xf]
    %v1262 = vld [vmem:[%s5 + $0x88] sm:$0xf]
    %v1263 = vld [vmem:[%s5 + $0x8c] sm:$0xf]
    %v1264 = vld [vmem:[%s5 + $0x90] sm:$0xf]
    %v1265 = vld [vmem:[%s5 + $0x94] sm:$0xf]
    %v1266 = vld [vmem:[%s5 + $0x98] sm:$0xf]
    %v1267 = vld [vmem:[%s5 + $0x9c] sm:$0xf]
    %v1268 = vld [vmem:[%s5 + $0xa0] sm:$0xf]
    %v1269 = vld [vmem:[%s5 + $0xa4] sm:$0xf]
    %v1270 = vld [vmem:[%s5 + $0xa8] sm:$0xf]
    %v1271 = vld [vmem:[%s5 + $0xac] sm:$0xf]
    %v1272 = vld [vmem:[%s5 + $0xb0] sm:$0xf]
    %v1273 = vld [vmem:[%s5 + $0xb4] sm:$0xf]
    %v1274 = vld [vmem:[%s5 + $0xb8] sm:$0xf]
    %v1275 = vld [vmem:[%s5 + $0xbc] sm:$0xf]
    %v1276 = vld [vmem:[%s5 + $0xc0] sm:$0xf]
    %v1277 = vld [vmem:[%s5 + $0xc4] sm:$0xf]
    %v1278 = vld [vmem:[%s5 + $0xc8] sm:$0xf]
    %v1279 = vld [vmem:[%s5 + $0xcc] sm:$0xf]
    %v1280 = vld [vmem:[%s5 + $0xd0] sm:$0xf]
    %v1281 = vld [vmem:[%s5 + $0xd4] sm:$0xf]
    %v1282 = vld [vmem:[%s5 + $0xd8] sm:$0xf]
    %v1283 = vld [vmem:[%s5 + $0xdc] sm:$0xf]
    %v1284 = vld [vmem:[%s5 + $0xe0] sm:$0xf]
    %v1285 = vld [vmem:[%s5 + $0xe4] sm:$0xf]
    %v1286 = vld [vmem:[%s5 + $0xe8] sm:$0xf]
    %v1287 = vld [vmem:[%s5 + $0xec] sm:$0xf]
    %v1288 = vld [vmem:[%s5 + $0xf0] sm:$0xf]
    %v1289 = vld [vmem:[%s5 + $0xf4] sm:$0xf]
    %v1290 = vld [vmem:[%s5 + $0xf8] sm:$0xf]
    %v1291 = vld [vmem:[%s5 + $0xfc] sm:$0xf]
    %v1292 = vld [vmem:[%s5 + $0x100] sm:$0xf]
    %v1293 = vld [vmem:[%s5 + $0x104] sm:$0xf]
    %v1294 = vld [vmem:[%s5 + $0x108] sm:$0xf]
    %v1295 = vld [vmem:[%s5 + $0x10c] sm:$0xf]
    %v1296 = vld [vmem:[%s5 + $0x110] sm:$0xf]
    %v1297 = vld [vmem:[%s5 + $0x114] sm:$0xf]
    %v1298 = vld [vmem:[%s5 + $0x118] sm:$0xf]
    %v1299 = vld [vmem:[%s5 + $0x11c] sm:$0xf]
    %v1300 = vld [vmem:[%s5 + $0x120] sm:$0xf]
    %v1301 = vld [vmem:[%s5 + $0x124] sm:$0xf]
    %v1302 = vld [vmem:[%s5 + $0x128] sm:$0xf]
    %v1303 = vld [vmem:[%s5 + $0x12c] sm:$0xf]
    %v1304 = vld [vmem:[%s5 + $0x130] sm:$0xf]
    %v1305 = vld [vmem:[%s5 + $0x134] sm:$0xf]
    %v1306 = vld [vmem:[%s5 + $0x138] sm:$0xf]
    %v1307 = vld [vmem:[%s5 + $0x13c] sm:$0xf]
    %v1308 = vld [vmem:[%s5 + $0x140] sm:$0xf]
    %v1309 = vld [vmem:[%s5 + $0x144] sm:$0xf]
    %v1310 = vld [vmem:[%s5 + $0x148] sm:$0xf]
    %v1311 = vld [vmem:[%s5 + $0x14c] sm:$0xf]
    %v1312 = vld [vmem:[%s5 + $0x150] sm:$0xf]
    %v1313 = vld [vmem:[%s5 + $0x154] sm:$0xf]
    %v1314 = vld [vmem:[%s5 + $0x158] sm:$0xf]
    %v1315 = vld [vmem:[%s5 + $0x15c] sm:$0xf]
    %v1316 = vld [vmem:[%s5 + $0x160] sm:$0xf]
    %v1317 = vld [vmem:[%s5 + $0x164] sm:$0xf]
    %v1318 = vld [vmem:[%s5 + $0x168] sm:$0xf]
    %v1319 = vld [vmem:[%s5 + $0x16c] sm:$0xf]
    %v1320 = vld [vmem:[%s5 + $0x170] sm:$0xf]
    %v1321 = vld [vmem:[%s5 + $0x174] sm:$0xf]
    %v1322 = vld [vmem:[%s5 + $0x178] sm:$0xf]
    %v1323 = vld [vmem:[%s5 + $0x17c] sm:$0xf]
    %v1324 = vld [vmem:[%s5 + $0x180] sm:$0xf]
    %v1325 = vld [vmem:[%s5 + $0x184] sm:$0xf]
    %v1326 = vld [vmem:[%s5 + $0x188] sm:$0xf]
    %v1327 = vld [vmem:[%s5 + $0x18c] sm:$0xf]
    %v1328 = vld [vmem:[%s5 + $0x190] sm:$0xf]
    %v1329 = vld [vmem:[%s5 + $0x194] sm:$0xf]
    %v1330 = vld [vmem:[%s5 + $0x198] sm:$0xf]
    %v1331 = vld [vmem:[%s5 + $0x19c] sm:$0xf]
    %v1332 = vld [vmem:[%s5 + $0x1a0] sm:$0xf]
    %v1333 = vld [vmem:[%s5 + $0x1a4] sm:$0xf]
    %v1334 = vld [vmem:[%s5 + $0x1a8] sm:$0xf]
    %v1335 = vld [vmem:[%s5 + $0x1ac] sm:$0xf]
    %v1336 = vld [vmem:[%s5 + $0x1b0] sm:$0xf]
    %v1337 = vld [vmem:[%s5 + $0x1b4] sm:$0xf]
    %v1338 = vld [vmem:[%s5 + $0x1b8] sm:$0xf]
    %v1339 = vld [vmem:[%s5 + $0x1bc] sm:$0xf]
    %v1340 = vld [vmem:[%s5 + $0x1c0] sm:$0xf]
    %v1341 = vld [vmem:[%s5 + $0x1c4] sm:$0xf]
    %v1342 = vld [vmem:[%s5 + $0x1c8] sm:$0xf]
    %v1343 = vld [vmem:[%s5 + $0x1cc] sm:$0xf]
    %v1344 = vld [vmem:[%s5 + $0x1d0] sm:$0xf]
    %v1345 = vld [vmem:[%s5 + $0x1d4] sm:$0xf]
    %v1346 = vld [vmem:[%s5 + $0x1d8] sm:$0xf]
    %v1347 = vld [vmem:[%s5 + $0x1dc] sm:$0xf]
    %v1348 = vld [vmem:[%s5 + $0x1e0] sm:$0xf]
    %v1349 = vld [vmem:[%s5 + $0x1e4] sm:$0xf]
    %v1350 = vld [vmem:[%s5 + $0x1e8] sm:$0xf]
    %v1351 = vld [vmem:[%s5 + $0x1ec] sm:$0xf]
    %v1352 = vld [vmem:[%s5 + $0x1f0] sm:$0xf]
    %v1353 = vld [vmem:[%s5 + $0x1f4] sm:$0xf]
    %v1354 = vld [vmem:[%s5 + $0x1f8] sm:$0xf]
    %v1355 = vld [vmem:[%s5 + $0x1fc] sm:$0xf]
    %v1356 = vld [vmem:[%s5 + $0x200] sm:$0xf]
    %v1357 = vld [vmem:[%s5 + $0x204] sm:$0xf]
    %v1358 = vld [vmem:[%s5 + $0x208] sm:$0xf]
    %v1359 = vld [vmem:[%s5 + $0x20c] sm:$0xf]
    %v1360 = vld [vmem:[%s5 + $0x210] sm:$0xf]
    %v1361 = vld [vmem:[%s5 + $0x214] sm:$0xf]
    %v1362 = vld [vmem:[%s5 + $0x218] sm:$0xf]
    %v1363 = vld [vmem:[%s5 + $0x21c] sm:$0xf]
    %v1364 = vld [vmem:[%s5 + $0x220] sm:$0xf]
    %v1365 = vld [vmem:[%s5 + $0x224] sm:$0xf]
    %v1366 = vld [vmem:[%s5 + $0x228] sm:$0xf]
    %v1367 = vld [vmem:[%s5 + $0x22c] sm:$0xf]
    %v1368 = vld [vmem:[%s5 + $0x230] sm:$0xf]
    %v1369 = vld [vmem:[%s5 + $0x234] sm:$0xf]
    %v1370 = vld [vmem:[%s5 + $0x238] sm:$0xf]
    %v1371 = vld [vmem:[%s5 + $0x23c] sm:$0xf]
    %v1372 = vld [vmem:[%s5 + $0x240] sm:$0xf]
    %v1373 = vld [vmem:[%s5 + $0x244] sm:$0xf]
    %v1374 = vld [vmem:[%s5 + $0x248] sm:$0xf]
    %v1375 = vld [vmem:[%s5 + $0x24c] sm:$0xf]
    %v1376 = vld [vmem:[%s5 + $0x250] sm:$0xf]
    %v1377 = vld [vmem:[%s5 + $0x254] sm:$0xf]
    %v1378 = vld [vmem:[%s5 + $0x258] sm:$0xf]
    %v1379 = vld [vmem:[%s5 + $0x25c] sm:$0xf]
    %v1380 = vld [vmem:[%s5 + $0x260] sm:$0xf]
    %v1381 = vld [vmem:[%s5 + $0x264] sm:$0xf]
    %v1382 = vld [vmem:[%s5 + $0x268] sm:$0xf]
    %v1383 = vld [vmem:[%s5 + $0x26c] sm:$0xf]
    %v1384 = vld [vmem:[%s5 + $0x270] sm:$0xf]
    %v1385 = vld [vmem:[%s5 + $0x274] sm:$0xf]
    %v1386 = vld [vmem:[%s5 + $0x278] sm:$0xf]
    %v1387 = vld [vmem:[%s5 + $0x27c] sm:$0xf]
    %v1388 = vld [vmem:[%s5 + $0x280] sm:$0xf]
    %v1389 = vld [vmem:[%s5 + $0x284] sm:$0xf]
    %v1390 = vld [vmem:[%s5 + $0x288] sm:$0xf]
    %v1391 = vld [vmem:[%s5 + $0x28c] sm:$0xf]
    %v1392 = vld [vmem:[%s5 + $0x290] sm:$0xf]
    %v1393 = vld [vmem:[%s5 + $0x294] sm:$0xf]
    %v1394 = vld [vmem:[%s5 + $0x298] sm:$0xf]
    %v1395 = vld [vmem:[%s5 + $0x29c] sm:$0xf]
    %v1396 = vld [vmem:[%s5 + $0x2a0] sm:$0xf]
    %v1397 = vld [vmem:[%s5 + $0x2a4] sm:$0xf]
    %v1398 = vld [vmem:[%s5 + $0x2a8] sm:$0xf]
    %v1399 = vld [vmem:[%s5 + $0x2ac] sm:$0xf]
    %v1400 = vld [vmem:[%s5 + $0x2b0] sm:$0xf]
    %v1401 = vld [vmem:[%s5 + $0x2b4] sm:$0xf]
    %v1402 = vld [vmem:[%s5 + $0x2b8] sm:$0xf]
    %v1403 = vld [vmem:[%s5 + $0x2bc] sm:$0xf]
    %v1404 = vld [vmem:[%s5 + $0x2c0] sm:$0xf]
    %v1405 = vld [vmem:[%s5 + $0x2c4] sm:$0xf]
    %v1406 = vld [vmem:[%s5 + $0x2c8] sm:$0xf]
    %v1407 = vld [vmem:[%s5 + $0x2cc] sm:$0xf]
    %v1408 = vld [vmem:[%s5 + $0x2d0] sm:$0xf]
    %v1409 = vld [vmem:[%s5 + $0x2d4] sm:$0xf]
    %v1410 = vld [vmem:[%s5 + $0x2d8] sm:$0xf]
    %v1411 = vld [vmem:[%s5 + $0x2dc] sm:$0xf]
    %v1412 = vld [vmem:[%s5 + $0x2e0] sm:$0xf]
    %v1413 = vld [vmem:[%s5 + $0x2e4] sm:$0xf]
    %v1414 = vld [vmem:[%s5 + $0x2e8] sm:$0xf]
    %v1415 = vld [vmem:[%s5 + $0x2ec] sm:$0xf]
    %v1416 = vld [vmem:[%s5 + $0x2f0] sm:$0xf]
    %v1417 = vld [vmem:[%s5 + $0x2f4] sm:$0xf]
    %v1418 = vld [vmem:[%s5 + $0x2f8] sm:$0xf]
    %v1419 = vld [vmem:[%s5 + $0x2fc] sm:$0xf]
    %v1420 = vld [vmem:[%s5 + $0x300] sm:$0xf]
    %v1421 = vld [vmem:[%s5 + $0x304] sm:$0xf]
    %v1422 = vld [vmem:[%s5 + $0x308] sm:$0xf]
    %v1423 = vld [vmem:[%s5 + $0x30c] sm:$0xf]
    %v1424 = vld [vmem:[%s5 + $0x310] sm:$0xf]
    %v1425 = vld [vmem:[%s5 + $0x314] sm:$0xf]
    %v1426 = vld [vmem:[%s5 + $0x318] sm:$0xf]
    %v1427 = vld [vmem:[%s5 + $0x31c] sm:$0xf]
    %v1428 = vld [vmem:[%s5 + $0x320] sm:$0xf]
    %v1429 = vld [vmem:[%s5 + $0x324] sm:$0xf]
    %v1430 = vld [vmem:[%s5 + $0x328] sm:$0xf]
    %v1431 = vld [vmem:[%s5 + $0x32c] sm:$0xf]
    %v1432 = vld [vmem:[%s5 + $0x330] sm:$0xf]
    %v1433 = vld [vmem:[%s5 + $0x334] sm:$0xf]
    %v1434 = vld [vmem:[%s5 + $0x338] sm:$0xf]
    %v1435 = vld [vmem:[%s5 + $0x33c] sm:$0xf]
    %v1436 = vld [vmem:[%s5 + $0x340] sm:$0xf]
    %v1437 = vld [vmem:[%s5 + $0x344] sm:$0xf]
    %v1438 = vld [vmem:[%s5 + $0x348] sm:$0xf]
    %v1439 = vld [vmem:[%s5 + $0x34c] sm:$0xf]
    %v1440 = vld [vmem:[%s5 + $0x350] sm:$0xf]
    %v1441 = vld [vmem:[%s5 + $0x354] sm:$0xf]
    %v1442 = vld [vmem:[%s5 + $0x358] sm:$0xf]
    %v1443 = vld [vmem:[%s5 + $0x35c] sm:$0xf]
    %v1444 = vld [vmem:[%s5 + $0x360] sm:$0xf]
    %v1445 = vld [vmem:[%s5 + $0x364] sm:$0xf]
    %v1446 = vld [vmem:[%s5 + $0x368] sm:$0xf]
    %v1447 = vld [vmem:[%s5 + $0x36c] sm:$0xf]
    %v1448 = vld [vmem:[%s5 + $0x370] sm:$0xf]
    %v1449 = vld [vmem:[%s5 + $0x374] sm:$0xf]
    %v1450 = vld [vmem:[%s5 + $0x378] sm:$0xf]
    %v1451 = vld [vmem:[%s5 + $0x37c] sm:$0xf]
    %v1452 = vld [vmem:[%s5 + $0x380] sm:$0xf]
    %v1453 = vld [vmem:[%s5 + $0x384] sm:$0xf]
    %v1454 = vld [vmem:[%s5 + $0x388] sm:$0xf]
    %v1455 = vld [vmem:[%s5 + $0x38c] sm:$0xf]
    %v1456 = vld [vmem:[%s5 + $0x390] sm:$0xf]
    %v1457 = vld [vmem:[%s5 + $0x394] sm:$0xf]
    %v1458 = vld [vmem:[%s5 + $0x398] sm:$0xf]
    %v1459 = vld [vmem:[%s5 + $0x39c] sm:$0xf]
    %v1460 = vld [vmem:[%s5 + $0x3a0] sm:$0xf]
    %v1461 = vld [vmem:[%s5 + $0x3a4] sm:$0xf]
    %v1462 = vld [vmem:[%s5 + $0x3a8] sm:$0xf]
    %v1463 = vld [vmem:[%s5 + $0x3ac] sm:$0xf]
    %v1464 = vld [vmem:[%s5 + $0x3b0] sm:$0xf]
    %v1465 = vld [vmem:[%s5 + $0x3b4] sm:$0xf]
    %v1466 = vld [vmem:[%s5 + $0x3b8] sm:$0xf]
    %v1467 = vld [vmem:[%s5 + $0x3bc] sm:$0xf]
    %v1468 = vld [vmem:[%s5 + $0x3c0] sm:$0xf]
    %v1469 = vld [vmem:[%s5 + $0x3c4] sm:$0xf]
    %v1470 = vld [vmem:[%s5 + $0x3c8] sm:$0xf]
    %v1471 = vld [vmem:[%s5 + $0x3cc] sm:$0xf]
    %v1472 = vld [vmem:[%s5 + $0x3d0] sm:$0xf]
    %v1473 = vld [vmem:[%s5 + $0x3d4] sm:$0xf]
    %v1474 = vld [vmem:[%s5 + $0x3d8] sm:$0xf]
    %v1475 = vld [vmem:[%s5 + $0x3dc] sm:$0xf]
    %v1476 = vld [vmem:[%s5 + $0x3e0] sm:$0xf]
    %v1477 = vld [vmem:[%s5 + $0x3e4] sm:$0xf]
    %v1478 = vld [vmem:[%s5 + $0x3e8] sm:$0xf]
    %v1479 = vld [vmem:[%s5 + $0x3ec] sm:$0xf]
    %v1480 = vld [vmem:[%s5 + $0x3f0] sm:$0xf]
    %v1481 = vld [vmem:[%s5 + $0x3f4] sm:$0xf]
    %v1482 = vld [vmem:[%s5 + $0x3f8] sm:$0xf]
    %v1483 = vld [vmem:[%s5 + $0x3fc] sm:$0xf]
    %v1740 = vunpack.c.l.b16 %v1228
    %v1741 = vunpack.c.l.b16 %v1229
    %v1742 = vunpack.c.l.b16 %v1230
    %v1743 = vunpack.c.l.b16 %v1231
    %v1744 = vunpack.c.l.b16 %v1232
    %v1745 = vunpack.c.l.b16 %v1233
    %v1746 = vunpack.c.l.b16 %v1234
    %v1747 = vunpack.c.l.b16 %v1235
    %v1748 = vunpack.c.l.b16 %v1236
    %v1749 = vunpack.c.l.b16 %v1237
    %v1750 = vunpack.c.l.b16 %v1238
    %v1751 = vunpack.c.l.b16 %v1239
    %v1752 = vunpack.c.l.b16 %v1240
    %v1753 = vunpack.c.l.b16 %v1241
    %v1754 = vunpack.c.l.b16 %v1242
    %v1755 = vunpack.c.l.b16 %v1243
    %v1756 = vunpack.c.l.b16 %v1244
    %v1757 = vunpack.c.l.b16 %v1245
    %v1758 = vunpack.c.l.b16 %v1246
    %v1759 = vunpack.c.l.b16 %v1247
    %v1760 = vunpack.c.l.b16 %v1248
    %v1761 = vunpack.c.l.b16 %v1249
    %v1762 = vunpack.c.l.b16 %v1250
    %v1763 = vunpack.c.l.b16 %v1251
    %v1764 = vunpack.c.l.b16 %v1252
    %v1765 = vunpack.c.l.b16 %v1253
    %v1766 = vunpack.c.l.b16 %v1254
    %v1767 = vunpack.c.l.b16 %v1255
    %v1768 = vunpack.c.l.b16 %v1256
    %v1769 = vunpack.c.l.b16 %v1257
    %v1770 = vunpack.c.l.b16 %v1258
    %v1771 = vunpack.c.l.b16 %v1259
    %v1772 = vunpack.c.l.b16 %v1260
    %v1773 = vunpack.c.l.b16 %v1261
    %v1774 = vunpack.c.l.b16 %v1262
    %v1775 = vunpack.c.l.b16 %v1263
    %v1776 = vunpack.c.l.b16 %v1264
    %v1777 = vunpack.c.l.b16 %v1265
    %v1778 = vunpack.c.l.b16 %v1266
    %v1779 = vunpack.c.l.b16 %v1267
    %v1780 = vunpack.c.l.b16 %v1268
    %v1781 = vunpack.c.l.b16 %v1269
    %v1782 = vunpack.c.l.b16 %v1270
    %v1783 = vunpack.c.l.b16 %v1271
    %v1784 = vunpack.c.l.b16 %v1272
    %v1785 = vunpack.c.l.b16 %v1273
    %v1786 = vunpack.c.l.b16 %v1274
    %v1787 = vunpack.c.l.b16 %v1275
    %v1788 = vunpack.c.l.b16 %v1276
    %v1789 = vunpack.c.l.b16 %v1277
    %v1790 = vunpack.c.l.b16 %v1278
    %v1791 = vunpack.c.l.b16 %v1279
    %v1792 = vunpack.c.l.b16 %v1280
    %v1793 = vunpack.c.l.b16 %v1281
    %v1794 = vunpack.c.l.b16 %v1282
    %v1795 = vunpack.c.l.b16 %v1283
    %v1796 = vunpack.c.l.b16 %v1284
    %v1797 = vunpack.c.l.b16 %v1285
    %v1798 = vunpack.c.l.b16 %v1286
    %v1799 = vunpack.c.l.b16 %v1287
    %v1800 = vunpack.c.l.b16 %v1288
    %v1801 = vunpack.c.l.b16 %v1289
    %v1802 = vunpack.c.l.b16 %v1290
    %v1803 = vunpack.c.l.b16 %v1291
    %v1804 = vunpack.c.l.b16 %v1292
    %v1805 = vunpack.c.l.b16 %v1293
    %v1806 = vunpack.c.l.b16 %v1294
    %v1807 = vunpack.c.l.b16 %v1295
    %v1808 = vunpack.c.l.b16 %v1296
    %v1809 = vunpack.c.l.b16 %v1297
    %v1810 = vunpack.c.l.b16 %v1298
    %v1811 = vunpack.c.l.b16 %v1299
    %v1812 = vunpack.c.l.b16 %v1300
    %v1813 = vunpack.c.l.b16 %v1301
    %v1814 = vunpack.c.l.b16 %v1302
    %v1815 = vunpack.c.l.b16 %v1303
    %v1816 = vunpack.c.l.b16 %v1304
    %v1817 = vunpack.c.l.b16 %v1305
    %v1818 = vunpack.c.l.b16 %v1306
    %v1819 = vunpack.c.l.b16 %v1307
    %v1820 = vunpack.c.l.b16 %v1308
    %v1821 = vunpack.c.l.b16 %v1309
    %v1822 = vunpack.c.l.b16 %v1310
    %v1823 = vunpack.c.l.b16 %v1311
    %v1824 = vunpack.c.l.b16 %v1312
    %v1825 = vunpack.c.l.b16 %v1313
    %v1826 = vunpack.c.l.b16 %v1314
    %v1827 = vunpack.c.l.b16 %v1315
    %v1828 = vunpack.c.l.b16 %v1316
    %v1829 = vunpack.c.l.b16 %v1317
    %v1830 = vunpack.c.l.b16 %v1318
    %v1831 = vunpack.c.l.b16 %v1319
    %v1832 = vunpack.c.l.b16 %v1320
    %v1833 = vunpack.c.l.b16 %v1321
    %v1834 = vunpack.c.l.b16 %v1322
    %v1835 = vunpack.c.l.b16 %v1323
    %v1836 = vunpack.c.l.b16 %v1324
    %v1837 = vunpack.c.l.b16 %v1325
    %v1838 = vunpack.c.l.b16 %v1326
    %v1839 = vunpack.c.l.b16 %v1327
    %v1840 = vunpack.c.l.b16 %v1328
    %v1841 = vunpack.c.l.b16 %v1329
    %v1842 = vunpack.c.l.b16 %v1330
    %v1843 = vunpack.c.l.b16 %v1331
    %v1844 = vunpack.c.l.b16 %v1332
    %v1845 = vunpack.c.l.b16 %v1333
    %v1846 = vunpack.c.l.b16 %v1334
    %v1847 = vunpack.c.l.b16 %v1335
    %v1848 = vunpack.c.l.b16 %v1336
    %v1849 = vunpack.c.l.b16 %v1337
    %v1850 = vunpack.c.l.b16 %v1338
    %v1851 = vunpack.c.l.b16 %v1339
    %v1852 = vunpack.c.l.b16 %v1340
    %v1853 = vunpack.c.l.b16 %v1341
    %v1854 = vunpack.c.l.b16 %v1342
    %v1855 = vunpack.c.l.b16 %v1343
    %v1856 = vunpack.c.l.b16 %v1344
    %v1857 = vunpack.c.l.b16 %v1345
    %v1858 = vunpack.c.l.b16 %v1346
    %v1859 = vunpack.c.l.b16 %v1347
    %v1860 = vunpack.c.l.b16 %v1348
    %v1861 = vunpack.c.l.b16 %v1349
    %v1862 = vunpack.c.l.b16 %v1350
    %v1863 = vunpack.c.l.b16 %v1351
    %v1864 = vunpack.c.l.b16 %v1352
    %v1865 = vunpack.c.l.b16 %v1353
    %v1866 = vunpack.c.l.b16 %v1354
    %v1867 = vunpack.c.l.b16 %v1355
    %v1868 = vunpack.c.l.b16 %v1356
    %v1869 = vunpack.c.l.b16 %v1357
    %v1870 = vunpack.c.l.b16 %v1358
    %v1871 = vunpack.c.l.b16 %v1359
    %v1872 = vunpack.c.l.b16 %v1360
    %v1873 = vunpack.c.l.b16 %v1361
    %v1874 = vunpack.c.l.b16 %v1362
    %v1875 = vunpack.c.l.b16 %v1363
    %v1876 = vunpack.c.l.b16 %v1364
    %v1877 = vunpack.c.l.b16 %v1365
    %v1878 = vunpack.c.l.b16 %v1366
    %v1879 = vunpack.c.l.b16 %v1367
    %v1880 = vunpack.c.l.b16 %v1368
    %v1881 = vunpack.c.l.b16 %v1369
    %v1882 = vunpack.c.l.b16 %v1370
    %v1883 = vunpack.c.l.b16 %v1371
    %v1884 = vunpack.c.l.b16 %v1372
    %v1885 = vunpack.c.l.b16 %v1373
    %v1886 = vunpack.c.l.b16 %v1374
    %v1887 = vunpack.c.l.b16 %v1375
    %v1888 = vunpack.c.l.b16 %v1376
    %v1889 = vunpack.c.l.b16 %v1377
    %v1890 = vunpack.c.l.b16 %v1378
    %v1891 = vunpack.c.l.b16 %v1379
    %v1892 = vunpack.c.l.b16 %v1380
    %v1893 = vunpack.c.l.b16 %v1381
    %v1894 = vunpack.c.l.b16 %v1382
    %v1895 = vunpack.c.l.b16 %v1383
    %v1896 = vunpack.c.l.b16 %v1384
    %v1897 = vunpack.c.l.b16 %v1385
    %v1898 = vunpack.c.l.b16 %v1386
    %v1899 = vunpack.c.l.b16 %v1387
    %v1900 = vunpack.c.l.b16 %v1388
    %v1901 = vunpack.c.l.b16 %v1389
    %v1902 = vunpack.c.l.b16 %v1390
    %v1903 = vunpack.c.l.b16 %v1391
    %v1904 = vunpack.c.l.b16 %v1392
    %v1905 = vunpack.c.l.b16 %v1393
    %v1906 = vunpack.c.l.b16 %v1394
    %v1907 = vunpack.c.l.b16 %v1395
    %v1908 = vunpack.c.l.b16 %v1396
    %v1909 = vunpack.c.l.b16 %v1397
    %v1910 = vunpack.c.l.b16 %v1398
    %v1911 = vunpack.c.l.b16 %v1399
    %v1912 = vunpack.c.l.b16 %v1400
    %v1913 = vunpack.c.l.b16 %v1401
    %v1914 = vunpack.c.l.b16 %v1402
    %v1915 = vunpack.c.l.b16 %v1403
    %v1916 = vunpack.c.l.b16 %v1404
    %v1917 = vunpack.c.l.b16 %v1405
    %v1918 = vunpack.c.l.b16 %v1406
    %v1919 = vunpack.c.l.b16 %v1407
    %v1920 = vunpack.c.l.b16 %v1408
    %v1921 = vunpack.c.l.b16 %v1409
    %v1922 = vunpack.c.l.b16 %v1410
    %v1923 = vunpack.c.l.b16 %v1411
    %v1924 = vunpack.c.l.b16 %v1412
    %v1925 = vunpack.c.l.b16 %v1413
    %v1926 = vunpack.c.l.b16 %v1414
    %v1927 = vunpack.c.l.b16 %v1415
    %v1928 = vunpack.c.l.b16 %v1416
    %v1929 = vunpack.c.l.b16 %v1417
    %v1930 = vunpack.c.l.b16 %v1418
    %v1931 = vunpack.c.l.b16 %v1419
    %v1932 = vunpack.c.l.b16 %v1420
    %v1933 = vunpack.c.l.b16 %v1421
    %v1934 = vunpack.c.l.b16 %v1422
    %v1935 = vunpack.c.l.b16 %v1423
    %v1936 = vunpack.c.l.b16 %v1424
    %v1937 = vunpack.c.l.b16 %v1425
    %v1938 = vunpack.c.l.b16 %v1426
    %v1939 = vunpack.c.l.b16 %v1427
    %v1940 = vunpack.c.l.b16 %v1428
    %v1941 = vunpack.c.l.b16 %v1429
    %v1942 = vunpack.c.l.b16 %v1430
    %v1943 = vunpack.c.l.b16 %v1431
    %v1944 = vunpack.c.l.b16 %v1432
    %v1945 = vunpack.c.l.b16 %v1433
    %v1946 = vunpack.c.l.b16 %v1434
    %v1947 = vunpack.c.l.b16 %v1435
    %v1948 = vunpack.c.l.b16 %v1436
    %v1949 = vunpack.c.l.b16 %v1437
    %v1950 = vunpack.c.l.b16 %v1438
    %v1951 = vunpack.c.l.b16 %v1439
    %v1952 = vunpack.c.l.b16 %v1440
    %v1953 = vunpack.c.l.b16 %v1441
    %v1954 = vunpack.c.l.b16 %v1442
    %v1955 = vunpack.c.l.b16 %v1443
    %v1956 = vunpack.c.l.b16 %v1444
    %v1957 = vunpack.c.l.b16 %v1445
    %v1958 = vunpack.c.l.b16 %v1446
    %v1959 = vunpack.c.l.b16 %v1447
    %v1960 = vunpack.c.l.b16 %v1448
    %v1961 = vunpack.c.l.b16 %v1449
    %v1962 = vunpack.c.l.b16 %v1450
    %v1963 = vunpack.c.l.b16 %v1451
    %v1964 = vunpack.c.l.b16 %v1452
    %v1965 = vunpack.c.l.b16 %v1453
    %v1966 = vunpack.c.l.b16 %v1454
    %v1967 = vunpack.c.l.b16 %v1455
    %v1968 = vunpack.c.l.b16 %v1456
    %v1969 = vunpack.c.l.b16 %v1457
    %v1970 = vunpack.c.l.b16 %v1458
    %v1971 = vunpack.c.l.b16 %v1459
    %v1972 = vunpack.c.l.b16 %v1460
    %v1973 = vunpack.c.l.b16 %v1461
    %v1974 = vunpack.c.l.b16 %v1462
    %v1975 = vunpack.c.l.b16 %v1463
    %v1976 = vunpack.c.l.b16 %v1464
    %v1977 = vunpack.c.l.b16 %v1465
    %v1978 = vunpack.c.l.b16 %v1466
    %v1979 = vunpack.c.l.b16 %v1467
    %v1980 = vunpack.c.l.b16 %v1468
    %v1981 = vunpack.c.l.b16 %v1469
    %v1982 = vunpack.c.l.b16 %v1470
    %v1983 = vunpack.c.l.b16 %v1471
    %v1984 = vunpack.c.l.b16 %v1472
    %v1985 = vunpack.c.l.b16 %v1473
    %v1986 = vunpack.c.l.b16 %v1474
    %v1987 = vunpack.c.l.b16 %v1475
    %v1988 = vunpack.c.l.b16 %v1476
    %v1989 = vunpack.c.l.b16 %v1477
    %v1990 = vunpack.c.l.b16 %v1478
    %v1991 = vunpack.c.l.b16 %v1479
    %v1992 = vunpack.c.l.b16 %v1480
    %v1993 = vunpack.c.l.b16 %v1481
    %v1994 = vunpack.c.l.b16 %v1482
    %v1995 = vunpack.c.l.b16 %v1483
    %v1996 = vpack.c.b16 %v1741, %v1740
    %v1997 = vpack.c.b16 %v1743, %v1742
    %v1998 = vpack.c.b16 %v1745, %v1744
    %v1999 = vpack.c.b16 %v1747, %v1746
    %v2000 = vpack.c.b16 %v1749, %v1748
    %v2001 = vpack.c.b16 %v1751, %v1750
    %v2002 = vpack.c.b16 %v1753, %v1752
    %v2003 = vpack.c.b16 %v1755, %v1754
    %v2004 = vpack.c.b16 %v1757, %v1756
    %v2005 = vpack.c.b16 %v1759, %v1758
    %v2006 = vpack.c.b16 %v1761, %v1760
    %v2007 = vpack.c.b16 %v1763, %v1762
    %v2008 = vpack.c.b16 %v1765, %v1764
    %v2009 = vpack.c.b16 %v1767, %v1766
    %v2010 = vpack.c.b16 %v1769, %v1768
    %v2011 = vpack.c.b16 %v1771, %v1770
    %v2012 = vpack.c.b16 %v1773, %v1772
    %v2013 = vpack.c.b16 %v1775, %v1774
    %v2014 = vpack.c.b16 %v1777, %v1776
    %v2015 = vpack.c.b16 %v1779, %v1778
    %v2016 = vpack.c.b16 %v1781, %v1780
    %v2017 = vpack.c.b16 %v1783, %v1782
    %v2018 = vpack.c.b16 %v1785, %v1784
    %v2019 = vpack.c.b16 %v1787, %v1786
    %v2020 = vpack.c.b16 %v1789, %v1788
    %v2021 = vpack.c.b16 %v1791, %v1790
    %v2022 = vpack.c.b16 %v1793, %v1792
    %v2023 = vpack.c.b16 %v1795, %v1794
    %v2024 = vpack.c.b16 %v1797, %v1796
    %v2025 = vpack.c.b16 %v1799, %v1798
    %v2026 = vpack.c.b16 %v1801, %v1800
    %v2027 = vpack.c.b16 %v1803, %v1802
    %v2028 = vpack.c.b16 %v1805, %v1804
    %v2029 = vpack.c.b16 %v1807, %v1806
    %v2030 = vpack.c.b16 %v1809, %v1808
    %v2031 = vpack.c.b16 %v1811, %v1810
    %v2032 = vpack.c.b16 %v1813, %v1812
    %v2033 = vpack.c.b16 %v1815, %v1814
    %v2034 = vpack.c.b16 %v1817, %v1816
    %v2035 = vpack.c.b16 %v1819, %v1818
    %v2036 = vpack.c.b16 %v1821, %v1820
    %v2037 = vpack.c.b16 %v1823, %v1822
    %v2038 = vpack.c.b16 %v1825, %v1824
    %v2039 = vpack.c.b16 %v1827, %v1826
    %v2040 = vpack.c.b16 %v1829, %v1828
    %v2041 = vpack.c.b16 %v1831, %v1830
    %v2042 = vpack.c.b16 %v1833, %v1832
    %v2043 = vpack.c.b16 %v1835, %v1834
    %v2044 = vpack.c.b16 %v1837, %v1836
    %v2045 = vpack.c.b16 %v1839, %v1838
    %v2046 = vpack.c.b16 %v1841, %v1840
    %v2047 = vpack.c.b16 %v1843, %v1842
    %v2048 = vpack.c.b16 %v1845, %v1844
    %v2049 = vpack.c.b16 %v1847, %v1846
    %v2050 = vpack.c.b16 %v1849, %v1848
    %v2051 = vpack.c.b16 %v1851, %v1850
    %v2052 = vpack.c.b16 %v1853, %v1852
    %v2053 = vpack.c.b16 %v1855, %v1854
    %v2054 = vpack.c.b16 %v1857, %v1856
    %v2055 = vpack.c.b16 %v1859, %v1858
    %v2056 = vpack.c.b16 %v1861, %v1860
    %v2057 = vpack.c.b16 %v1863, %v1862
    %v2058 = vpack.c.b16 %v1865, %v1864
    %v2059 = vpack.c.b16 %v1867, %v1866
    %v2060 = vpack.c.b16 %v1869, %v1868
    %v2061 = vpack.c.b16 %v1871, %v1870
    %v2062 = vpack.c.b16 %v1873, %v1872
    %v2063 = vpack.c.b16 %v1875, %v1874
    %v2064 = vpack.c.b16 %v1877, %v1876
    %v2065 = vpack.c.b16 %v1879, %v1878
    %v2066 = vpack.c.b16 %v1881, %v1880
    %v2067 = vpack.c.b16 %v1883, %v1882
    %v2068 = vpack.c.b16 %v1885, %v1884
    %v2069 = vpack.c.b16 %v1887, %v1886
    %v2070 = vpack.c.b16 %v1889, %v1888
    %v2071 = vpack.c.b16 %v1891, %v1890
    %v2072 = vpack.c.b16 %v1893, %v1892
    %v2073 = vpack.c.b16 %v1895, %v1894
    %v2074 = vpack.c.b16 %v1897, %v1896
    %v2075 = vpack.c.b16 %v1899, %v1898
    %v2076 = vpack.c.b16 %v1901, %v1900
    %v2077 = vpack.c.b16 %v1903, %v1902
    %v2078 = vpack.c.b16 %v1905, %v1904
    %v2079 = vpack.c.b16 %v1907, %v1906
    %v2080 = vpack.c.b16 %v1909, %v1908
    %v2081 = vpack.c.b16 %v1911, %v1910
    %v2082 = vpack.c.b16 %v1913, %v1912
    %v2083 = vpack.c.b16 %v1915, %v1914
    %v2084 = vpack.c.b16 %v1917, %v1916
    %v2085 = vpack.c.b16 %v1919, %v1918
    %v2086 = vpack.c.b16 %v1921, %v1920
    %v2087 = vpack.c.b16 %v1923, %v1922
    %v2088 = vpack.c.b16 %v1925, %v1924
    %v2089 = vpack.c.b16 %v1927, %v1926
    %v2090 = vpack.c.b16 %v1929, %v1928
    %v2091 = vpack.c.b16 %v1931, %v1930
    %v2092 = vpack.c.b16 %v1933, %v1932
    %v2093 = vpack.c.b16 %v1935, %v1934
    %v2094 = vpack.c.b16 %v1937, %v1936
    %v2095 = vpack.c.b16 %v1939, %v1938
    %v2096 = vpack.c.b16 %v1941, %v1940
    %v2097 = vpack.c.b16 %v1943, %v1942
    %v2098 = vpack.c.b16 %v1945, %v1944
    %v2099 = vpack.c.b16 %v1947, %v1946
    %v2100 = vpack.c.b16 %v1949, %v1948
    %v2101 = vpack.c.b16 %v1951, %v1950
    %v2102 = vpack.c.b16 %v1953, %v1952
    %v2103 = vpack.c.b16 %v1955, %v1954
    %v2104 = vpack.c.b16 %v1957, %v1956
    %v2105 = vpack.c.b16 %v1959, %v1958
    %v2106 = vpack.c.b16 %v1961, %v1960
    %v2107 = vpack.c.b16 %v1963, %v1962
    %v2108 = vpack.c.b16 %v1965, %v1964
    %v2109 = vpack.c.b16 %v1967, %v1966
    %v2110 = vpack.c.b16 %v1969, %v1968
    %v2111 = vpack.c.b16 %v1971, %v1970
    %v2112 = vpack.c.b16 %v1973, %v1972
    %v2113 = vpack.c.b16 %v1975, %v1974
    %v2114 = vpack.c.b16 %v1977, %v1976
    %v2115 = vpack.c.b16 %v1979, %v1978
    %v2116 = vpack.c.b16 %v1981, %v1980
    %v2117 = vpack.c.b16 %v1983, %v1982
    %v2118 = vpack.c.b16 %v1985, %v1984
    %v2119 = vpack.c.b16 %v1987, %v1986
    %v2120 = vpack.c.b16 %v1989, %v1988
    %v2121 = vpack.c.b16 %v1991, %v1990
    %v2122 = vpack.c.b16 %v1993, %v1992
    %v2123 = vpack.c.b16 %v1995, %v1994
    %2252 = vmatprep.subr.bf16.mxu0 0
    %2253 = vmatpush1.bf16.msra.mxu0 %v1996
    %2254 = vmatprep.subr.bf16.mxu0 0
    %2255 = vmatpush1.bf16.msra.mxu0 %v1997
    %2256 = vmatprep.subr.bf16.mxu0 0
    %2257 = vmatpush1.bf16.msra.mxu0 %v1998
    %2258 = vmatprep.subr.bf16.mxu0 0
    %2259 = vmatpush1.bf16.msra.mxu0 %v1999
    %2260 = vmatprep.subr.bf16.mxu0 0
    %2261 = vmatpush1.bf16.msra.mxu0 %v2000
    %2262 = vmatprep.subr.bf16.mxu0 0
    %2263 = vmatpush1.bf16.msra.mxu0 %v2001
    %2264 = vmatprep.subr.bf16.mxu0 0
    %2265 = vmatpush1.bf16.msra.mxu0 %v2002
    %2266 = vmatprep.subr.bf16.mxu0 0
    %2267 = vmatpush1.bf16.msra.mxu0 %v2003
    %2268 = vmatprep.subr.bf16.mxu0 0
    %2269 = vmatpush1.bf16.msra.mxu0 %v2004
    %2270 = vmatprep.subr.bf16.mxu0 0
    %2271 = vmatpush1.bf16.msra.mxu0 %v2005
    %2272 = vmatprep.subr.bf16.mxu0 0
    %2273 = vmatpush1.bf16.msra.mxu0 %v2006
    %2274 = vmatprep.subr.bf16.mxu0 0
    %2275 = vmatpush1.bf16.msra.mxu0 %v2007
    %2276 = vmatprep.subr.bf16.mxu0 0
    %2277 = vmatpush1.bf16.msra.mxu0 %v2008
    %2278 = vmatprep.subr.bf16.mxu0 0
    %2279 = vmatpush1.bf16.msra.mxu0 %v2009
    %2280 = vmatprep.subr.bf16.mxu0 0
    %2281 = vmatpush1.bf16.msra.mxu0 %v2010
    %2282 = vmatprep.subr.bf16.mxu0 0
    %2283 = vmatpush1.bf16.msra.mxu0 %v2011
    %2284 = vmatprep.mubr.bf16.mxu0 %v1197
    %2285 = vmatmul.mubr.bf16.gmra.mrb[0].mxu0 %v1196
    %v2286 = vpop.f32.mrb[0].mxu0
    %v2287 = vadd.f32 0.0, %v2286
    %v2288 = vpop.f32.mrb[0].mxu0
    %v2289 = vpop.f32.mrb[0].mxu0
    %v2290 = vadd.f32 0.0, %v2289
    %v2291 = vpop.f32.mrb[0].mxu0
    %2292 = vdwg.mxu0
    %2293 = vmatprep.subr.bf16.mxu0 0
    %2294 = vmatpush1.bf16.msra.mxu0 %v2012
    %2295 = vmatprep.subr.bf16.mxu0 0
    %2296 = vmatpush1.bf16.msra.mxu0 %v2013
    %2297 = vmatprep.subr.bf16.mxu0 0
    %2298 = vmatpush1.bf16.msra.mxu0 %v2014
    %2299 = vmatprep.subr.bf16.mxu0 0
    %2300 = vmatpush1.bf16.msra.mxu0 %v2015
    %2301 = vmatprep.subr.bf16.mxu0 0
    %2302 = vmatpush1.bf16.msra.mxu0 %v2016
    %2303 = vmatprep.subr.bf16.mxu0 0
    %2304 = vmatpush1.bf16.msra.mxu0 %v2017
    %2305 = vmatprep.subr.bf16.mxu0 0
    %2306 = vmatpush1.bf16.msra.mxu0 %v2018
    %2307 = vmatprep.subr.bf16.mxu0 0
    %2308 = vmatpush1.bf16.msra.mxu0 %v2019
    %2309 = vmatprep.subr.bf16.mxu0 0
    %2310 = vmatpush1.bf16.msra.mxu0 %v2020
    %2311 = vmatprep.subr.bf16.mxu0 0
    %2312 = vmatpush1.bf16.msra.mxu0 %v2021
    %2313 = vmatprep.subr.bf16.mxu0 0
    %2314 = vmatpush1.bf16.msra.mxu0 %v2022
    %2315 = vmatprep.subr.bf16.mxu0 0
    %2316 = vmatpush1.bf16.msra.mxu0 %v2023
    %2317 = vmatprep.subr.bf16.mxu0 0
    %2318 = vmatpush1.bf16.msra.mxu0 %v2024
    %2319 = vmatprep.subr.bf16.mxu0 0
    %2320 = vmatpush1.bf16.msra.mxu0 %v2025
    %2321 = vmatprep.subr.bf16.mxu0 0
    %2322 = vmatpush1.bf16.msra.mxu0 %v2026
    %2323 = vmatprep.subr.bf16.mxu0 0
    %2324 = vmatpush1.bf16.msra.mxu0 %v2027
    %2325 = vmatprep.mubr.bf16.mxu0 %v1199
    %2326 = vmatmul.mubr.bf16.gmra.mrb[0].mxu0 %v1198
    %v2327 = vpop.f32.mrb[0].mxu0
    %v2328 = vadd.f32 %v2287, %v2327
    %v2329 = vpop.f32.mrb[0].mxu0
    %v2330 = vpop.f32.mrb[0].mxu0
    %v2331 = vadd.f32 %v2290, %v2330
    %v2332 = vpop.f32.mrb[0].mxu0
    %2333 = vdwg.mxu0
    %2334 = vmatprep.subr.bf16.mxu0 0
    %2335 = vmatpush1.bf16.msra.mxu0 %v2028
    %2336 = vmatprep.subr.bf16.mxu0 0
    %2337 = vmatpush1.bf16.msra.mxu0 %v2029
    %2338 = vmatprep.subr.bf16.mxu0 0
    %2339 = vmatpush1.bf16.msra.mxu0 %v2030
    %2340 = vmatprep.subr.bf16.mxu0 0
    %2341 = vmatpush1.bf16.msra.mxu0 %v2031
    %2342 = vmatprep.subr.bf16.mxu0 0
    %2343 = vmatpush1.bf16.msra.mxu0 %v2032
    %2344 = vmatprep.subr.bf16.mxu0 0
    %2345 = vmatpush1.bf16.msra.mxu0 %v2033
    %2346 = vmatprep.subr.bf16.mxu0 0
    %2347 = vmatpush1.bf16.msra.mxu0 %v2034
    %2348 = vmatprep.subr.bf16.mxu0 0
    %2349 = vmatpush1.bf16.msra.mxu0 %v2035
    %2350 = vmatprep.subr.bf16.mxu0 0
    %2351 = vmatpush1.bf16.msra.mxu0 %v2036
    %2352 = vmatprep.subr.bf16.mxu0 0
    %2353 = vmatpush1.bf16.msra.mxu0 %v2037
    %2354 = vmatprep.subr.bf16.mxu0 0
    %2355 = vmatpush1.bf16.msra.mxu0 %v2038
    %2356 = vmatprep.subr.bf16.mxu0 0
    %2357 = vmatpush1.bf16.msra.mxu0 %v2039
    %2358 = vmatprep.subr.bf16.mxu0 0
    %2359 = vmatpush1.bf16.msra.mxu0 %v2040
    %2360 = vmatprep.subr.bf16.mxu0 0
    %2361 = vmatpush1.bf16.msra.mxu0 %v2041
    %2362 = vmatprep.subr.bf16.mxu0 0
    %2363 = vmatpush1.bf16.msra.mxu0 %v2042
    %2364 = vmatprep.subr.bf16.mxu0 0
    %2365 = vmatpush1.bf16.msra.mxu0 %v2043
    %2366 = vmatprep.mubr.bf16.mxu0 %v1201
    %2367 = vmatmul.mubr.bf16.gmra.mrb[0].mxu0 %v1200
    %v2368 = vpop.f32.mrb[0].mxu0
    %v2369 = vadd.f32 %v2328, %v2368
    %v2370 = vpop.f32.mrb[0].mxu0
    %v2371 = vpop.f32.mrb[0].mxu0
    %v2372 = vadd.f32 %v2331, %v2371
    %v2373 = vpop.f32.mrb[0].mxu0
    %2374 = vdwg.mxu0
    %2375 = vmatprep.subr.bf16.mxu0 0
    %2376 = vmatpush1.bf16.msra.mxu0 %v2044
    %2377 = vmatprep.subr.bf16.mxu0 0
    %2378 = vmatpush1.bf16.msra.mxu0 %v2045
    %2379 = vmatprep.subr.bf16.mxu0 0
    %2380 = vmatpush1.bf16.msra.mxu0 %v2046
    %2381 = vmatprep.subr.bf16.mxu0 0
    %2382 = vmatpush1.bf16.msra.mxu0 %v2047
    %2383 = vmatprep.subr.bf16.mxu0 0
    %2384 = vmatpush1.bf16.msra.mxu0 %v2048
    %2385 = vmatprep.subr.bf16.mxu0 0
    %2386 = vmatpush1.bf16.msra.mxu0 %v2049
    %2387 = vmatprep.subr.bf16.mxu0 0
    %2388 = vmatpush1.bf16.msra.mxu0 %v2050
    %2389 = vmatprep.subr.bf16.mxu0 0
    %2390 = vmatpush1.bf16.msra.mxu0 %v2051
    %2391 = vmatprep.subr.bf16.mxu0 0
    %2392 = vmatpush1.bf16.msra.mxu0 %v2052
    %2393 = vmatprep.subr.bf16.mxu0 0
    %2394 = vmatpush1.bf16.msra.mxu0 %v2053
    %2395 = vmatprep.subr.bf16.mxu0 0
    %2396 = vmatpush1.bf16.msra.mxu0 %v2054
    %2397 = vmatprep.subr.bf16.mxu0 0
    %2398 = vmatpush1.bf16.msra.mxu0 %v2055
    %2399 = vmatprep.subr.bf16.mxu0 0
    %2400 = vmatpush1.bf16.msra.mxu0 %v2056
    %2401 = vmatprep.subr.bf16.mxu0 0
    %2402 = vmatpush1.bf16.msra.mxu0 %v2057
    %2403 = vmatprep.subr.bf16.mxu0 0
    %2404 = vmatpush1.bf16.msra.mxu0 %v2058
    %2405 = vmatprep.subr.bf16.mxu0 0
    %2406 = vmatpush1.bf16.msra.mxu0 %v2059
    %2407 = vmatprep.mubr.bf16.mxu0 %v1203
    %2408 = vmatmul.mubr.bf16.gmra.mrb[0].mxu0 %v1202
    %v2409 = vpop.f32.mrb[0].mxu0
    %v2410 = vadd.f32 %v2369, %v2409
    %v2411 = vpop.f32.mrb[0].mxu0
    %v2412 = vpop.f32.mrb[0].mxu0
    %v2413 = vadd.f32 %v2372, %v2412
    %v2414 = vpop.f32.mrb[0].mxu0
    %2415 = vdwg.mxu0
    %2416 = vmatprep.subr.bf16.mxu0 0
    %2417 = vmatpush1.bf16.msra.mxu0 %v2060
    %2418 = vmatprep.subr.bf16.mxu0 0
    %2419 = vmatpush1.bf16.msra.mxu0 %v2061
    %2420 = vmatprep.subr.bf16.mxu0 0
    %2421 = vmatpush1.bf16.msra.mxu0 %v2062
    %2422 = vmatprep.subr.bf16.mxu0 0
    %2423 = vmatpush1.bf16.msra.mxu0 %v2063
    %2424 = vmatprep.subr.bf16.mxu0 0
    %2425 = vmatpush1.bf16.msra.mxu0 %v2064
    %2426 = vmatprep.subr.bf16.mxu0 0
    %2427 = vmatpush1.bf16.msra.mxu0 %v2065
    %2428 = vmatprep.subr.bf16.mxu0 0
    %2429 = vmatpush1.bf16.msra.mxu0 %v2066
    %2430 = vmatprep.subr.bf16.mxu0 0
    %2431 = vmatpush1.bf16.msra.mxu0 %v2067
    %2432 = vmatprep.subr.bf16.mxu0 0
    %2433 = vmatpush1.bf16.msra.mxu0 %v2068
    %2434 = vmatprep.subr.bf16.mxu0 0
    %2435 = vmatpush1.bf16.msra.mxu0 %v2069
    %2436 = vmatprep.subr.bf16.mxu0 0
    %2437 = vmatpush1.bf16.msra.mxu0 %v2070
    %2438 = vmatprep.subr.bf16.mxu0 0
    %2439 = vmatpush1.bf16.msra.mxu0 %v2071
    %2440 = vmatprep.subr.bf16.mxu0 0
    %2441 = vmatpush1.bf16.msra.mxu0 %v2072
    %2442 = vmatprep.subr.bf16.mxu0 0
    %2443 = vmatpush1.bf16.msra.mxu0 %v2073
    %2444 = vmatprep.subr.bf16.mxu0 0
    %2445 = vmatpush1.bf16.msra.mxu0 %v2074
    %2446 = vmatprep.subr.bf16.mxu0 0
    %2447 = vmatpush1.bf16.msra.mxu0 %v2075
    %2448 = vmatprep.mubr.bf16.mxu0 %v1205
    %2449 = vmatmul.mubr.bf16.gmra.mrb[0].mxu0 %v1204
    %v2450 = vpop.f32.mrb[0].mxu0
    %v2451 = vadd.f32 %v2410, %v2450
    %v2452 = vpop.f32.mrb[0].mxu0
    %v2453 = vpop.f32.mrb[0].mxu0
    %v2454 = vadd.f32 %v2413, %v2453
    %v2455 = vpop.f32.mrb[0].mxu0
    %2456 = vdwg.mxu0
    %2457 = vmatprep.subr.bf16.mxu0 0
    %2458 = vmatpush1.bf16.msra.mxu0 %v2076
    %2459 = vmatprep.subr.bf16.mxu0 0
    %2460 = vmatpush1.bf16.msra.mxu0 %v2077
    %2461 = vmatprep.subr.bf16.mxu0 0
    %2462 = vmatpush1.bf16.msra.mxu0 %v2078
    %2463 = vmatprep.subr.bf16.mxu0 0
    %2464 = vmatpush1.bf16.msra.mxu0 %v2079
    %2465 = vmatprep.subr.bf16.mxu0 0
    %2466 = vmatpush1.bf16.msra.mxu0 %v2080
    %2467 = vmatprep.subr.bf16.mxu0 0
    %2468 = vmatpush1.bf16.msra.mxu0 %v2081
    %2469 = vmatprep.subr.bf16.mxu0 0
    %2470 = vmatpush1.bf16.msra.mxu0 %v2082
    %2471 = vmatprep.subr.bf16.mxu0 0
    %2472 = vmatpush1.bf16.msra.mxu0 %v2083
    %2473 = vmatprep.subr.bf16.mxu0 0
    %2474 = vmatpush1.bf16.msra.mxu0 %v2084
    %2475 = vmatprep.subr.bf16.mxu0 0
    %2476 = vmatpush1.bf16.msra.mxu0 %v2085
    %2477 = vmatprep.subr.bf16.mxu0 0
    %2478 = vmatpush1.bf16.msra.mxu0 %v2086
    %2479 = vmatprep.subr.bf16.mxu0 0
    %2480 = vmatpush1.bf16.msra.mxu0 %v2087
    %2481 = vmatprep.subr.bf16.mxu0 0
    %2482 = vmatpush1.bf16.msra.mxu0 %v2088
    %2483 = vmatprep.subr.bf16.mxu0 0
    %2484 = vmatpush1.bf16.msra.mxu0 %v2089
    %2485 = vmatprep.subr.bf16.mxu0 0
    %2486 = vmatpush1.bf16.msra.mxu0 %v2090
    %2487 = vmatprep.subr.bf16.mxu0 0
    %2488 = vmatpush1.bf16.msra.mxu0 %v2091
    %2489 = vmatprep.mubr.bf16.mxu0 %v1207
    %2490 = vmatmul.mubr.bf16.gmra.mrb[0].mxu0 %v1206
    %v2491 = vpop.f32.mrb[0].mxu0
    %v2492 = vadd.f32 %v2451, %v2491
    %v2493 = vpop.f32.mrb[0].mxu0
    %v2494 = vpop.f32.mrb[0].mxu0
    %v2495 = vadd.f32 %v2454, %v2494
    %v2496 = vpop.f32.mrb[0].mxu0
    %2497 = vdwg.mxu0
    %2498 = vmatprep.subr.bf16.mxu0 0
    %2499 = vmatpush1.bf16.msra.mxu0 %v2092
    %2500 = vmatprep.subr.bf16.mxu0 0
    %2501 = vmatpush1.bf16.msra.mxu0 %v2093
    %2502 = vmatprep.subr.bf16.mxu0 0
    %2503 = vmatpush1.bf16.msra.mxu0 %v2094
    %2504 = vmatprep.subr.bf16.mxu0 0
    %2505 = vmatpush1.bf16.msra.mxu0 %v2095
    %2506 = vmatprep.subr.bf16.mxu0 0
    %2507 = vmatpush1.bf16.msra.mxu0 %v2096
    %2508 = vmatprep.subr.bf16.mxu0 0
    %2509 = vmatpush1.bf16.msra.mxu0 %v2097
    %2510 = vmatprep.subr.bf16.mxu0 0
    %2511 = vmatpush1.bf16.msra.mxu0 %v2098
    %2512 = vmatprep.subr.bf16.mxu0 0
    %2513 = vmatpush1.bf16.msra.mxu0 %v2099
    %2514 = vmatprep.subr.bf16.mxu0 0
    %2515 = vmatpush1.bf16.msra.mxu0 %v2100
    %2516 = vmatprep.subr.bf16.mxu0 0
    %2517 = vmatpush1.bf16.msra.mxu0 %v2101
    %2518 = vmatprep.subr.bf16.mxu0 0
    %2519 = vmatpush1.bf16.msra.mxu0 %v2102
    %2520 = vmatprep.subr.bf16.mxu0 0
    %2521 = vmatpush1.bf16.msra.mxu0 %v2103
    %2522 = vmatprep.subr.bf16.mxu0 0
    %2523 = vmatpush1.bf16.msra.mxu0 %v2104
    %2524 = vmatprep.subr.bf16.mxu0 0
    %2525 = vmatpush1.bf16.msra.mxu0 %v2105
    %2526 = vmatprep.subr.bf16.mxu0 0
    %2527 = vmatpush1.bf16.msra.mxu0 %v2106
    %2528 = vmatprep.subr.bf16.mxu0 0
    %2529 = vmatpush1.bf16.msra.mxu0 %v2107
    %2530 = vmatprep.mubr.bf16.mxu0 %v1209
    %2531 = vmatmul.mubr.bf16.gmra.mrb[0].mxu0 %v1208
    %v2532 = vpop.f32.mrb[0].mxu0
    %v2533 = vadd.f32 %v2492, %v2532
    %v2534 = vpop.f32.mrb[0].mxu0
    %v2535 = vpop.f32.mrb[0].mxu0
    %v2536 = vadd.f32 %v2495, %v2535
    %v2537 = vpop.f32.mrb[0].mxu0
    %2538 = vdwg.mxu0
    %2539 = vmatprep.subr.bf16.mxu0 0
    %2540 = vmatpush1.bf16.msra.mxu0 %v2108
    %2541 = vmatprep.subr.bf16.mxu0 0
    %2542 = vmatpush1.bf16.msra.mxu0 %v2109
    %2543 = vmatprep.subr.bf16.mxu0 0
    %2544 = vmatpush1.bf16.msra.mxu0 %v2110
    %2545 = vmatprep.subr.bf16.mxu0 0
    %2546 = vmatpush1.bf16.msra.mxu0 %v2111
    %2547 = vmatprep.subr.bf16.mxu0 0
    %2548 = vmatpush1.bf16.msra.mxu0 %v2112
    %2549 = vmatprep.subr.bf16.mxu0 0
    %2550 = vmatpush1.bf16.msra.mxu0 %v2113
    %2551 = vmatprep.subr.bf16.mxu0 0
    %2552 = vmatpush1.bf16.msra.mxu0 %v2114
    %2553 = vmatprep.subr.bf16.mxu0 0
    %2554 = vmatpush1.bf16.msra.mxu0 %v2115
    %2555 = vmatprep.subr.bf16.mxu0 0
    %2556 = vmatpush1.bf16.msra.mxu0 %v2116
    %2557 = vmatprep.subr.bf16.mxu0 0
    %2558 = vmatpush1.bf16.msra.mxu0 %v2117
    %2559 = vmatprep.subr.bf16.mxu0 0
    %2560 = vmatpush1.bf16.msra.mxu0 %v2118
    %2561 = vmatprep.subr.bf16.mxu0 0
    %2562 = vmatpush1.bf16.msra.mxu0 %v2119
    %2563 = vmatprep.subr.bf16.mxu0 0
    %2564 = vmatpush1.bf16.msra.mxu0 %v2120
    %2565 = vmatprep.subr.bf16.mxu0 0
    %2566 = vmatpush1.bf16.msra.mxu0 %v2121
    %2567 = vmatprep.subr.bf16.mxu0 0
    %2568 = vmatpush1.bf16.msra.mxu0 %v2122
    %2569 = vmatprep.subr.bf16.mxu0 0
    %2570 = vmatpush1.bf16.msra.mxu0 %v2123
    %2571 = vmatprep.mubr.bf16.mxu0 %v1211
    %2572 = vmatmul.mubr.bf16.gmra.mrb[0].mxu0 %v1210
    %v2573 = vpop.f32.mrb[0].mxu0
    %v2574 = vadd.f32 %v2533, %v2573
    %v2575 = vpop.f32.mrb[0].mxu0
    %v2576 = vpop.f32.mrb[0].mxu0
    %v2577 = vadd.f32 %v2536, %v2576
    %v2578 = vpop.f32.mrb[0].mxu0
    %2579 = vdwg.mxu0
    %s2580 = scalar_lea.vmem %s5, 1024
    %v2581 = vld [vmem:[%s2580] sm:$0xf]
    %v2582 = vld [vmem:[%s2580 + $0x4] sm:$0xf]
    %v2583 = vld [vmem:[%s2580 + $0x8] sm:$0xf]
    %v2584 = vld [vmem:[%s2580 + $0xc] sm:$0xf]
    %v2585 = vld [vmem:[%s2580 + $0x10] sm:$0xf]
    %v2586 = vld [vmem:[%s2580 + $0x14] sm:$0xf]
    %v2587 = vld [vmem:[%s2580 + $0x18] sm:$0xf]
    %v2588 = vld [vmem:[%s2580 + $0x1c] sm:$0xf]
    %v2589 = vld [vmem:[%s2580 + $0x20] sm:$0xf]
    %v2590 = vld [vmem:[%s2580 + $0x24] sm:$0xf]
    %v2591 = vld [vmem:[%s2580 + $0x28] sm:$0xf]
    %v2592 = vld [vmem:[%s2580 + $0x2c] sm:$0xf]
    %v2593 = vld [vmem:[%s2580 + $0x30] sm:$0xf]
    %v2594 = vld [vmem:[%s2580 + $0x34] sm:$0xf]
    %v2595 = vld [vmem:[%s2580 + $0x38] sm:$0xf]
    %v2596 = vld [vmem:[%s2580 + $0x3c] sm:$0xf]
    %v2597 = vld [vmem:[%s2580 + $0x40] sm:$0xf]
    %v2598 = vld [vmem:[%s2580 + $0x44] sm:$0xf]
    %v2599 = vld [vmem:[%s2580 + $0x48] sm:$0xf]
    %v2600 = vld [vmem:[%s2580 + $0x4c] sm:$0xf]
    %v2601 = vld [vmem:[%s2580 + $0x50] sm:$0xf]
    %v2602 = vld [vmem:[%s2580 + $0x54] sm:$0xf]
    %v2603 = vld [vmem:[%s2580 + $0x58] sm:$0xf]
    %v2604 = vld [vmem:[%s2580 + $0x5c] sm:$0xf]
    %v2605 = vld [vmem:[%s2580 + $0x60] sm:$0xf]
    %v2606 = vld [vmem:[%s2580 + $0x64] sm:$0xf]
    %v2607 = vld [vmem:[%s2580 + $0x68] sm:$0xf]
    %v2608 = vld [vmem:[%s2580 + $0x6c] sm:$0xf]
    %v2609 = vld [vmem:[%s2580 + $0x70] sm:$0xf]
    %v2610 = vld [vmem:[%s2580 + $0x74] sm:$0xf]
    %v2611 = vld [vmem:[%s2580 + $0x78] sm:$0xf]
    %v2612 = vld [vmem:[%s2580 + $0x7c] sm:$0xf]
    %v2613 = vld [vmem:[%s2580 + $0x80] sm:$0xf]
    %v2614 = vld [vmem:[%s2580 + $0x84] sm:$0xf]
    %v2615 = vld [vmem:[%s2580 + $0x88] sm:$0xf]
    %v2616 = vld [vmem:[%s2580 + $0x8c] sm:$0xf]
    %v2617 = vld [vmem:[%s2580 + $0x90] sm:$0xf]
    %v2618 = vld [vmem:[%s2580 + $0x94] sm:$0xf]
    %v2619 = vld [vmem:[%s2580 + $0x98] sm:$0xf]
    %v2620 = vld [vmem:[%s2580 + $0x9c] sm:$0xf]
    %v2621 = vld [vmem:[%s2580 + $0xa0] sm:$0xf]
    %v2622 = vld [vmem:[%s2580 + $0xa4] sm:$0xf]
    %v2623 = vld [vmem:[%s2580 + $0xa8] sm:$0xf]
    %v2624 = vld [vmem:[%s2580 + $0xac] sm:$0xf]
    %v2625 = vld [vmem:[%s2580 + $0xb0] sm:$0xf]
    %v2626 = vld [vmem:[%s2580 + $0xb4] sm:$0xf]
    %v2627 = vld [vmem:[%s2580 + $0xb8] sm:$0xf]
    %v2628 = vld [vmem:[%s2580 + $0xbc] sm:$0xf]
    %v2629 = vld [vmem:[%s2580 + $0xc0] sm:$0xf]
    %v2630 = vld [vmem:[%s2580 + $0xc4] sm:$0xf]
    %v2631 = vld [vmem:[%s2580 + $0xc8] sm:$0xf]
    %v2632 = vld [vmem:[%s2580 + $0xcc] sm:$0xf]
    %v2633 = vld [vmem:[%s2580 + $0xd0] sm:$0xf]
    %v2634 = vld [vmem:[%s2580 + $0xd4] sm:$0xf]
    %v2635 = vld [vmem:[%s2580 + $0xd8] sm:$0xf]
    %v2636 = vld [vmem:[%s2580 + $0xdc] sm:$0xf]
    %v2637 = vld [vmem:[%s2580 + $0xe0] sm:$0xf]
    %v2638 = vld [vmem:[%s2580 + $0xe4] sm:$0xf]
    %v2639 = vld [vmem:[%s2580 + $0xe8] sm:$0xf]
    %v2640 = vld [vmem:[%s2580 + $0xec] sm:$0xf]
    %v2641 = vld [vmem:[%s2580 + $0xf0] sm:$0xf]
    %v2642 = vld [vmem:[%s2580 + $0xf4] sm:$0xf]
    %v2643 = vld [vmem:[%s2580 + $0xf8] sm:$0xf]
    %v2644 = vld [vmem:[%s2580 + $0xfc] sm:$0xf]
    %v2645 = vld [vmem:[%s2580 + $0x100] sm:$0xf]
    %v2646 = vld [vmem:[%s2580 + $0x104] sm:$0xf]
    %v2647 = vld [vmem:[%s2580 + $0x108] sm:$0xf]
    %v2648 = vld [vmem:[%s2580 + $0x10c] sm:$0xf]
    %v2649 = vld [vmem:[%s2580 + $0x110] sm:$0xf]
    %v2650 = vld [vmem:[%s2580 + $0x114] sm:$0xf]
    %v2651 = vld [vmem:[%s2580 + $0x118] sm:$0xf]
    %v2652 = vld [vmem:[%s2580 + $0x11c] sm:$0xf]
    %v2653 = vld [vmem:[%s2580 + $0x120] sm:$0xf]
    %v2654 = vld [vmem:[%s2580 + $0x124] sm:$0xf]
    %v2655 = vld [vmem:[%s2580 + $0x128] sm:$0xf]
    %v2656 = vld [vmem:[%s2580 + $0x12c] sm:$0xf]
    %v2657 = vld [vmem:[%s2580 + $0x130] sm:$0xf]
    %v2658 = vld [vmem:[%s2580 + $0x134] sm:$0xf]
    %v2659 = vld [vmem:[%s2580 + $0x138] sm:$0xf]
    %v2660 = vld [vmem:[%s2580 + $0x13c] sm:$0xf]
    %v2661 = vld [vmem:[%s2580 + $0x140] sm:$0xf]
    %v2662 = vld [vmem:[%s2580 + $0x144] sm:$0xf]
    %v2663 = vld [vmem:[%s2580 + $0x148] sm:$0xf]
    %v2664 = vld [vmem:[%s2580 + $0x14c] sm:$0xf]
    %v2665 = vld [vmem:[%s2580 + $0x150] sm:$0xf]
    %v2666 = vld [vmem:[%s2580 + $0x154] sm:$0xf]
    %v2667 = vld [vmem:[%s2580 + $0x158] sm:$0xf]
    %v2668 = vld [vmem:[%s2580 + $0x15c] sm:$0xf]
    %v2669 = vld [vmem:[%s2580 + $0x160] sm:$0xf]
    %v2670 = vld [vmem:[%s2580 + $0x164] sm:$0xf]
    %v2671 = vld [vmem:[%s2580 + $0x168] sm:$0xf]
    %v2672 = vld [vmem:[%s2580 + $0x16c] sm:$0xf]
    %v2673 = vld [vmem:[%s2580 + $0x170] sm:$0xf]
    %v2674 = vld [vmem:[%s2580 + $0x174] sm:$0xf]
    %v2675 = vld [vmem:[%s2580 + $0x178] sm:$0xf]
    %v2676 = vld [vmem:[%s2580 + $0x17c] sm:$0xf]
    %v2677 = vld [vmem:[%s2580 + $0x180] sm:$0xf]
    %v2678 = vld [vmem:[%s2580 + $0x184] sm:$0xf]
    %v2679 = vld [vmem:[%s2580 + $0x188] sm:$0xf]
    %v2680 = vld [vmem:[%s2580 + $0x18c] sm:$0xf]
    %v2681 = vld [vmem:[%s2580 + $0x190] sm:$0xf]
    %v2682 = vld [vmem:[%s2580 + $0x194] sm:$0xf]
    %v2683 = vld [vmem:[%s2580 + $0x198] sm:$0xf]
    %v2684 = vld [vmem:[%s2580 + $0x19c] sm:$0xf]
    %v2685 = vld [vmem:[%s2580 + $0x1a0] sm:$0xf]
    %v2686 = vld [vmem:[%s2580 + $0x1a4] sm:$0xf]
    %v2687 = vld [vmem:[%s2580 + $0x1a8] sm:$0xf]
    %v2688 = vld [vmem:[%s2580 + $0x1ac] sm:$0xf]
    %v2689 = vld [vmem:[%s2580 + $0x1b0] sm:$0xf]
    %v2690 = vld [vmem:[%s2580 + $0x1b4] sm:$0xf]
    %v2691 = vld [vmem:[%s2580 + $0x1b8] sm:$0xf]
    %v2692 = vld [vmem:[%s2580 + $0x1bc] sm:$0xf]
    %v2693 = vld [vmem:[%s2580 + $0x1c0] sm:$0xf]
    %v2694 = vld [vmem:[%s2580 + $0x1c4] sm:$0xf]
    %v2695 = vld [vmem:[%s2580 + $0x1c8] sm:$0xf]
    %v2696 = vld [vmem:[%s2580 + $0x1cc] sm:$0xf]
    %v2697 = vld [vmem:[%s2580 + $0x1d0] sm:$0xf]
    %v2698 = vld [vmem:[%s2580 + $0x1d4] sm:$0xf]
    %v2699 = vld [vmem:[%s2580 + $0x1d8] sm:$0xf]
    %v2700 = vld [vmem:[%s2580 + $0x1dc] sm:$0xf]
    %v2701 = vld [vmem:[%s2580 + $0x1e0] sm:$0xf]
    %v2702 = vld [vmem:[%s2580 + $0x1e4] sm:$0xf]
    %v2703 = vld [vmem:[%s2580 + $0x1e8] sm:$0xf]
    %v2704 = vld [vmem:[%s2580 + $0x1ec] sm:$0xf]
    %v2705 = vld [vmem:[%s2580 + $0x1f0] sm:$0xf]
    %v2706 = vld [vmem:[%s2580 + $0x1f4] sm:$0xf]
    %v2707 = vld [vmem:[%s2580 + $0x1f8] sm:$0xf]
    %v2708 = vld [vmem:[%s2580 + $0x1fc] sm:$0xf]
    %v2709 = vld [vmem:[%s2580 + $0x200] sm:$0xf]
    %v2710 = vld [vmem:[%s2580 + $0x204] sm:$0xf]
    %v2711 = vld [vmem:[%s2580 + $0x208] sm:$0xf]
    %v2712 = vld [vmem:[%s2580 + $0x20c] sm:$0xf]
    %v2713 = vld [vmem:[%s2580 + $0x210] sm:$0xf]
    %v2714 = vld [vmem:[%s2580 + $0x214] sm:$0xf]
    %v2715 = vld [vmem:[%s2580 + $0x218] sm:$0xf]
    %v2716 = vld [vmem:[%s2580 + $0x21c] sm:$0xf]
    %v2717 = vld [vmem:[%s2580 + $0x220] sm:$0xf]
    %v2718 = vld [vmem:[%s2580 + $0x224] sm:$0xf]
    %v2719 = vld [vmem:[%s2580 + $0x228] sm:$0xf]
    %v2720 = vld [vmem:[%s2580 + $0x22c] sm:$0xf]
    %v2721 = vld [vmem:[%s2580 + $0x230] sm:$0xf]
    %v2722 = vld [vmem:[%s2580 + $0x234] sm:$0xf]
    %v2723 = vld [vmem:[%s2580 + $0x238] sm:$0xf]
    %v2724 = vld [vmem:[%s2580 + $0x23c] sm:$0xf]
    %v2725 = vld [vmem:[%s2580 + $0x240] sm:$0xf]
    %v2726 = vld [vmem:[%s2580 + $0x244] sm:$0xf]
    %v2727 = vld [vmem:[%s2580 + $0x248] sm:$0xf]
    %v2728 = vld [vmem:[%s2580 + $0x24c] sm:$0xf]
    %v2729 = vld [vmem:[%s2580 + $0x250] sm:$0xf]
    %v2730 = vld [vmem:[%s2580 + $0x254] sm:$0xf]
    %v2731 = vld [vmem:[%s2580 + $0x258] sm:$0xf]
    %v2732 = vld [vmem:[%s2580 + $0x25c] sm:$0xf]
    %v2733 = vld [vmem:[%s2580 + $0x260] sm:$0xf]
    %v2734 = vld [vmem:[%s2580 + $0x264] sm:$0xf]
    %v2735 = vld [vmem:[%s2580 + $0x268] sm:$0xf]
    %v2736 = vld [vmem:[%s2580 + $0x26c] sm:$0xf]
    %v2737 = vld [vmem:[%s2580 + $0x270] sm:$0xf]
    %v2738 = vld [vmem:[%s2580 + $0x274] sm:$0xf]
    %v2739 = vld [vmem:[%s2580 + $0x278] sm:$0xf]
    %v2740 = vld [vmem:[%s2580 + $0x27c] sm:$0xf]
    %v2741 = vld [vmem:[%s2580 + $0x280] sm:$0xf]
    %v2742 = vld [vmem:[%s2580 + $0x284] sm:$0xf]
    %v2743 = vld [vmem:[%s2580 + $0x288] sm:$0xf]
    %v2744 = vld [vmem:[%s2580 + $0x28c] sm:$0xf]
    %v2745 = vld [vmem:[%s2580 + $0x290] sm:$0xf]
    %v2746 = vld [vmem:[%s2580 + $0x294] sm:$0xf]
    %v2747 = vld [vmem:[%s2580 + $0x298] sm:$0xf]
    %v2748 = vld [vmem:[%s2580 + $0x29c] sm:$0xf]
    %v2749 = vld [vmem:[%s2580 + $0x2a0] sm:$0xf]
    %v2750 = vld [vmem:[%s2580 + $0x2a4] sm:$0xf]
    %v2751 = vld [vmem:[%s2580 + $0x2a8] sm:$0xf]
    %v2752 = vld [vmem:[%s2580 + $0x2ac] sm:$0xf]
    %v2753 = vld [vmem:[%s2580 + $0x2b0] sm:$0xf]
    %v2754 = vld [vmem:[%s2580 + $0x2b4] sm:$0xf]
    %v2755 = vld [vmem:[%s2580 + $0x2b8] sm:$0xf]
    %v2756 = vld [vmem:[%s2580 + $0x2bc] sm:$0xf]
    %v2757 = vld [vmem:[%s2580 + $0x2c0] sm:$0xf]
    %v2758 = vld [vmem:[%s2580 + $0x2c4] sm:$0xf]
    %v2759 = vld [vmem:[%s2580 + $0x2c8] sm:$0xf]
    %v2760 = vld [vmem:[%s2580 + $0x2cc] sm:$0xf]
    %v2761 = vld [vmem:[%s2580 + $0x2d0] sm:$0xf]
    %v2762 = vld [vmem:[%s2580 + $0x2d4] sm:$0xf]
    %v2763 = vld [vmem:[%s2580 + $0x2d8] sm:$0xf]
    %v2764 = vld [vmem:[%s2580 + $0x2dc] sm:$0xf]
    %v2765 = vld [vmem:[%s2580 + $0x2e0] sm:$0xf]
    %v2766 = vld [vmem:[%s2580 + $0x2e4] sm:$0xf]
    %v2767 = vld [vmem:[%s2580 + $0x2e8] sm:$0xf]
    %v2768 = vld [vmem:[%s2580 + $0x2ec] sm:$0xf]
    %v2769 = vld [vmem:[%s2580 + $0x2f0] sm:$0xf]
    %v2770 = vld [vmem:[%s2580 + $0x2f4] sm:$0xf]
    %v2771 = vld [vmem:[%s2580 + $0x2f8] sm:$0xf]
    %v2772 = vld [vmem:[%s2580 + $0x2fc] sm:$0xf]
    %v2773 = vld [vmem:[%s2580 + $0x300] sm:$0xf]
    %v2774 = vld [vmem:[%s2580 + $0x304] sm:$0xf]
    %v2775 = vld [vmem:[%s2580 + $0x308] sm:$0xf]
    %v2776 = vld [vmem:[%s2580 + $0x30c] sm:$0xf]
    %v2777 = vld [vmem:[%s2580 + $0x310] sm:$0xf]
    %v2778 = vld [vmem:[%s2580 + $0x314] sm:$0xf]
    %v2779 = vld [vmem:[%s2580 + $0x318] sm:$0xf]
    %v2780 = vld [vmem:[%s2580 + $0x31c] sm:$0xf]
    %v2781 = vld [vmem:[%s2580 + $0x320] sm:$0xf]
    %v2782 = vld [vmem:[%s2580 + $0x324] sm:$0xf]
    %v2783 = vld [vmem:[%s2580 + $0x328] sm:$0xf]
    %v2784 = vld [vmem:[%s2580 + $0x32c] sm:$0xf]
    %v2785 = vld [vmem:[%s2580 + $0x330] sm:$0xf]
    %v2786 = vld [vmem:[%s2580 + $0x334] sm:$0xf]
    %v2787 = vld [vmem:[%s2580 + $0x338] sm:$0xf]
    %v2788 = vld [vmem:[%s2580 + $0x33c] sm:$0xf]
    %v2789 = vld [vmem:[%s2580 + $0x340] sm:$0xf]
    %v2790 = vld [vmem:[%s2580 + $0x344] sm:$0xf]
    %v2791 = vld [vmem:[%s2580 + $0x348] sm:$0xf]
    %v2792 = vld [vmem:[%s2580 + $0x34c] sm:$0xf]
    %v2793 = vld [vmem:[%s2580 + $0x350] sm:$0xf]
    %v2794 = vld [vmem:[%s2580 + $0x354] sm:$0xf]
    %v2795 = vld [vmem:[%s2580 + $0x358] sm:$0xf]
    %v2796 = vld [vmem:[%s2580 + $0x35c] sm:$0xf]
    %v2797 = vld [vmem:[%s2580 + $0x360] sm:$0xf]
    %v2798 = vld [vmem:[%s2580 + $0x364] sm:$0xf]
    %v2799 = vld [vmem:[%s2580 + $0x368] sm:$0xf]
    %v2800 = vld [vmem:[%s2580 + $0x36c] sm:$0xf]
    %v2801 = vld [vmem:[%s2580 + $0x370] sm:$0xf]
    %v2802 = vld [vmem:[%s2580 + $0x374] sm:$0xf]
    %v2803 = vld [vmem:[%s2580 + $0x378] sm:$0xf]
    %v2804 = vld [vmem:[%s2580 + $0x37c] sm:$0xf]
    %v2805 = vld [vmem:[%s2580 + $0x380] sm:$0xf]
    %v2806 = vld [vmem:[%s2580 + $0x384] sm:$0xf]
    %v2807 = vld [vmem:[%s2580 + $0x388] sm:$0xf]
    %v2808 = vld [vmem:[%s2580 + $0x38c] sm:$0xf]
    %v2809 = vld [vmem:[%s2580 + $0x390] sm:$0xf]
    %v2810 = vld [vmem:[%s2580 + $0x394] sm:$0xf]
    %v2811 = vld [vmem:[%s2580 + $0x398] sm:$0xf]
    %v2812 = vld [vmem:[%s2580 + $0x39c] sm:$0xf]
    %v2813 = vld [vmem:[%s2580 + $0x3a0] sm:$0xf]
    %v2814 = vld [vmem:[%s2580 + $0x3a4] sm:$0xf]
    %v2815 = vld [vmem:[%s2580 + $0x3a8] sm:$0xf]
    %v2816 = vld [vmem:[%s2580 + $0x3ac] sm:$0xf]
    %v2817 = vld [vmem:[%s2580 + $0x3b0] sm:$0xf]
    %v2818 = vld [vmem:[%s2580 + $0x3b4] sm:$0xf]
    %v2819 = vld [vmem:[%s2580 + $0x3b8] sm:$0xf]
    %v2820 = vld [vmem:[%s2580 + $0x3bc] sm:$0xf]
    %v2821 = vld [vmem:[%s2580 + $0x3c0] sm:$0xf]
    %v2822 = vld [vmem:[%s2580 + $0x3c4] sm:$0xf]
    %v2823 = vld [vmem:[%s2580 + $0x3c8] sm:$0xf]
    %v2824 = vld [vmem:[%s2580 + $0x3cc] sm:$0xf]
    %v2825 = vld [vmem:[%s2580 + $0x3d0] sm:$0xf]
    %v2826 = vld [vmem:[%s2580 + $0x3d4] sm:$0xf]
    %v2827 = vld [vmem:[%s2580 + $0x3d8] sm:$0xf]
    %v2828 = vld [vmem:[%s2580 + $0x3dc] sm:$0xf]
    %v2829 = vld [vmem:[%s2580 + $0x3e0] sm:$0xf]
    %v2830 = vld [vmem:[%s2580 + $0x3e4] sm:$0xf]
    %v2831 = vld [vmem:[%s2580 + $0x3e8] sm:$0xf]
    %v2832 = vld [vmem:[%s2580 + $0x3ec] sm:$0xf]
    %v2833 = vld [vmem:[%s2580 + $0x3f0] sm:$0xf]
    %v2834 = vld [vmem:[%s2580 + $0x3f4] sm:$0xf]
    %v2835 = vld [vmem:[%s2580 + $0x3f8] sm:$0xf]
    %v2836 = vld [vmem:[%s2580 + $0x3fc] sm:$0xf]
    %v3093 = vunpack.c.l.b16 %v2581
    %v3094 = vunpack.c.l.b16 %v2582
    %v3095 = vunpack.c.l.b16 %v2583
    %v3096 = vunpack.c.l.b16 %v2584
    %v3097 = vunpack.c.l.b16 %v2585
    %v3098 = vunpack.c.l.b16 %v2586
    %v3099 = vunpack.c.l.b16 %v2587
    %v3100 = vunpack.c.l.b16 %v2588
    %v3101 = vunpack.c.l.b16 %v2589
    %v3102 = vunpack.c.l.b16 %v2590
    %v3103 = vunpack.c.l.b16 %v2591
    %v3104 = vunpack.c.l.b16 %v2592
    %v3105 = vunpack.c.l.b16 %v2593
    %v3106 = vunpack.c.l.b16 %v2594
    %v3107 = vunpack.c.l.b16 %v2595
    %v3108 = vunpack.c.l.b16 %v2596
    %v3109 = vunpack.c.l.b16 %v2597
    %v3110 = vunpack.c.l.b16 %v2598
    %v3111 = vunpack.c.l.b16 %v2599
    %v3112 = vunpack.c.l.b16 %v2600
    %v3113 = vunpack.c.l.b16 %v2601
    %v3114 = vunpack.c.l.b16 %v2602
    %v3115 = vunpack.c.l.b16 %v2603
    %v3116 = vunpack.c.l.b16 %v2604
    %v3117 = vunpack.c.l.b16 %v2605
    %v3118 = vunpack.c.l.b16 %v2606
    %v3119 = vunpack.c.l.b16 %v2607
    %v3120 = vunpack.c.l.b16 %v2608
    %v3121 = vunpack.c.l.b16 %v2609
    %v3122 = vunpack.c.l.b16 %v2610
    %v3123 = vunpack.c.l.b16 %v2611
    %v3124 = vunpack.c.l.b16 %v2612
    %v3125 = vunpack.c.l.b16 %v2613
    %v3126 = vunpack.c.l.b16 %v2614
    %v3127 = vunpack.c.l.b16 %v2615
    %v3128 = vunpack.c.l.b16 %v2616
    %v3129 = vunpack.c.l.b16 %v2617
    %v3130 = vunpack.c.l.b16 %v2618
    %v3131 = vunpack.c.l.b16 %v2619
    %v3132 = vunpack.c.l.b16 %v2620
    %v3133 = vunpack.c.l.b16 %v2621
    %v3134 = vunpack.c.l.b16 %v2622
    %v3135 = vunpack.c.l.b16 %v2623
    %v3136 = vunpack.c.l.b16 %v2624
    %v3137 = vunpack.c.l.b16 %v2625
    %v3138 = vunpack.c.l.b16 %v2626
    %v3139 = vunpack.c.l.b16 %v2627
    %v3140 = vunpack.c.l.b16 %v2628
    %v3141 = vunpack.c.l.b16 %v2629
    %v3142 = vunpack.c.l.b16 %v2630
    %v3143 = vunpack.c.l.b16 %v2631
    %v3144 = vunpack.c.l.b16 %v2632
    %v3145 = vunpack.c.l.b16 %v2633
    %v3146 = vunpack.c.l.b16 %v2634
    %v3147 = vunpack.c.l.b16 %v2635
    %v3148 = vunpack.c.l.b16 %v2636
    %v3149 = vunpack.c.l.b16 %v2637
    %v3150 = vunpack.c.l.b16 %v2638
    %v3151 = vunpack.c.l.b16 %v2639
    %v3152 = vunpack.c.l.b16 %v2640
    %v3153 = vunpack.c.l.b16 %v2641
    %v3154 = vunpack.c.l.b16 %v2642
    %v3155 = vunpack.c.l.b16 %v2643
    %v3156 = vunpack.c.l.b16 %v2644
    %v3157 = vunpack.c.l.b16 %v2645
    %v3158 = vunpack.c.l.b16 %v2646
    %v3159 = vunpack.c.l.b16 %v2647
    %v3160 = vunpack.c.l.b16 %v2648
    %v3161 = vunpack.c.l.b16 %v2649
    %v3162 = vunpack.c.l.b16 %v2650
    %v3163 = vunpack.c.l.b16 %v2651
    %v3164 = vunpack.c.l.b16 %v2652
    %v3165 = vunpack.c.l.b16 %v2653
    %v3166 = vunpack.c.l.b16 %v2654
    %v3167 = vunpack.c.l.b16 %v2655
    %v3168 = vunpack.c.l.b16 %v2656
    %v3169 = vunpack.c.l.b16 %v2657
    %v3170 = vunpack.c.l.b16 %v2658
    %v3171 = vunpack.c.l.b16 %v2659
    %v3172 = vunpack.c.l.b16 %v2660
    %v3173 = vunpack.c.l.b16 %v2661
    %v3174 = vunpack.c.l.b16 %v2662
    %v3175 = vunpack.c.l.b16 %v2663
    %v3176 = vunpack.c.l.b16 %v2664
    %v3177 = vunpack.c.l.b16 %v2665
    %v3178 = vunpack.c.l.b16 %v2666
    %v3179 = vunpack.c.l.b16 %v2667
    %v3180 = vunpack.c.l.b16 %v2668
    %v3181 = vunpack.c.l.b16 %v2669
    %v3182 = vunpack.c.l.b16 %v2670
    %v3183 = vunpack.c.l.b16 %v2671
    %v3184 = vunpack.c.l.b16 %v2672
    %v3185 = vunpack.c.l.b16 %v2673
    %v3186 = vunpack.c.l.b16 %v2674
    %v3187 = vunpack.c.l.b16 %v2675
    %v3188 = vunpack.c.l.b16 %v2676
    %v3189 = vunpack.c.l.b16 %v2677
    %v3190 = vunpack.c.l.b16 %v2678
    %v3191 = vunpack.c.l.b16 %v2679
    %v3192 = vunpack.c.l.b16 %v2680
    %v3193 = vunpack.c.l.b16 %v2681
    %v3194 = vunpack.c.l.b16 %v2682
    %v3195 = vunpack.c.l.b16 %v2683
    %v3196 = vunpack.c.l.b16 %v2684
    %v3197 = vunpack.c.l.b16 %v2685
    %v3198 = vunpack.c.l.b16 %v2686
    %v3199 = vunpack.c.l.b16 %v2687
    %v3200 = vunpack.c.l.b16 %v2688
    %v3201 = vunpack.c.l.b16 %v2689
    %v3202 = vunpack.c.l.b16 %v2690
    %v3203 = vunpack.c.l.b16 %v2691
    %v3204 = vunpack.c.l.b16 %v2692
    %v3205 = vunpack.c.l.b16 %v2693
    %v3206 = vunpack.c.l.b16 %v2694
    %v3207 = vunpack.c.l.b16 %v2695
    %v3208 = vunpack.c.l.b16 %v2696
    %v3209 = vunpack.c.l.b16 %v2697
    %v3210 = vunpack.c.l.b16 %v2698
    %v3211 = vunpack.c.l.b16 %v2699
    %v3212 = vunpack.c.l.b16 %v2700
    %v3213 = vunpack.c.l.b16 %v2701
    %v3214 = vunpack.c.l.b16 %v2702
    %v3215 = vunpack.c.l.b16 %v2703
    %v3216 = vunpack.c.l.b16 %v2704
    %v3217 = vunpack.c.l.b16 %v2705
    %v3218 = vunpack.c.l.b16 %v2706
    %v3219 = vunpack.c.l.b16 %v2707
    %v3220 = vunpack.c.l.b16 %v2708
    %v3221 = vunpack.c.l.b16 %v2709
    %v3222 = vunpack.c.l.b16 %v2710
    %v3223 = vunpack.c.l.b16 %v2711
    %v3224 = vunpack.c.l.b16 %v2712
    %v3225 = vunpack.c.l.b16 %v2713
    %v3226 = vunpack.c.l.b16 %v2714
    %v3227 = vunpack.c.l.b16 %v2715
    %v3228 = vunpack.c.l.b16 %v2716
    %v3229 = vunpack.c.l.b16 %v2717
    %v3230 = vunpack.c.l.b16 %v2718
    %v3231 = vunpack.c.l.b16 %v2719
    %v3232 = vunpack.c.l.b16 %v2720
    %v3233 = vunpack.c.l.b16 %v2721
    %v3234 = vunpack.c.l.b16 %v2722
    %v3235 = vunpack.c.l.b16 %v2723
    %v3236 = vunpack.c.l.b16 %v2724
    %v3237 = vunpack.c.l.b16 %v2725
    %v3238 = vunpack.c.l.b16 %v2726
    %v3239 = vunpack.c.l.b16 %v2727
    %v3240 = vunpack.c.l.b16 %v2728
    %v3241 = vunpack.c.l.b16 %v2729
    %v3242 = vunpack.c.l.b16 %v2730
    %v3243 = vunpack.c.l.b16 %v2731
    %v3244 = vunpack.c.l.b16 %v2732
    %v3245 = vunpack.c.l.b16 %v2733
    %v3246 = vunpack.c.l.b16 %v2734
    %v3247 = vunpack.c.l.b16 %v2735
    %v3248 = vunpack.c.l.b16 %v2736
    %v3249 = vunpack.c.l.b16 %v2737
    %v3250 = vunpack.c.l.b16 %v2738
    %v3251 = vunpack.c.l.b16 %v2739
    %v3252 = vunpack.c.l.b16 %v2740
    %v3253 = vunpack.c.l.b16 %v2741
    %v3254 = vunpack.c.l.b16 %v2742
    %v3255 = vunpack.c.l.b16 %v2743
    %v3256 = vunpack.c.l.b16 %v2744
    %v3257 = vunpack.c.l.b16 %v2745
    %v3258 = vunpack.c.l.b16 %v2746
    %v3259 = vunpack.c.l.b16 %v2747
    %v3260 = vunpack.c.l.b16 %v2748
    %v3261 = vunpack.c.l.b16 %v2749
    %v3262 = vunpack.c.l.b16 %v2750
    %v3263 = vunpack.c.l.b16 %v2751
    %v3264 = vunpack.c.l.b16 %v2752
    %v3265 = vunpack.c.l.b16 %v2753
    %v3266 = vunpack.c.l.b16 %v2754
    %v3267 = vunpack.c.l.b16 %v2755
    %v3268 = vunpack.c.l.b16 %v2756
    %v3269 = vunpack.c.l.b16 %v2757
    %v3270 = vunpack.c.l.b16 %v2758
    %v3271 = vunpack.c.l.b16 %v2759
    %v3272 = vunpack.c.l.b16 %v2760
    %v3273 = vunpack.c.l.b16 %v2761
    %v3274 = vunpack.c.l.b16 %v2762
    %v3275 = vunpack.c.l.b16 %v2763
    %v3276 = vunpack.c.l.b16 %v2764
    %v3277 = vunpack.c.l.b16 %v2765
    %v3278 = vunpack.c.l.b16 %v2766
    %v3279 = vunpack.c.l.b16 %v2767
    %v3280 = vunpack.c.l.b16 %v2768
    %v3281 = vunpack.c.l.b16 %v2769
    %v3282 = vunpack.c.l.b16 %v2770
    %v3283 = vunpack.c.l.b16 %v2771
    %v3284 = vunpack.c.l.b16 %v2772
    %v3285 = vunpack.c.l.b16 %v2773
    %v3286 = vunpack.c.l.b16 %v2774
    %v3287 = vunpack.c.l.b16 %v2775
    %v3288 = vunpack.c.l.b16 %v2776
    %v3289 = vunpack.c.l.b16 %v2777
    %v3290 = vunpack.c.l.b16 %v2778
    %v3291 = vunpack.c.l.b16 %v2779
    %v3292 = vunpack.c.l.b16 %v2780
    %v3293 = vunpack.c.l.b16 %v2781
    %v3294 = vunpack.c.l.b16 %v2782
    %v3295 = vunpack.c.l.b16 %v2783
    %v3296 = vunpack.c.l.b16 %v2784
    %v3297 = vunpack.c.l.b16 %v2785
    %v3298 = vunpack.c.l.b16 %v2786
    %v3299 = vunpack.c.l.b16 %v2787
    %v3300 = vunpack.c.l.b16 %v2788
    %v3301 = vunpack.c.l.b16 %v2789
    %v3302 = vunpack.c.l.b16 %v2790
    %v3303 = vunpack.c.l.b16 %v2791
    %v3304 = vunpack.c.l.b16 %v2792
    %v3305 = vunpack.c.l.b16 %v2793
    %v3306 = vunpack.c.l.b16 %v2794
    %v3307 = vunpack.c.l.b16 %v2795
    %v3308 = vunpack.c.l.b16 %v2796
    %v3309 = vunpack.c.l.b16 %v2797
    %v3310 = vunpack.c.l.b16 %v2798
    %v3311 = vunpack.c.l.b16 %v2799
    %v3312 = vunpack.c.l.b16 %v2800
    %v3313 = vunpack.c.l.b16 %v2801
    %v3314 = vunpack.c.l.b16 %v2802
    %v3315 = vunpack.c.l.b16 %v2803
    %v3316 = vunpack.c.l.b16 %v2804
    %v3317 = vunpack.c.l.b16 %v2805
    %v3318 = vunpack.c.l.b16 %v2806
    %v3319 = vunpack.c.l.b16 %v2807
    %v3320 = vunpack.c.l.b16 %v2808
    %v3321 = vunpack.c.l.b16 %v2809
    %v3322 = vunpack.c.l.b16 %v2810
    %v3323 = vunpack.c.l.b16 %v2811
    %v3324 = vunpack.c.l.b16 %v2812
    %v3325 = vunpack.c.l.b16 %v2813
    %v3326 = vunpack.c.l.b16 %v2814
    %v3327 = vunpack.c.l.b16 %v2815
    %v3328 = vunpack.c.l.b16 %v2816
    %v3329 = vunpack.c.l.b16 %v2817
    %v3330 = vunpack.c.l.b16 %v2818
    %v3331 = vunpack.c.l.b16 %v2819
    %v3332 = vunpack.c.l.b16 %v2820
    %v3333 = vunpack.c.l.b16 %v2821
    %v3334 = vunpack.c.l.b16 %v2822
    %v3335 = vunpack.c.l.b16 %v2823
    %v3336 = vunpack.c.l.b16 %v2824
    %v3337 = vunpack.c.l.b16 %v2825
    %v3338 = vunpack.c.l.b16 %v2826
    %v3339 = vunpack.c.l.b16 %v2827
    %v3340 = vunpack.c.l.b16 %v2828
    %v3341 = vunpack.c.l.b16 %v2829
    %v3342 = vunpack.c.l.b16 %v2830
    %v3343 = vunpack.c.l.b16 %v2831
    %v3344 = vunpack.c.l.b16 %v2832
    %v3345 = vunpack.c.l.b16 %v2833
    %v3346 = vunpack.c.l.b16 %v2834
    %v3347 = vunpack.c.l.b16 %v2835
    %v3348 = vunpack.c.l.b16 %v2836
    %v3349 = vpack.c.b16 %v3094, %v3093
    %v3350 = vpack.c.b16 %v3096, %v3095
    %v3351 = vpack.c.b16 %v3098, %v3097
    %v3352 = vpack.c.b16 %v3100, %v3099
    %v3353 = vpack.c.b16 %v3102, %v3101
    %v3354 = vpack.c.b16 %v3104, %v3103
    %v3355 = vpack.c.b16 %v3106, %v3105
    %v3356 = vpack.c.b16 %v3108, %v3107
    %v3357 = vpack.c.b16 %v3110, %v3109
    %v3358 = vpack.c.b16 %v3112, %v3111
    %v3359 = vpack.c.b16 %v3114, %v3113
    %v3360 = vpack.c.b16 %v3116, %v3115
    %v3361 = vpack.c.b16 %v3118, %v3117
    %v3362 = vpack.c.b16 %v3120, %v3119
    %v3363 = vpack.c.b16 %v3122, %v3121
    %v3364 = vpack.c.b16 %v3124, %v3123
    %v3365 = vpack.c.b16 %v3126, %v3125
    %v3366 = vpack.c.b16 %v3128, %v3127
    %v3367 = vpack.c.b16 %v3130, %v3129
    %v3368 = vpack.c.b16 %v3132, %v3131
    %v3369 = vpack.c.b16 %v3134, %v3133
    %v3370 = vpack.c.b16 %v3136, %v3135
    %v3371 = vpack.c.b16 %v3138, %v3137
    %v3372 = vpack.c.b16 %v3140, %v3139
    %v3373 = vpack.c.b16 %v3142, %v3141
    %v3374 = vpack.c.b16 %v3144, %v3143
    %v3375 = vpack.c.b16 %v3146, %v3145
    %v3376 = vpack.c.b16 %v3148, %v3147
    %v3377 = vpack.c.b16 %v3150, %v3149
    %v3378 = vpack.c.b16 %v3152, %v3151
    %v3379 = vpack.c.b16 %v3154, %v3153
    %v3380 = vpack.c.b16 %v3156, %v3155
    %v3381 = vpack.c.b16 %v3158, %v3157
    %v3382 = vpack.c.b16 %v3160, %v3159
    %v3383 = vpack.c.b16 %v3162, %v3161
    %v3384 = vpack.c.b16 %v3164, %v3163
    %v3385 = vpack.c.b16 %v3166, %v3165
    %v3386 = vpack.c.b16 %v3168, %v3167
    %v3387 = vpack.c.b16 %v3170, %v3169
    %v3388 = vpack.c.b16 %v3172, %v3171
    %v3389 = vpack.c.b16 %v3174, %v3173
    %v3390 = vpack.c.b16 %v3176, %v3175
    %v3391 = vpack.c.b16 %v3178, %v3177
    %v3392 = vpack.c.b16 %v3180, %v3179
    %v3393 = vpack.c.b16 %v3182, %v3181
    %v3394 = vpack.c.b16 %v3184, %v3183
    %v3395 = vpack.c.b16 %v3186, %v3185
    %v3396 = vpack.c.b16 %v3188, %v3187
    %v3397 = vpack.c.b16 %v3190, %v3189
    %v3398 = vpack.c.b16 %v3192, %v3191
    %v3399 = vpack.c.b16 %v3194, %v3193
    %v3400 = vpack.c.b16 %v3196, %v3195
    %v3401 = vpack.c.b16 %v3198, %v3197
    %v3402 = vpack.c.b16 %v3200, %v3199
    %v3403 = vpack.c.b16 %v3202, %v3201
    %v3404 = vpack.c.b16 %v3204, %v3203
    %v3405 = vpack.c.b16 %v3206, %v3205
    %v3406 = vpack.c.b16 %v3208, %v3207
    %v3407 = vpack.c.b16 %v3210, %v3209
    %v3408 = vpack.c.b16 %v3212, %v3211
    %v3409 = vpack.c.b16 %v3214, %v3213
    %v3410 = vpack.c.b16 %v3216, %v3215
    %v3411 = vpack.c.b16 %v3218, %v3217
    %v3412 = vpack.c.b16 %v3220, %v3219
    %v3413 = vpack.c.b16 %v3222, %v3221
    %v3414 = vpack.c.b16 %v3224, %v3223
    %v3415 = vpack.c.b16 %v3226, %v3225
    %v3416 = vpack.c.b16 %v3228, %v3227
    %v3417 = vpack.c.b16 %v3230, %v3229
    %v3418 = vpack.c.b16 %v3232, %v3231
    %v3419 = vpack.c.b16 %v3234, %v3233
    %v3420 = vpack.c.b16 %v3236, %v3235
    %v3421 = vpack.c.b16 %v3238, %v3237
    %v3422 = vpack.c.b16 %v3240, %v3239
    %v3423 = vpack.c.b16 %v3242, %v3241
    %v3424 = vpack.c.b16 %v3244, %v3243
    %v3425 = vpack.c.b16 %v3246, %v3245
    %v3426 = vpack.c.b16 %v3248, %v3247
    %v3427 = vpack.c.b16 %v3250, %v3249
    %v3428 = vpack.c.b16 %v3252, %v3251
    %v3429 = vpack.c.b16 %v3254, %v3253
    %v3430 = vpack.c.b16 %v3256, %v3255
    %v3431 = vpack.c.b16 %v3258, %v3257
    %v3432 = vpack.c.b16 %v3260, %v3259
    %v3433 = vpack.c.b16 %v3262, %v3261
    %v3434 = vpack.c.b16 %v3264, %v3263
    %v3435 = vpack.c.b16 %v3266, %v3265
    %v3436 = vpack.c.b16 %v3268, %v3267
    %v3437 = vpack.c.b16 %v3270, %v3269
    %v3438 = vpack.c.b16 %v3272, %v3271
    %v3439 = vpack.c.b16 %v3274, %v3273
    %v3440 = vpack.c.b16 %v3276, %v3275
    %v3441 = vpack.c.b16 %v3278, %v3277
    %v3442 = vpack.c.b16 %v3280, %v3279
    %v3443 = vpack.c.b16 %v3282, %v3281
    %v3444 = vpack.c.b16 %v3284, %v3283
    %v3445 = vpack.c.b16 %v3286, %v3285
    %v3446 = vpack.c.b16 %v3288, %v3287
    %v3447 = vpack.c.b16 %v3290, %v3289
    %v3448 = vpack.c.b16 %v3292, %v3291
    %v3449 = vpack.c.b16 %v3294, %v3293
    %v3450 = vpack.c.b16 %v3296, %v3295
    %v3451 = vpack.c.b16 %v3298, %v3297
    %v3452 = vpack.c.b16 %v3300, %v3299
    %v3453 = vpack.c.b16 %v3302, %v3301
    %v3454 = vpack.c.b16 %v3304, %v3303
    %v3455 = vpack.c.b16 %v3306, %v3305
    %v3456 = vpack.c.b16 %v3308, %v3307
    %v3457 = vpack.c.b16 %v3310, %v3309
    %v3458 = vpack.c.b16 %v3312, %v3311
    %v3459 = vpack.c.b16 %v3314, %v3313
    %v3460 = vpack.c.b16 %v3316, %v3315
    %v3461 = vpack.c.b16 %v3318, %v3317
    %v3462 = vpack.c.b16 %v3320, %v3319
    %v3463 = vpack.c.b16 %v3322, %v3321
    %v3464 = vpack.c.b16 %v3324, %v3323
    %v3465 = vpack.c.b16 %v3326, %v3325
    %v3466 = vpack.c.b16 %v3328, %v3327
    %v3467 = vpack.c.b16 %v3330, %v3329
    %v3468 = vpack.c.b16 %v3332, %v3331
    %v3469 = vpack.c.b16 %v3334, %v3333
    %v3470 = vpack.c.b16 %v3336, %v3335
    %v3471 = vpack.c.b16 %v3338, %v3337
    %v3472 = vpack.c.b16 %v3340, %v3339
    %v3473 = vpack.c.b16 %v3342, %v3341
    %v3474 = vpack.c.b16 %v3344, %v3343
    %v3475 = vpack.c.b16 %v3346, %v3345
    %v3476 = vpack.c.b16 %v3348, %v3347
    %3605 = vmatprep.subr.bf16.mxu0 0
    %3606 = vmatpush1.bf16.msra.mxu0 %v3349
    %3607 = vmatprep.subr.bf16.mxu0 0
    %3608 = vmatpush1.bf16.msra.mxu0 %v3350
    %3609 = vmatprep.subr.bf16.mxu0 0
    %3610 = vmatpush1.bf16.msra.mxu0 %v3351
    %3611 = vmatprep.subr.bf16.mxu0 0
    %3612 = vmatpush1.bf16.msra.mxu0 %v3352
    %3613 = vmatprep.subr.bf16.mxu0 0
    %3614 = vmatpush1.bf16.msra.mxu0 %v3353
    %3615 = vmatprep.subr.bf16.mxu0 0
    %3616 = vmatpush1.bf16.msra.mxu0 %v3354
    %3617 = vmatprep.subr.bf16.mxu0 0
    %3618 = vmatpush1.bf16.msra.mxu0 %v3355
    %3619 = vmatprep.subr.bf16.mxu0 0
    %3620 = vmatpush1.bf16.msra.mxu0 %v3356
    %3621 = vmatprep.subr.bf16.mxu0 0
    %3622 = vmatpush1.bf16.msra.mxu0 %v3357
    %3623 = vmatprep.subr.bf16.mxu0 0
    %3624 = vmatpush1.bf16.msra.mxu0 %v3358
    %3625 = vmatprep.subr.bf16.mxu0 0
    %3626 = vmatpush1.bf16.msra.mxu0 %v3359
    %3627 = vmatprep.subr.bf16.mxu0 0
    %3628 = vmatpush1.bf16.msra.mxu0 %v3360
    %3629 = vmatprep.subr.bf16.mxu0 0
    %3630 = vmatpush1.bf16.msra.mxu0 %v3361
    %3631 = vmatprep.subr.bf16.mxu0 0
    %3632 = vmatpush1.bf16.msra.mxu0 %v3362
    %3633 = vmatprep.subr.bf16.mxu0 0
    %3634 = vmatpush1.bf16.msra.mxu0 %v3363
    %3635 = vmatprep.subr.bf16.mxu0 0
    %3636 = vmatpush1.bf16.msra.mxu0 %v3364
    %3637 = vmatprep.mubr.bf16.mxu0 %v1213
    %3638 = vmatmul.mubr.bf16.gmra.mrb[0].mxu0 %v1212
    %v3639 = vpop.f32.mrb[0].mxu0
    %v3640 = vadd.f32 0.0, %v3639
    %v3641 = vpop.f32.mrb[0].mxu0
    %v3642 = vpop.f32.mrb[0].mxu0
    %v3643 = vadd.f32 0.0, %v3642
    %v3644 = vpop.f32.mrb[0].mxu0
    %3645 = vdwg.mxu0
    %3646 = vmatprep.subr.bf16.mxu0 0
    %3647 = vmatpush1.bf16.msra.mxu0 %v3365
    %3648 = vmatprep.subr.bf16.mxu0 0
    %3649 = vmatpush1.bf16.msra.mxu0 %v3366
    %3650 = vmatprep.subr.bf16.mxu0 0
    %3651 = vmatpush1.bf16.msra.mxu0 %v3367
    %3652 = vmatprep.subr.bf16.mxu0 0
    %3653 = vmatpush1.bf16.msra.mxu0 %v3368
    %3654 = vmatprep.subr.bf16.mxu0 0
    %3655 = vmatpush1.bf16.msra.mxu0 %v3369
    %3656 = vmatprep.subr.bf16.mxu0 0
    %3657 = vmatpush1.bf16.msra.mxu0 %v3370
    %3658 = vmatprep.subr.bf16.mxu0 0
    %3659 = vmatpush1.bf16.msra.mxu0 %v3371
    %3660 = vmatprep.subr.bf16.mxu0 0
    %3661 = vmatpush1.bf16.msra.mxu0 %v3372
    %3662 = vmatprep.subr.bf16.mxu0 0
    %3663 = vmatpush1.bf16.msra.mxu0 %v3373
    %3664 = vmatprep.subr.bf16.mxu0 0
    %3665 = vmatpush1.bf16.msra.mxu0 %v3374
    %3666 = vmatprep.subr.bf16.mxu0 0
    %3667 = vmatpush1.bf16.msra.mxu0 %v3375
    %3668 = vmatprep.subr.bf16.mxu0 0
    %3669 = vmatpush1.bf16.msra.mxu0 %v3376
    %3670 = vmatprep.subr.bf16.mxu0 0
    %3671 = vmatpush1.bf16.msra.mxu0 %v3377
    %3672 = vmatprep.subr.bf16.mxu0 0
    %3673 = vmatpush1.bf16.msra.mxu0 %v3378
    %3674 = vmatprep.subr.bf16.mxu0 0
    %3675 = vmatpush1.bf16.msra.mxu0 %v3379
    %3676 = vmatprep.subr.bf16.mxu0 0
    %3677 = vmatpush1.bf16.msra.mxu0 %v3380
    %3678 = vmatprep.mubr.bf16.mxu0 %v1215
    %3679 = vmatmul.mubr.bf16.gmra.mrb[0].mxu0 %v1214
    %v3680 = vpop.f32.mrb[0].mxu0
    %v3681 = vadd.f32 %v3640, %v3680
    %v3682 = vpop.f32.mrb[0].mxu0
    %v3683 = vpop.f32.mrb[0].mxu0
    %v3684 = vadd.f32 %v3643, %v3683
    %v3685 = vpop.f32.mrb[0].mxu0
    %3686 = vdwg.mxu0
    %3687 = vmatprep.subr.bf16.mxu0 0
    %3688 = vmatpush1.bf16.msra.mxu0 %v3381
    %3689 = vmatprep.subr.bf16.mxu0 0
    %3690 = vmatpush1.bf16.msra.mxu0 %v3382
    %3691 = vmatprep.subr.bf16.mxu0 0
    %3692 = vmatpush1.bf16.msra.mxu0 %v3383
    %3693 = vmatprep.subr.bf16.mxu0 0
    %3694 = vmatpush1.bf16.msra.mxu0 %v3384
    %3695 = vmatprep.subr.bf16.mxu0 0
    %3696 = vmatpush1.bf16.msra.mxu0 %v3385
    %3697 = vmatprep.subr.bf16.mxu0 0
    %3698 = vmatpush1.bf16.msra.mxu0 %v3386
    %3699 = vmatprep.subr.bf16.mxu0 0
    %3700 = vmatpush1.bf16.msra.mxu0 %v3387
    %3701 = vmatprep.subr.bf16.mxu0 0
    %3702 = vmatpush1.bf16.msra.mxu0 %v3388
    %3703 = vmatprep.subr.bf16.mxu0 0
    %3704 = vmatpush1.bf16.msra.mxu0 %v3389
    %3705 = vmatprep.subr.bf16.mxu0 0
    %3706 = vmatpush1.bf16.msra.mxu0 %v3390
    %3707 = vmatprep.subr.bf16.mxu0 0
    %3708 = vmatpush1.bf16.msra.mxu0 %v3391
    %3709 = vmatprep.subr.bf16.mxu0 0
    %3710 = vmatpush1.bf16.msra.mxu0 %v3392
    %3711 = vmatprep.subr.bf16.mxu0 0
    %3712 = vmatpush1.bf16.msra.mxu0 %v3393
    %3713 = vmatprep.subr.bf16.mxu0 0
    %3714 = vmatpush1.bf16.msra.mxu0 %v3394
    %3715 = vmatprep.subr.bf16.mxu0 0
    %3716 = vmatpush1.bf16.msra.mxu0 %v3395
    %3717 = vmatprep.subr.bf16.mxu0 0
    %3718 = vmatpush1.bf16.msra.mxu0 %v3396
    %3719 = vmatprep.mubr.bf16.mxu0 %v1217
    %3720 = vmatmul.mubr.bf16.gmra.mrb[0].mxu0 %v1216
    %v3721 = vpop.f32.mrb[0].mxu0
    %v3722 = vadd.f32 %v3681, %v3721
    %v3723 = vpop.f32.mrb[0].mxu0
    %v3724 = vpop.f32.mrb[0].mxu0
    %v3725 = vadd.f32 %v3684, %v3724
    %v3726 = vpop.f32.mrb[0].mxu0
    %3727 = vdwg.mxu0
    %3728 = vmatprep.subr.bf16.mxu0 0
    %3729 = vmatpush1.bf16.msra.mxu0 %v3397
    %3730 = vmatprep.subr.bf16.mxu0 0
    %3731 = vmatpush1.bf16.msra.mxu0 %v3398
    %3732 = vmatprep.subr.bf16.mxu0 0
    %3733 = vmatpush1.bf16.msra.mxu0 %v3399
    %3734 = vmatprep.subr.bf16.mxu0 0
    %3735 = vmatpush1.bf16.msra.mxu0 %v3400
    %3736 = vmatprep.subr.bf16.mxu0 0
    %3737 = vmatpush1.bf16.msra.mxu0 %v3401
    %3738 = vmatprep.subr.bf16.mxu0 0
    %3739 = vmatpush1.bf16.msra.mxu0 %v3402
    %3740 = vmatprep.subr.bf16.mxu0 0
    %3741 = vmatpush1.bf16.msra.mxu0 %v3403
    %3742 = vmatprep.subr.bf16.mxu0 0
    %3743 = vmatpush1.bf16.msra.mxu0 %v3404
    %3744 = vmatprep.subr.bf16.mxu0 0
    %3745 = vmatpush1.bf16.msra.mxu0 %v3405
    %3746 = vmatprep.subr.bf16.mxu0 0
    %3747 = vmatpush1.bf16.msra.mxu0 %v3406
    %3748 = vmatprep.subr.bf16.mxu0 0
    %3749 = vmatpush1.bf16.msra.mxu0 %v3407
    %3750 = vmatprep.subr.bf16.mxu0 0
    %3751 = vmatpush1.bf16.msra.mxu0 %v3408
    %3752 = vmatprep.subr.bf16.mxu0 0
    %3753 = vmatpush1.bf16.msra.mxu0 %v3409
    %3754 = vmatprep.subr.bf16.mxu0 0
    %3755 = vmatpush1.bf16.msra.mxu0 %v3410
    %3756 = vmatprep.subr.bf16.mxu0 0
    %3757 = vmatpush1.bf16.msra.mxu0 %v3411
    %3758 = vmatprep.subr.bf16.mxu0 0
    %3759 = vmatpush1.bf16.msra.mxu0 %v3412
    %3760 = vmatprep.mubr.bf16.mxu0 %v1219
    %3761 = vmatmul.mubr.bf16.gmra.mrb[0].mxu0 %v1218
    %v3762 = vpop.f32.mrb[0].mxu0
    %v3763 = vadd.f32 %v3722, %v3762
    %v3764 = vpop.f32.mrb[0].mxu0
    %v3765 = vpop.f32.mrb[0].mxu0
    %v3766 = vadd.f32 %v3725, %v3765
    %v3767 = vpop.f32.mrb[0].mxu0
    %3768 = vdwg.mxu0
    %3769 = vmatprep.subr.bf16.mxu0 0
    %3770 = vmatpush1.bf16.msra.mxu0 %v3413
    %3771 = vmatprep.subr.bf16.mxu0 0
    %3772 = vmatpush1.bf16.msra.mxu0 %v3414
    %3773 = vmatprep.subr.bf16.mxu0 0
    %3774 = vmatpush1.bf16.msra.mxu0 %v3415
    %3775 = vmatprep.subr.bf16.mxu0 0
    %3776 = vmatpush1.bf16.msra.mxu0 %v3416
    %3777 = vmatprep.subr.bf16.mxu0 0
    %3778 = vmatpush1.bf16.msra.mxu0 %v3417
    %3779 = vmatprep.subr.bf16.mxu0 0
    %3780 = vmatpush1.bf16.msra.mxu0 %v3418
    %3781 = vmatprep.subr.bf16.mxu0 0
    %3782 = vmatpush1.bf16.msra.mxu0 %v3419
    %3783 = vmatprep.subr.bf16.mxu0 0
    %3784 = vmatpush1.bf16.msra.mxu0 %v3420
    %3785 = vmatprep.subr.bf16.mxu0 0
    %3786 = vmatpush1.bf16.msra.mxu0 %v3421
    %3787 = vmatprep.subr.bf16.mxu0 0
    %3788 = vmatpush1.bf16.msra.mxu0 %v3422
    %3789 = vmatprep.subr.bf16.mxu0 0
    %3790 = vmatpush1.bf16.msra.mxu0 %v3423
    %3791 = vmatprep.subr.bf16.mxu0 0
    %3792 = vmatpush1.bf16.msra.mxu0 %v3424
    %3793 = vmatprep.subr.bf16.mxu0 0
    %3794 = vmatpush1.bf16.msra.mxu0 %v3425
    %3795 = vmatprep.subr.bf16.mxu0 0
    %3796 = vmatpush1.bf16.msra.mxu0 %v3426
    %3797 = vmatprep.subr.bf16.mxu0 0
    %3798 = vmatpush1.bf16.msra.mxu0 %v3427
    %3799 = vmatprep.subr.bf16.mxu0 0
    %3800 = vmatpush1.bf16.msra.mxu0 %v3428
    %3801 = vmatprep.mubr.bf16.mxu0 %v1221
    %3802 = vmatmul.mubr.bf16.gmra.mrb[0].mxu0 %v1220
    %v3803 = vpop.f32.mrb[0].mxu0
    %v3804 = vadd.f32 %v3763, %v3803
    %v3805 = vpop.f32.mrb[0].mxu0
    %v3806 = vpop.f32.mrb[0].mxu0
    %v3807 = vadd.f32 %v3766, %v3806
    %v3808 = vpop.f32.mrb[0].mxu0
    %3809 = vdwg.mxu0
    %3810 = vmatprep.subr.bf16.mxu0 0
    %3811 = vmatpush1.bf16.msra.mxu0 %v3429
    %3812 = vmatprep.subr.bf16.mxu0 0
    %3813 = vmatpush1.bf16.msra.mxu0 %v3430
    %3814 = vmatprep.subr.bf16.mxu0 0
    %3815 = vmatpush1.bf16.msra.mxu0 %v3431
    %3816 = vmatprep.subr.bf16.mxu0 0
    %3817 = vmatpush1.bf16.msra.mxu0 %v3432
    %3818 = vmatprep.subr.bf16.mxu0 0
    %3819 = vmatpush1.bf16.msra.mxu0 %v3433
    %3820 = vmatprep.subr.bf16.mxu0 0
    %3821 = vmatpush1.bf16.msra.mxu0 %v3434
    %3822 = vmatprep.subr.bf16.mxu0 0
    %3823 = vmatpush1.bf16.msra.mxu0 %v3435
    %3824 = vmatprep.subr.bf16.mxu0 0
    %3825 = vmatpush1.bf16.msra.mxu0 %v3436
    %3826 = vmatprep.subr.bf16.mxu0 0
    %3827 = vmatpush1.bf16.msra.mxu0 %v3437
    %3828 = vmatprep.subr.bf16.mxu0 0
    %3829 = vmatpush1.bf16.msra.mxu0 %v3438
    %3830 = vmatprep.subr.bf16.mxu0 0
    %3831 = vmatpush1.bf16.msra.mxu0 %v3439
    %3832 = vmatprep.subr.bf16.mxu0 0
    %3833 = vmatpush1.bf16.msra.mxu0 %v3440
    %3834 = vmatprep.subr.bf16.mxu0 0
    %3835 = vmatpush1.bf16.msra.mxu0 %v3441
    %3836 = vmatprep.subr.bf16.mxu0 0
    %3837 = vmatpush1.bf16.msra.mxu0 %v3442
    %3838 = vmatprep.subr.bf16.mxu0 0
    %3839 = vmatpush1.bf16.msra.mxu0 %v3443
    %3840 = vmatprep.subr.bf16.mxu0 0
    %3841 = vmatpush1.bf16.msra.mxu0 %v3444
    %3842 = vmatprep.mubr.bf16.mxu0 %v1223
    %3843 = vmatmul.mubr.bf16.gmra.mrb[0].mxu0 %v1222
    %v3844 = vpop.f32.mrb[0].mxu0
    %v3845 = vadd.f32 %v3804, %v3844
    %v3846 = vpop.f32.mrb[0].mxu0
    %v3847 = vpop.f32.mrb[0].mxu0
    %v3848 = vadd.f32 %v3807, %v3847
    %v3849 = vpop.f32.mrb[0].mxu0
    %3850 = vdwg.mxu0
    %3851 = vmatprep.subr.bf16.mxu0 0
    %3852 = vmatpush1.bf16.msra.mxu0 %v3445
    %3853 = vmatprep.subr.bf16.mxu0 0
    %3854 = vmatpush1.bf16.msra.mxu0 %v3446
    %3855 = vmatprep.subr.bf16.mxu0 0
    %3856 = vmatpush1.bf16.msra.mxu0 %v3447
    %3857 = vmatprep.subr.bf16.mxu0 0
    %3858 = vmatpush1.bf16.msra.mxu0 %v3448
    %3859 = vmatprep.subr.bf16.mxu0 0
    %3860 = vmatpush1.bf16.msra.mxu0 %v3449
    %3861 = vmatprep.subr.bf16.mxu0 0
    %3862 = vmatpush1.bf16.msra.mxu0 %v3450
    %3863 = vmatprep.subr.bf16.mxu0 0
    %3864 = vmatpush1.bf16.msra.mxu0 %v3451
    %3865 = vmatprep.subr.bf16.mxu0 0
    %3866 = vmatpush1.bf16.msra.mxu0 %v3452
    %3867 = vmatprep.subr.bf16.mxu0 0
    %3868 = vmatpush1.bf16.msra.mxu0 %v3453
    %3869 = vmatprep.subr.bf16.mxu0 0
    %3870 = vmatpush1.bf16.msra.mxu0 %v3454
    %3871 = vmatprep.subr.bf16.mxu0 0
    %3872 = vmatpush1.bf16.msra.mxu0 %v3455
    %3873 = vmatprep.subr.bf16.mxu0 0
    %3874 = vmatpush1.bf16.msra.mxu0 %v3456
    %3875 = vmatprep.subr.bf16.mxu0 0
    %3876 = vmatpush1.bf16.msra.mxu0 %v3457
    %3877 = vmatprep.subr.bf16.mxu0 0
    %3878 = vmatpush1.bf16.msra.mxu0 %v3458
    %3879 = vmatprep.subr.bf16.mxu0 0
    %3880 = vmatpush1.bf16.msra.mxu0 %v3459
    %3881 = vmatprep.subr.bf16.mxu0 0
    %3882 = vmatpush1.bf16.msra.mxu0 %v3460
    %3883 = vmatprep.mubr.bf16.mxu0 %v1225
    %3884 = vmatmul.mubr.bf16.gmra.mrb[0].mxu0 %v1224
    %v3885 = vpop.f32.mrb[0].mxu0
    %v3886 = vadd.f32 %v3845, %v3885
    %v3887 = vpop.f32.mrb[0].mxu0
    %v3888 = vpop.f32.mrb[0].mxu0
    %v3889 = vadd.f32 %v3848, %v3888
    %v3890 = vpop.f32.mrb[0].mxu0
    %3891 = vdwg.mxu0
    %3892 = vmatprep.subr.bf16.mxu0 0
    %3893 = vmatpush1.bf16.msra.mxu0 %v3461
    %3894 = vmatprep.subr.bf16.mxu0 0
    %3895 = vmatpush1.bf16.msra.mxu0 %v3462
    %3896 = vmatprep.subr.bf16.mxu0 0
    %3897 = vmatpush1.bf16.msra.mxu0 %v3463
    %3898 = vmatprep.subr.bf16.mxu0 0
    %3899 = vmatpush1.bf16.msra.mxu0 %v3464
    %3900 = vmatprep.subr.bf16.mxu0 0
    %3901 = vmatpush1.bf16.msra.mxu0 %v3465
    %3902 = vmatprep.subr.bf16.mxu0 0
    %3903 = vmatpush1.bf16.msra.mxu0 %v3466
    %3904 = vmatprep.subr.bf16.mxu0 0
    %3905 = vmatpush1.bf16.msra.mxu0 %v3467
    %3906 = vmatprep.subr.bf16.mxu0 0
    %3907 = vmatpush1.bf16.msra.mxu0 %v3468
    %3908 = vmatprep.subr.bf16.mxu0 0
    %3909 = vmatpush1.bf16.msra.mxu0 %v3469
    %3910 = vmatprep.subr.bf16.mxu0 0
    %3911 = vmatpush1.bf16.msra.mxu0 %v3470
    %3912 = vmatprep.subr.bf16.mxu0 0
    %3913 = vmatpush1.bf16.msra.mxu0 %v3471
    %3914 = vmatprep.subr.bf16.mxu0 0
    %3915 = vmatpush1.bf16.msra.mxu0 %v3472
    %3916 = vmatprep.subr.bf16.mxu0 0
    %3917 = vmatpush1.bf16.msra.mxu0 %v3473
    %3918 = vmatprep.subr.bf16.mxu0 0
    %3919 = vmatpush1.bf16.msra.mxu0 %v3474
    %3920 = vmatprep.subr.bf16.mxu0 0
    %3921 = vmatpush1.bf16.msra.mxu0 %v3475
    %3922 = vmatprep.subr.bf16.mxu0 0
    %3923 = vmatpush1.bf16.msra.mxu0 %v3476
    %3924 = vmatprep.mubr.bf16.mxu0 %v1227
    %3925 = vmatmul.mubr.bf16.gmra.mrb[0].mxu0 %v1226
    %v3926 = vpop.f32.mrb[0].mxu0
    %v3927 = vadd.f32 %v3886, %v3926
    %v3928 = vpop.f32.mrb[0].mxu0
    %v3929 = vpop.f32.mrb[0].mxu0
    %v3930 = vadd.f32 %v3889, %v3929
    %v3931 = vpop.f32.mrb[0].mxu0
    %3932 = vdwg.mxu0
    %v3933 = vadd.f32 %v112, %v2574
    %v3934 = vadd.f32 %v117, %v2577
    %3937 = vrot.lane.b32.xlu0 %v3927, 32
    %v3938 = vpop.permute.xlu0 %3937
    %3939 = vrot.lane.b32.xlu0 %v3930, 32
    %v3940 = vpop.permute.xlu0 %3939
    %v3943 = vadd.f32 %v112, %v3938
    %v3944 = vadd.f32 %v117, %v3940
    %3947 = vrot.lane.b32.xlu0 %v3933, 120
    %v3948 = vpop.permute.xlu0 %3947
    %3949 = vrot.lane.b32.xlu0 %v3934, 120
    %v3950 = vpop.permute.xlu0 %3949
    %3951 = vrot.lane.b32.xlu0 %v3933, 112
    %v3952 = vpop.permute.xlu0 %3951
    %3953 = vrot.lane.b32.xlu0 %v3934, 112
    %v3954 = vpop.permute.xlu0 %3953
    %3955 = vrot.lane.b32.xlu0 %v3933, 104
    %v3956 = vpop.permute.xlu0 %3955
    %3957 = vrot.lane.b32.xlu0 %v3934, 104
    %v3958 = vpop.permute.xlu0 %3957
    %3961 = vrot.lane.b32.xlu0 %v3943, 120
    %v3962 = vpop.permute.xlu0 %3961
    %3963 = vrot.lane.b32.xlu0 %v3944, 120
    %v3964 = vpop.permute.xlu0 %3963
    %3965 = vrot.lane.b32.xlu0 %v3943, 112
    %v3966 = vpop.permute.xlu0 %3965
    %3967 = vrot.lane.b32.xlu0 %v3944, 112
    %v3968 = vpop.permute.xlu0 %3967
    %3969 = vrot.lane.b32.xlu0 %v3943, 104
    %v3970 = vpop.permute.xlu0 %3969
    %3971 = vrot.lane.b32.xlu0 %v3944, 104
    %v3972 = vpop.permute.xlu0 %3971
    %3975 = vrot.lane.b32.xlu0 %v112, 120
    %v3976 = vpop.permute.xlu0 %3975
    %3977 = vrot.lane.b32.xlu0 %v117, 120
    %v3978 = vpop.permute.xlu0 %3977
    %3979 = vrot.lane.b32.xlu0 %v112, 112
    %v3980 = vpop.permute.xlu0 %3979
    %3981 = vrot.lane.b32.xlu0 %v117, 112
    %v3982 = vpop.permute.xlu0 %3981
    %3983 = vrot.lane.b32.xlu0 %v112, 104
    %v3984 = vpop.permute.xlu0 %3983
    %3985 = vrot.lane.b32.xlu0 %v117, 104
    %v3986 = vpop.permute.xlu0 %3985
    %v3987 = vld [vmem:[%s1] sm:$0xff]
    %v3988 = vld [vmem:[%s1 + $0x8] sm:$0xff]
    %v3989 = vld [vmem:[%s1 + $0x10] sm:$0xff]
    %v3990 = vld [vmem:[%s1 + $0x18] sm:$0xff]
    %v3991 = vld [vmem:[%s1 + $0x20] sm:$0xff]
    %v3992 = vld [vmem:[%s1 + $0x28] sm:$0xff]
    %v3993 = vld [vmem:[%s1 + $0x30] sm:$0xff]
    %v3994 = vld [vmem:[%s1 + $0x38] sm:$0xff]
    %3995 = vrot.lane.b32.xlu0 %v3943, 96
    %v3996 = vpop.permute.xlu0 %3995
    %3997 = vrot.lane.b32.xlu0 %v3944, 96
    %v3998 = vpop.permute.xlu0 %3997
    %3999 = vrot.lane.b32.xlu0 %v3962, 96
    %v4000 = vpop.permute.xlu0 %3999
    %4001 = vrot.lane.b32.xlu0 %v3964, 96
    %v4002 = vpop.permute.xlu0 %4001
    %4003 = vrot.lane.b32.xlu0 %v3966, 96
    %v4004 = vpop.permute.xlu0 %4003
    %4005 = vrot.lane.b32.xlu0 %v3968, 96
    %v4006 = vpop.permute.xlu0 %4005
    %4007 = vrot.lane.b32.xlu0 %v3970, 96
    %v4008 = vpop.permute.xlu0 %4007
    %4009 = vrot.lane.b32.xlu0 %v3972, 96
    %v4010 = vpop.permute.xlu0 %4009
    %vm4011 = vcmask 64512
    %v4012 = vsel %vm4011, %v3933, 0
    %v4014 = vsel %vm4011, %v3934, 0
    %v4016 = vsel %vm4011, %v3948, 0
    %v4018 = vsel %vm4011, %v3950, 0
    %v4020 = vsel %vm4011, %v3952, 0
    %v4022 = vsel %vm4011, %v3954, 0
    %v4024 = vsel %vm4011, %v3956, 0
    %v4026 = vsel %vm4011, %v3958, 0
    %v4028 = vsel %vm4011, %v3996, 0
    %v4030 = vsel %vm4011, %v3998, 0
    %v4032 = vsel %vm4011, %v4000, 0
    %v4034 = vsel %vm4011, %v4002, 0
    %v4036 = vsel %vm4011, %v4004, 0
    %v4038 = vsel %vm4011, %v4006, 0
    %v4040 = vsel %vm4011, %v4008, 0
    %v4042 = vsel %vm4011, %v4010, 0
    %4044 = vmatprep.subr.mxu0 0.0
    %4045 = vmatpush1.xpose.msra.mxu0 %v4028
    %4046 = vmatprep.subr.mxu0 0.0
    %4047 = vmatpush1.xpose.msra.mxu0 %v4030
    %4048 = vmatprep.subr.mxu0 0.0
    %4049 = vmatpush1.xpose.msra.mxu0 %v4032
    %4050 = vmatprep.subr.mxu0 0.0
    %4051 = vmatpush1.xpose.msra.mxu0 %v4034
    %4052 = vmatprep.subr.mxu0 0.0
    %4053 = vmatpush1.xpose.msra.mxu0 %v4036
    %4054 = vmatprep.subr.mxu0 0.0
    %4055 = vmatpush1.xpose.msra.mxu0 %v4038
    %4056 = vmatprep.subr.mxu0 0.0
    %4057 = vmatpush1.xpose.msra.mxu0 %v4040
    %4058 = vmatprep.subr.mxu0 0.0
    %4059 = vmatpush1.xpose.msra.mxu0 %v4042
    %4060 = vmatprep.subr.mxu0 0.0
    %4061 = vmatpush1.xpose.msra.mxu0 0.0
    %4062 = vmatprep.subr.mxu0 0.0
    %4063 = vmatpush1.xpose.msra.mxu0 0.0
    %4064 = vmatprep.subr.mxu0 0.0
    %4065 = vmatpush1.xpose.msra.mxu0 0.0
    %4066 = vmatprep.subr.mxu0 0.0
    %4067 = vmatpush1.xpose.msra.mxu0 0.0
    %4068 = vmatprep.subr.mxu0 0.0
    %4069 = vmatpush1.xpose.msra.mxu0 0.0
    %4070 = vmatprep.subr.mxu0 0.0
    %4071 = vmatpush1.xpose.msra.mxu0 0.0
    %4072 = vmatprep.subr.mxu0 0.0
    %4073 = vmatpush1.xpose.msra.mxu0 0.0
    %4074 = vmatprep.subr.mxu0 0.0
    %4075 = vmatpush1.xpose.msra.mxu0 0.0
    %4076 = vmatprep.subr.mxu0 0.0
    %4077 = vmatpush1.xpose.msra.mxu0 0.0
    %4078 = vmatprep.subr.mxu0 0.0
    %4079 = vmatpush1.xpose.msra.mxu0 0.0
    %4080 = vmatprep.subr.mxu0 0.0
    %4081 = vmatpush1.xpose.msra.mxu0 0.0
    %4082 = vmatprep.subr.mxu0 0.0
    %4083 = vmatpush1.xpose.msra.mxu0 0.0
    %4084 = vmatprep.subr.mxu0 0.0
    %4085 = vmatpush1.xpose.msra.mxu0 0.0
    %4086 = vmatprep.subr.mxu0 0.0
    %4087 = vmatpush1.xpose.msra.mxu0 0.0
    %4088 = vmatprep.subr.mxu0 0.0
    %4089 = vmatpush1.xpose.msra.mxu0 0.0
    %4090 = vmatprep.subr.mxu0 0.0
    %4091 = vmatpush1.xpose.msra.mxu0 0.0
    %4092 = vmatprep.subr.mxu0 0.0
    %4093 = vmatpush1.xpose.msra.mxu0 0.0
    %4094 = vmatprep.subr.mxu0 0.0
    %4095 = vmatpush1.xpose.msra.mxu0 0.0
    %4096 = vmatprep.subr.mxu0 0.0
    %4097 = vmatpush1.xpose.msra.mxu0 0.0
    %4098 = vmatprep.subr.mxu0 0.0
    %4099 = vmatpush1.xpose.msra.mxu0 0.0
    %4100 = vmatprep.subr.mxu0 0.0
    %4101 = vmatpush1.xpose.msra.mxu0 0.0
    %4102 = vmatprep.subr.mxu0 0.0
    %4103 = vmatpush1.xpose.msra.mxu0 0.0
    %4104 = vmatprep.subr.mxu0 0.0
    %4105 = vmatpush1.xpose.msra.mxu0 0.0
    %4106 = vmatprep.subr.mxu0 0.0
    %4107 = vmatpush1.xpose.msra.mxu0 0.0
    %4108 = vmatprep.mubr.f32.mxu0 0.0
    %4109 = vmatmul.mubr.f32.gmra.mrb[0].mxu0 %v4012
    %v4110 = vpop.f32.mrb[0].mxu0
    %v4111 = vadd.f32 %v3987, %v4110
    %v4112 = vpop.f32.mrb[0].mxu0
    %4113 = vmatprep.mubr.f32.mxu0 0.0
    %4114 = vmatmul.mubr.f32.gmra.mrb[0].mxu0 %v4014
    %v4115 = vpop.f32.mrb[0].mxu0
    %v4116 = vadd.f32 %v3988, %v4115
    %v4117 = vpop.f32.mrb[0].mxu0
    %4118 = vmatprep.mubr.f32.mxu0 0.0
    %4119 = vmatmul.mubr.f32.gmra.mrb[0].mxu0 %v4016
    %v4120 = vpop.f32.mrb[0].mxu0
    %v4121 = vadd.f32 %v3989, %v4120
    %v4122 = vpop.f32.mrb[0].mxu0
    %4123 = vmatprep.mubr.f32.mxu0 0.0
    %4124 = vmatmul.mubr.f32.gmra.mrb[0].mxu0 %v4018
    %v4125 = vpop.f32.mrb[0].mxu0
    %v4126 = vadd.f32 %v3990, %v4125
    %v4127 = vpop.f32.mrb[0].mxu0
    %4128 = vmatprep.mubr.f32.mxu0 0.0
    %4129 = vmatmul.mubr.f32.gmra.mrb[0].mxu0 %v4020
    %v4130 = vpop.f32.mrb[0].mxu0
    %v4131 = vadd.f32 %v3991, %v4130
    %v4132 = vpop.f32.mrb[0].mxu0
    %4133 = vmatprep.mubr.f32.mxu0 0.0
    %4134 = vmatmul.mubr.f32.gmra.mrb[0].mxu0 %v4022
    %v4135 = vpop.f32.mrb[0].mxu0
    %v4136 = vadd.f32 %v3992, %v4135
    %v4137 = vpop.f32.mrb[0].mxu0
    %4138 = vmatprep.mubr.f32.mxu0 0.0
    %4139 = vmatmul.mubr.f32.gmra.mrb[0].mxu0 %v4024
    %v4140 = vpop.f32.mrb[0].mxu0
    %v4141 = vadd.f32 %v3993, %v4140
    %v4142 = vpop.f32.mrb[0].mxu0
    %4143 = vmatprep.mubr.f32.mxu0 0.0
    %4144 = vmatmul.mubr.f32.gmra.mrb[0].mxu0 %v4026
    %v4145 = vpop.f32.mrb[0].mxu0
    %v4146 = vadd.f32 %v3994, %v4145
    %v4147 = vpop.f32.mrb[0].mxu0
    %4148 = vdwg.mxu0
    %vm4149 = vcmask 523264
    %v4150 = vsel %vm4149, %v4111, -inf
    %4151 = vmax.xlane.f32.xlu0 %v4150
    %v4152 = vpop.xlane.xlu0 %4151
    %v4153 = vsel %vm4149, %v4116, -inf
    %4154 = vmax.xlane.f32.xlu0 %v4153
    %v4155 = vpop.xlane.xlu0 %4154
    %v4156 = vsel %vm4149, %v4121, -inf
    %4157 = vmax.xlane.f32.xlu0 %v4156
    %v4158 = vpop.xlane.xlu0 %4157
    %v4159 = vsel %vm4149, %v4126, -inf
    %4160 = vmax.xlane.f32.xlu0 %v4159
    %v4161 = vpop.xlane.xlu0 %4160
    %v4162 = vsel %vm4149, %v4131, -inf
    %4163 = vmax.xlane.f32.xlu0 %v4162
    %v4164 = vpop.xlane.xlu0 %4163
    %v4165 = vsel %vm4149, %v4136, -inf
    %4166 = vmax.xlane.f32.xlu0 %v4165
    %v4167 = vpop.xlane.xlu0 %4166
    %v4168 = vsel %vm4149, %v4141, -inf
    %4169 = vmax.xlane.f32.xlu0 %v4168
    %v4170 = vpop.xlane.xlu0 %4169
    %v4171 = vsel %vm4149, %v4146, -inf
    %4172 = vmax.xlane.f32.xlu0 %v4171
    %v4173 = vpop.xlane.xlu0 %4172
    %v4174 = vsub.f32 %v4111, %v4152
    %v4175 = vsub.f32 %v4116, %v4155
    %v4176 = vsub.f32 %v4121, %v4158
    %v4177 = vsub.f32 %v4126, %v4161
    %v4178 = vsub.f32 %v4131, %v4164
    %v4179 = vsub.f32 %v4136, %v4167
    %v4180 = vsub.f32 %v4141, %v4170
    %v4181 = vsub.f32 %v4146, %v4173
    %v4182 = vmul.f32 %v4174, 1.442695
    %v4183 = vpow.pop %v4182
    %v4184 = vmul.f32 %v4175, 1.442695
    %v4185 = vpow.pop %v4184
    %v4186 = vmul.f32 %v4176, 1.442695
    %v4187 = vpow.pop %v4186
    %v4188 = vmul.f32 %v4177, 1.442695
    %v4189 = vpow.pop %v4188
    %v4190 = vmul.f32 %v4178, 1.442695
    %v4191 = vpow.pop %v4190
    %v4192 = vmul.f32 %v4179, 1.442695
    %v4193 = vpow.pop %v4192
    %v4194 = vmul.f32 %v4180, 1.442695
    %v4195 = vpow.pop %v4194
    %v4196 = vmul.f32 %v4181, 1.442695
    %v4197 = vpow.pop %v4196
    %v4198 = vsel %vm4149, %v4183, 0.0
    %4199 = vadd.xlane.f32.xlu0 %v4198
    %v4200 = vpop.xlane.xlu0 %4199
    %v4201 = vsel %vm4149, %v4185, 0.0
    %4202 = vadd.xlane.f32.xlu0 %v4201
    %v4203 = vpop.xlane.xlu0 %4202
    %v4204 = vsel %vm4149, %v4187, 0.0
    %4205 = vadd.xlane.f32.xlu0 %v4204
    %v4206 = vpop.xlane.xlu0 %4205
    %v4207 = vsel %vm4149, %v4189, 0.0
    %4208 = vadd.xlane.f32.xlu0 %v4207
    %v4209 = vpop.xlane.xlu0 %4208
    %v4210 = vsel %vm4149, %v4191, 0.0
    %4211 = vadd.xlane.f32.xlu0 %v4210
    %v4212 = vpop.xlane.xlu0 %4211
    %v4213 = vsel %vm4149, %v4193, 0.0
    %4214 = vadd.xlane.f32.xlu0 %v4213
    %v4215 = vpop.xlane.xlu0 %4214
    %v4216 = vsel %vm4149, %v4195, 0.0
    %4217 = vadd.xlane.f32.xlu0 %v4216
    %v4218 = vpop.xlane.xlu0 %4217
    %v4219 = vsel %vm4149, %v4197, 0.0
    %4220 = vadd.xlane.f32.xlu0 %v4219
    %v4221 = vpop.xlane.xlu0 %4220
    %v4222 = vrcp.pop %v4200
    %v4223 = vmul.f32 %v4183, %v4222
    %v4224 = vrcp.pop %v4203
    %v4225 = vmul.f32 %v4185, %v4224
    %v4226 = vrcp.pop %v4206
    %v4227 = vmul.f32 %v4187, %v4226
    %v4228 = vrcp.pop %v4209
    %v4229 = vmul.f32 %v4189, %v4228
    %v4230 = vrcp.pop %v4212
    %v4231 = vmul.f32 %v4191, %v4230
    %v4232 = vrcp.pop %v4215
    %v4233 = vmul.f32 %v4193, %v4232
    %v4234 = vrcp.pop %v4218
    %v4235 = vmul.f32 %v4195, %v4234
    %v4236 = vrcp.pop %v4221
    %v4237 = vmul.f32 %v4197, %v4236
    %4238 = vrot.lane.b32.xlu0 %v112, 64
    %v4239 = vpop.permute.xlu0 %4238
    %4240 = vrot.lane.b32.xlu0 %v117, 64
    %v4241 = vpop.permute.xlu0 %4240
    %4242 = vrot.lane.b32.xlu0 %v3976, 64
    %v4243 = vpop.permute.xlu0 %4242
    %4244 = vrot.lane.b32.xlu0 %v3978, 64
    %v4245 = vpop.permute.xlu0 %4244
    %4246 = vrot.lane.b32.xlu0 %v3980, 64
    %v4247 = vpop.permute.xlu0 %4246
    %4248 = vrot.lane.b32.xlu0 %v3982, 64
    %v4249 = vpop.permute.xlu0 %4248
    %4250 = vrot.lane.b32.xlu0 %v3984, 64
    %v4251 = vpop.permute.xlu0 %4250
    %4252 = vrot.lane.b32.xlu0 %v3986, 64
    %v4253 = vpop.permute.xlu0 %4252
    %v4263 = vsel %vm4149, %v4223, 0
    %v4266 = vsel %vm4149, %v4225, 0
    %v4269 = vsel %vm4149, %v4227, 0
    %v4272 = vsel %vm4149, %v4229, 0
    %v4275 = vsel %vm4149, %v4231, 0
    %v4278 = vsel %vm4149, %v4233, 0
    %v4281 = vsel %vm4149, %v4235, 0
    %v4284 = vsel %vm4149, %v4237, 0
    %4286 = vmatprep.subr.mxu0 0.0
    %4287 = vmatpush1.msra.mxu0 %v4239
    %4288 = vmatprep.subr.mxu0 0.0
    %4289 = vmatpush1.msra.mxu0 %v4241
    %4290 = vmatprep.subr.mxu0 0.0
    %4291 = vmatpush1.msra.mxu0 %v4243
    %4292 = vmatprep.subr.mxu0 0.0
    %4293 = vmatpush1.msra.mxu0 %v4245
    %4294 = vmatprep.subr.mxu0 0.0
    %4295 = vmatpush1.msra.mxu0 %v4247
    %4296 = vmatprep.subr.mxu0 0.0
    %4297 = vmatpush1.msra.mxu0 %v4249
    %4298 = vmatprep.subr.mxu0 0.0
    %4299 = vmatpush1.msra.mxu0 %v4251
    %4300 = vmatprep.subr.mxu0 0.0
    %4301 = vmatpush1.msra.mxu0 %v4253
    %4302 = vmatprep.subr.mxu0 0.0
    %4303 = vmatpush1.msra.mxu0 0.0
    %4304 = vmatprep.subr.mxu0 0.0
    %4305 = vmatpush1.msra.mxu0 0.0
    %4306 = vmatprep.subr.mxu0 0.0
    %4307 = vmatpush1.msra.mxu0 0.0
    %4308 = vmatprep.subr.mxu0 0.0
    %4309 = vmatpush1.msra.mxu0 0.0
    %4310 = vmatprep.subr.mxu0 0.0
    %4311 = vmatpush1.msra.mxu0 0.0
    %4312 = vmatprep.subr.mxu0 0.0
    %4313 = vmatpush1.msra.mxu0 0.0
    %4314 = vmatprep.subr.mxu0 0.0
    %4315 = vmatpush1.msra.mxu0 0.0
    %4316 = vmatprep.subr.mxu0 0.0
    %4317 = vmatpush1.msra.mxu0 0.0
    %4318 = vmatprep.subr.mxu0 0.0
    %4319 = vmatpush1.msra.mxu0 0.0
    %4320 = vmatprep.subr.mxu0 0.0
    %4321 = vmatpush1.msra.mxu0 0.0
    %4322 = vmatprep.subr.mxu0 0.0
    %4323 = vmatpush1.msra.mxu0 0.0
    %4324 = vmatprep.subr.mxu0 0.0
    %4325 = vmatpush1.msra.mxu0 0.0
    %4326 = vmatprep.subr.mxu0 0.0
    %4327 = vmatpush1.msra.mxu0 0.0
    %4328 = vmatprep.subr.mxu0 0.0
    %4329 = vmatpush1.msra.mxu0 0.0
    %4330 = vmatprep.subr.mxu0 0.0
    %4331 = vmatpush1.msra.mxu0 0.0
    %4332 = vmatprep.subr.mxu0 0.0
    %4333 = vmatpush1.msra.mxu0 0.0
    %4334 = vmatprep.subr.mxu0 0.0
    %4335 = vmatpush1.msra.mxu0 0.0
    %4336 = vmatprep.subr.mxu0 0.0
    %4337 = vmatpush1.msra.mxu0 0.0
    %4338 = vmatprep.subr.mxu0 0.0
    %4339 = vmatpush1.msra.mxu0 0.0
    %4340 = vmatprep.subr.mxu0 0.0
    %4341 = vmatpush1.msra.mxu0 0.0
    %4342 = vmatprep.subr.mxu0 0.0
    %4343 = vmatpush1.msra.mxu0 0.0
    %4344 = vmatprep.subr.mxu0 0.0
    %4345 = vmatpush1.msra.mxu0 0.0
    %4346 = vmatprep.subr.mxu0 0.0
    %4347 = vmatpush1.msra.mxu0 0.0
    %4348 = vmatprep.subr.mxu0 0.0
    %4349 = vmatpush1.msra.mxu0 0.0
    %4350 = vmatprep.mubr.f32.mxu0 0.0
    %4351 = vmatmul.mubr.f32.gmra.mrb[0].mxu0 %v4263
    %v4352 = vpop.f32.mrb[0].mxu0
    %v4353 = vadd.f32 0.0, %v4352
    %v4354 = vpop.f32.mrb[0].mxu0
    %4355 = vmatprep.mubr.f32.mxu0 0.0
    %4356 = vmatmul.mubr.f32.gmra.mrb[0].mxu0 %v4266
    %v4357 = vpop.f32.mrb[0].mxu0
    %v4358 = vadd.f32 0.0, %v4357
    %v4359 = vpop.f32.mrb[0].mxu0
    %4360 = vmatprep.mubr.f32.mxu0 0.0
    %4361 = vmatmul.mubr.f32.gmra.mrb[0].mxu0 %v4269
    %v4362 = vpop.f32.mrb[0].mxu0
    %v4363 = vadd.f32 0.0, %v4362
    %v4364 = vpop.f32.mrb[0].mxu0
    %4365 = vmatprep.mubr.f32.mxu0 0.0
    %4366 = vmatmul.mubr.f32.gmra.mrb[0].mxu0 %v4272
    %v4367 = vpop.f32.mrb[0].mxu0
    %v4368 = vadd.f32 0.0, %v4367
    %v4369 = vpop.f32.mrb[0].mxu0
    %4370 = vmatprep.mubr.f32.mxu0 0.0
    %4371 = vmatmul.mubr.f32.gmra.mrb[0].mxu0 %v4275
    %v4372 = vpop.f32.mrb[0].mxu0
    %v4373 = vadd.f32 0.0, %v4372
    %v4374 = vpop.f32.mrb[0].mxu0
    %4375 = vmatprep.mubr.f32.mxu0 0.0
    %4376 = vmatmul.mubr.f32.gmra.mrb[0].mxu0 %v4278
    %v4377 = vpop.f32.mrb[0].mxu0
    %v4378 = vadd.f32 0.0, %v4377
    %v4379 = vpop.f32.mrb[0].mxu0
    %4380 = vmatprep.mubr.f32.mxu0 0.0
    %4381 = vmatmul.mubr.f32.gmra.mrb[0].mxu0 %v4281
    %v4382 = vpop.f32.mrb[0].mxu0
    %v4383 = vadd.f32 0.0, %v4382
    %v4384 = vpop.f32.mrb[0].mxu0
    %4385 = vmatprep.mubr.f32.mxu0 0.0
    %4386 = vmatmul.mubr.f32.gmra.mrb[0].mxu0 %v4284
    %v4387 = vpop.f32.mrb[0].mxu0
    %v4388 = vadd.f32 0.0, %v4387
    %v4389 = vpop.f32.mrb[0].mxu0
    %4390 = vdwg.mxu0
    %4393 = vrot.lane.b32.xlu0 %v4363, 8
    %v4394 = vpop.permute.xlu0 %4393
    %4395 = vrot.lane.b32.xlu0 %v4368, 8
    %v4396 = vpop.permute.xlu0 %4395
    %4401 = vrot.lane.b32.xlu0 %v4373, 16
    %v4402 = vpop.permute.xlu0 %4401
    %4403 = vrot.lane.b32.xlu0 %v4378, 16
    %v4404 = vpop.permute.xlu0 %4403
    %4409 = vrot.lane.b32.xlu0 %v4383, 24
    %v4410 = vpop.permute.xlu0 %4409
    %4411 = vrot.lane.b32.xlu0 %v4388, 24
    %v4412 = vpop.permute.xlu0 %4411
    %v4415 = vsel %vm4011, %v4353, %v4394
    %v4416 = vsel %vm4011, %v4358, %v4396
    %vm4417 = vcmask 130048
    %v4418 = vsel %vm4417, %v4415, %v4402
    %v4419 = vsel %vm4417, %v4416, %v4404
    %vm4420 = vcmask 195584
    %v4421 = vsel %vm4420, %v4418, %v4410
    %v4422 = vsel %vm4420, %v4419, %v4412
    %4423 = vst.msk [vmem:[#allocation2] sm:$0xff] %vm38, %v4421
    %4424 = vst.msk [vmem:[#allocation2 + $0x8] sm:$0xff] %vm38, %v4422
    // Predicated region
    $region26: #{causal_self_attention.1} parent=1 // pred_check
      _
    $region27: #{causal_self_attention.1} parent=1 // pred_check_branch
      %4426 = sbr.rel (0) target = $region29
    $region28: #{causal_self_attention.1} parent=1 // pred_region
      %s4428 = ssub.s32 256, 256
      %4429 = vsyncadd [#allocation3], %s4428
      %s4430 = sshll.u32 [#allocation2], 4
      %s4431 = int_to_ptr.vmem [resolvable:$true] %s4430
      %4436 = dma.vmem_to_hbm [thread:$0]  %s4431, 256, %s6, [#allocation3], 128, 128, 8
    $region29: #{causal_self_attention.1} parent=1 // pred_fallthru
      _
    // Predicated region
    $region30: #{causal_self_attention.1} parent=1 // pred_check
      _
    $region31: #{causal_self_attention.1} parent=1 // pred_check_branch
      %4438 = sbr.rel (0) target = $region33
    $region32: #{causal_self_attention.1} parent=1 // pred_region
      %4439 = dma.done [#allocation3], 256
    $region33: #{causal_self_attention.1} parent=1 // pred_fallthru
      _
    %4440 = vsyncpa [#allocation3], 1

</llo_original>
